<compile_context>
chip_gen: v7x
topology: tpu7x:2x2x1
jax: 0.10.0
libtpu: 0.0.40
codegen_flags: <defaults>
</compile_context>

<pallas_src>
import jax
import jax.numpy as jnp
from jax.experimental import pallas as pl
from jax.experimental.pallas import tpu as pltpu


def _round_up(n, m):
    return ((n + m - 1) // m) * m


# Conservative per-TC VMEM budget for keeping the weights fully resident
# (v7x has 64 MiB per TC; leave headroom for compiler scratch).
_RESIDENT_BUDGET_BYTES = 44 * 2**20
_VMEM_LIMIT_CAP = 48 * 2**20


# ---------------------------------------------------------------------------
# Kernels
# ---------------------------------------------------------------------------

def ffwd_kernel_fused(x_ref, w1_ref, b1_ref, w2_ref, b2_ref, o_ref):
    """Full hidden dim in one step; weights VMEM-resident across row tiles."""
    # x_ref: (tm, C) bf16   w1_ref: (C, H) bf16   b1_ref: (1, H) f32
    # w2_ref: (H, C) bf16   b2_ref: (1, C) f32    o_ref: (tm, C) f32
    h = jnp.dot(x_ref[...], w1_ref[...], preferred_element_type=jnp.float32)
    h = jnp.maximum(h + b1_ref[...], 0.0)
    out = jnp.dot(h.astype(w2_ref.dtype), w2_ref[...],
                  preferred_element_type=jnp.float32) + b2_ref[...]
    o_ref[...] = out.astype(o_ref.dtype)


def ffwd_kernel_htiled(x_ref, w1_ref, b1_ref, w2_ref, b2_ref, o_ref):
    """H streamed in tiles; accumulate directly into the resident output block."""
    # x_ref:  (tm, C)     bf16    w1_ref: (1, C, th) bf16 (contiguous slab)
    # b1_ref: (1, th)     f32     w2_ref: (th, C)    bf16
    # b2_ref: (1, C)      f32     o_ref:  (tm, C)    f32 (resident across h)
    h_idx = pl.program_id(1)

    h = jnp.dot(x_ref[...], w1_ref[0], preferred_element_type=jnp.float32)
    h = jnp.maximum(h + b1_ref[...], 0.0)
    contrib = jnp.dot(h.astype(w2_ref.dtype), w2_ref[...],
                      preferred_element_type=jnp.float32)

    @pl.when(h_idx == 0)
    def _():
        o_ref[...] = contrib.astype(o_ref.dtype)

    @pl.when(h_idx > 0)
    def _():
        o_ref[...] += contrib.astype(o_ref.dtype)

    @pl.when(h_idx == pl.num_programs(1) - 1)
    def _():
        o_ref[...] += b2_ref[...].astype(o_ref.dtype)


# ---------------------------------------------------------------------------
# Wrapper
# ---------------------------------------------------------------------------

def feedforward(x, w1, b1, w2, b2, *, tm=512, th=512, force_h_tiling=False):
    """x: [B, T, C] f32; w1: [C, 4C]; b1: [4C]; w2: [4C, C]; b2: [C] -> [B, T, C] f32."""
    B, T, C = x.shape
    H = w1.shape[1]
    M = B * T

    # Row tiling: multiple of 8 sublanes; ensure >= 2 row tiles (when M > 8) so
    # both v7x TensorCores are used via the "parallel" axis.
    tm_eff = min(tm, _round_up(M, 8))
    if M > 8 and _round_up(M, tm_eff) // tm_eff < 2:
        tm_eff = _round_up((M + 1) // 2, 8)
    M_pad = _round_up(M, tm_eff)

    H128 = _round_up(H, 128)

    def _fused_bytes(tm_, h_):
        return (2 * tm_ * C * 2          # x tile (bf16), double-buffered
                + 2 * C * h_ * 2         # W1 (bf16)
                + 2 * h_ * C * 2         # W2 (bf16)
                + 2 * (h_ + C) * 4       # biases (f32)
                + 2 * tm_ * C * 4        # output tile (f32)
                + tm_ * h_ * 4)          # in-flight hidden activation (f32)

    use_fused = (not force_h_tiling) and (
        _fused_bytes(tm_eff, H128) <= _RESIDENT_BUDGET_BYTES)

    # --- common operand prep: bf16 MXU inputs, f32 biases, exact zero padding
    x2 = x.reshape(M, C).astype(jnp.bfloat16)
    if M_pad != M:
        x2 = jnp.pad(x2, ((0, M_pad - M), (0, 0)))
    b2f = b2.astype(jnp.float32).reshape(1, C)

    if use_fused:
        H_pad = H128
    else:
        th_eff = min(th, H128)
        H_pad = _round_up(H, th_eff)

    w1b = w1.astype(jnp.bfloat16)
    w2b = w2.astype(jnp.bfloat16)
    b1f = b1.astype(jnp.float32).reshape(1, H)
    if H_pad != H:
        # Exact: zero W1 columns / b1 entries give zero hidden activations,
        # which contribute nothing to the second matmul.
        w1b = jnp.pad(w1b, ((0, 0), (0, H_pad - H)))
        w2b = jnp.pad(w2b, ((0, H_pad - H), (0, 0)))
        b1f = jnp.pad(b1f, ((0, 0), (0, H_pad - H)))

    n_row_tiles = M_pad // tm_eff

    if use_fused:
        grid = (n_row_tiles,)
        per_step = _fused_bytes(tm_eff, H_pad)
        vmem_limit = int(min(_VMEM_LIMIT_CAP,
                             max(32 * 2**20, per_step * 3 // 2)))
        cost = pl.CostEstimate(
            flops=4 * M_pad * C * H_pad,
            transcendentals=0,
            bytes_accessed=(M_pad * C * 2            # x (bf16)
                            + 2 * C * H_pad * 2      # W1 + W2 loaded once
                            + (H_pad + C) * 4        # biases
                            + M_pad * C * 4),        # output
        )
        out = pl.pallas_call(
            ffwd_kernel_fused,
            out_shape=jax.ShapeDtypeStruct((M_pad, C), jnp.float32),
            grid_spec=pltpu.PrefetchScalarGridSpec(
                num_scalar_prefetch=0,
                grid=grid,
                in_specs=[
                    pl.BlockSpec((tm_eff, C), lambda i: (i, 0)),   # x rows
                    pl.BlockSpec((C, H_pad), lambda i: (0, 0)),    # W1 (resident)
                    pl.BlockSpec((1, H_pad), lambda i: (0, 0)),    # b1
                    pl.BlockSpec((H_pad, C), lambda i: (0, 0)),    # W2 (resident)
                    pl.BlockSpec((1, C), lambda i: (0, 0)),        # b2
                ],
                out_specs=pl.BlockSpec((tm_eff, C), lambda i: (i, 0)),
            ),
            compiler_params=pltpu.CompilerParams(
                dimension_semantics=("parallel",),
                vmem_limit_bytes=vmem_limit,
            ),
            cost_estimate=cost,
        )(x2, w1b, b1f, w2b, b2f)
    else:
        n_h = H_pad // th_eff
        # Contiguous per-tile W1 slabs: (n_h, C, th) -- one DMA descriptor per tile.
        w1t = w1b.reshape(C, n_h, th_eff).transpose(1, 0, 2)
        grid = (n_row_tiles, n_h)
        per_step = (2 * tm_eff * C * 2        # x tile (bf16)
                    + 2 * C * th_eff * 2      # W1 tile (bf16)
                    + 2 * th_eff * C * 2      # W2 tile (bf16)
                    + 2 * (th_eff + C) * 4    # biases (f32)
                    + 2 * tm_eff * C * 4      # output tile (f32)
                    + tm_eff * th_eff * 4)    # hidden activation (f32)
        vmem_limit = int(min(_VMEM_LIMIT_CAP,
                             max(32 * 2**20, per_step * 3 // 2)))
        cost = pl.CostEstimate(
            flops=4 * M_pad * C * H_pad,
            transcendentals=0,
            bytes_accessed=(M_pad * C * 2
                            + n_row_tiles * 2 * (2 * C * H_pad)  # weights re-streamed per row tile
                            + (H_pad + C) * 4
                            + M_pad * C * 4),
        )
        out = pl.pallas_call(
            ffwd_kernel_htiled,
            out_shape=jax.ShapeDtypeStruct((M_pad, C), jnp.float32),
            grid_spec=pltpu.PrefetchScalarGridSpec(
                num_scalar_prefetch=0,
                grid=grid,
                in_specs=[
                    pl.BlockSpec((tm_eff, C), lambda i, h: (i, 0)),       # x rows
                    pl.BlockSpec((1, C, th_eff), lambda i, h: (h, 0, 0)),  # W1 slab
                    pl.BlockSpec((1, th_eff), lambda i, h: (0, h)),        # b1 tile
                    pl.BlockSpec((th_eff, C), lambda i, h: (h, 0)),        # W2 tile
                    pl.BlockSpec((1, C), lambda i, h: (0, 0)),             # b2
                ],
                out_specs=pl.BlockSpec((tm_eff, C), lambda i, h: (i, 0)),  # resident over h
            ),
            compiler_params=pltpu.CompilerParams(
                dimension_semantics=("parallel", "arbitrary"),
                vmem_limit_bytes=vmem_limit,
            ),
            cost_estimate=cost,
        )(x2, w1t, b1f, w2b, b2f)

    return out[:M].reshape(B, T, C)


def init_params(key, n_embd):
    """Deterministic init matching nn.Linear's U(-1/sqrt(fan_in), 1/sqrt(fan_in))."""
    hidden = 4 * n_embd
    k1, k2, k3, k4 = jax.random.split(key, 4)
    lim1 = 1.0 / jnp.sqrt(n_embd)
    lim2 = 1.0 / jnp.sqrt(hidden)
    # Stored already-transposed relative to PyTorch: W1 [C, 4C], W2 [4C, C].
    w1 = jax.random.uniform(k1, (n_embd, hidden), jnp.float32, -lim1, lim1)
    b1 = jax.random.uniform(k2, (hidden,), jnp.float32, -lim1, lim1)
    w2 = jax.random.uniform(k3, (hidden, n_embd), jnp.float32, -lim2, lim2)
    b2 = jax.random.uniform(k4, (n_embd,), jnp.float32, -lim2, lim2)
    return w1, b1, w2, b2


if __name__ == "__main__":
    # Small shapes consistent with the module: batch=2, seq=8, n_embd=384.
    B, T, n_embd = 2, 8, 384
    key = jax.random.PRNGKey(0)
    kx, kp = jax.random.split(key)
    x = jax.random.normal(kx, (B, T, n_embd), jnp.float32)
    w1, b1, w2, b2 = init_params(kp, n_embd)

    # Reference in plain JAX, mirroring the kernel's bf16 MXU inputs / f32 accum.
    # (Eval-mode dropout == identity.)
    xb = x.reshape(-1, n_embd).astype(jnp.bfloat16)
    h_ref = jnp.maximum(
        jnp.dot(xb, w1.astype(jnp.bfloat16),
                preferred_element_type=jnp.float32) + b1, 0.0)
    ref = (jnp.dot(h_ref.astype(jnp.bfloat16), w2.astype(jnp.bfloat16),
                   preferred_element_type=jnp.float32) + b2).reshape(B, T, n_embd)

    # Primary (fused, weight-resident) path.
    out = jax.block_until_ready(feedforward(x, w1, b1, w2, b2))
    assert out.shape == (B, T, n_embd)
    assert jnp.allclose(out, ref, atol=2e-2, rtol=2e-2), float(
        jnp.max(jnp.abs(out - ref)))

    # Also exercise the H-tiled fallback path (used when weights exceed the
    # VMEM residency budget); differs only by f32 accumulation order.
    out_t = jax.block_until_ready(
        feedforward(x, w1, b1, w2, b2, th=512, force_h_tiling=True))
    assert jnp.allclose(out_t, ref, atol=2e-2, rtol=2e-2), float(
        jnp.max(jnp.abs(out_t - ref)))

    print("KERNEL_OK")
</pallas_src>

<mosaic_0001>
module attributes {stable_mosaic.version = 11 : i64} {
  func.func @ffwd_kernel_fused(%arg0: i32, %arg1: memref<8x384xbf16, #tpu.memory_space<vmem>>, %arg2: memref<384x1536xbf16, #tpu.memory_space<vmem>>, %arg3: memref<1x1536xf32, #tpu.memory_space<vmem>>, %arg4: memref<1536x384xbf16, #tpu.memory_space<vmem>>, %arg5: memref<1x384xf32, #tpu.memory_space<vmem>>, %arg6: memref<8x384xf32, #tpu.memory_space<vmem>>) attributes {dimension_semantics = [#tpu.dimension_semantics<parallel>], iteration_bounds = array<i64: 2>, scalar_prefetch = 0 : i64, scratch_operands = 0 : i64, tpu.core_type = #tpu.core_type<tc>, window_params = [{transform_indices = @transform_0, window_bounds = array<i64: 8, 384>}, {pipeline_mode = #tpu.pipeline_mode<synchronous>, transform_indices = @transform_1, window_bounds = array<i64: 384, 1536>}, {pipeline_mode = #tpu.pipeline_mode<synchronous>, transform_indices = @transform_2, window_bounds = array<i64: 1, 1536>}, {pipeline_mode = #tpu.pipeline_mode<synchronous>, transform_indices = @transform_3, window_bounds = array<i64: 1536, 384>}, {pipeline_mode = #tpu.pipeline_mode<synchronous>, transform_indices = @transform_4, window_bounds = array<i64: 1, 384>}, {transform_indices = @transform_5, window_bounds = array<i64: 8, 384>}]} {
    %c0 = arith.constant 0 : index
    %c0_0 = arith.constant 0 : index
    %0 = vector.load %arg1[%c0, %c0_0] : memref<8x384xbf16, #tpu.memory_space<vmem>>, vector<8x384xbf16>
    %c0_1 = arith.constant 0 : index
    %c0_2 = arith.constant 0 : index
    %1 = vector.load %arg2[%c0_1, %c0_2] : memref<384x1536xbf16, #tpu.memory_space<vmem>>, vector<384x1536xbf16>
    %cst = arith.constant dense<0.000000e+00> : vector<8x1536xf32>
    %2 = tpu.matmul %0, %1, %cst {dimension_numbers = #tpu.dot_dimension_numbers<[1], [0], [0], [1], [0, 0, 1, 1], [], []>} : vector<8x384xbf16>, vector<384x1536xbf16>, vector<8x1536xf32> -> vector<8x1536xf32>
    %c0_3 = arith.constant 0 : index
    %c0_4 = arith.constant 0 : index
    %3 = vector.load %arg3[%c0_3, %c0_4] : memref<1x1536xf32, #tpu.memory_space<vmem>>, vector<1x1536xf32>
    %4 = vector.broadcast %3 : vector<1x1536xf32> to vector<8x1536xf32>
    %5 = arith.addf %2, %4 : vector<8x1536xf32>
    %cst_5 = arith.constant 0.000000e+00 : f32
    %6 = vector.broadcast %cst_5 : f32 to vector<8x1536xf32>
    %7 = arith.maximumf %5, %6 : vector<8x1536xf32>
    %8 = arith.truncf %7 : vector<8x1536xf32> to vector<8x1536xbf16>
    %c0_6 = arith.constant 0 : index
    %c0_7 = arith.constant 0 : index
    %9 = vector.load %arg4[%c0_6, %c0_7] : memref<1536x384xbf16, #tpu.memory_space<vmem>>, vector<1536x384xbf16>
    %cst_8 = arith.constant dense<0.000000e+00> : vector<8x384xf32>
    %10 = tpu.matmul %8, %9, %cst_8 {dimension_numbers = #tpu.dot_dimension_numbers<[1], [0], [0], [1], [0, 0, 1, 1], [], []>} : vector<8x1536xbf16>, vector<1536x384xbf16>, vector<8x384xf32> -> vector<8x384xf32>
    %c0_9 = arith.constant 0 : index
    %c0_10 = arith.constant 0 : index
    %11 = vector.load %arg5[%c0_9, %c0_10] : memref<1x384xf32, #tpu.memory_space<vmem>>, vector<1x384xf32>
    %12 = vector.broadcast %11 : vector<1x384xf32> to vector<8x384xf32>
    %13 = arith.addf %10, %12 : vector<8x384xf32>
    %c0_11 = arith.constant 0 : index
    %c0_12 = arith.constant 0 : index
    %14 = vector.load %arg6[%c0_11, %c0_12] : memref<8x384xf32, #tpu.memory_space<vmem>>, vector<8x384xf32>
    tpu.vector_store %arg6[%c0_11, %c0_12], %13 {strides = array<i32>} : memref<8x384xf32, #tpu.memory_space<vmem>>, vector<8x384xf32>,
    return
  }
  func.func @transform_0(%arg0: i32) -> (i32, i32) {
    %c0_i32 = arith.constant 0 : i32
    %c0_i32_0 = arith.constant 0 : i32
    return %arg0, %c0_i32 : i32, i32
  }
  func.func @transform_1(%arg0: i32) -> (i32, i32) {
    %c0_i32 = arith.constant 0 : i32
    %c0_i32_0 = arith.constant 0 : i32
    %c0_i32_1 = arith.constant 0 : i32
    return %c0_i32, %c0_i32_0 : i32, i32
  }
  func.func @transform_2(%arg0: i32) -> (i32, i32) {
    %c0_i32 = arith.constant 0 : i32
    %c0_i32_0 = arith.constant 0 : i32
    %c0_i32_1 = arith.constant 0 : i32
    return %c0_i32, %c0_i32_0 : i32, i32
  }
  func.func @transform_3(%arg0: i32) -> (i32, i32) {
    %c0_i32 = arith.constant 0 : i32
    %c0_i32_0 = arith.constant 0 : i32
    %c0_i32_1 = arith.constant 0 : i32
    return %c0_i32, %c0_i32_0 : i32, i32
  }
  func.func @transform_4(%arg0: i32) -> (i32, i32) {
    %c0_i32 = arith.constant 0 : i32
    %c0_i32_0 = arith.constant 0 : i32
    %c0_i32_1 = arith.constant 0 : i32
    return %c0_i32, %c0_i32_0 : i32, i32
  }
  func.func @transform_5(%arg0: i32) -> (i32, i32) {
    %c0_i32 = arith.constant 0 : i32
    %c0_i32_0 = arith.constant 0 : i32
    return %arg0, %c0_i32 : i32, i32
  }
}

</mosaic_0001>

<llo_original>
// kernel: tpu_custom_call.1
$region0: #{tpu_custom_call.1}
  #allocation0 [shape = 'u32[]', space=smem, size = 0x4, offset = 0x4, fixed_abs, tag = 'smem constant byte address 0x4 - core index']
  #allocation1 [shape = 'u32[144,128]{1,0:T(1,128)}', space=vmem, size = 0x12000, scoped, tag = 'internal scratch']
  %s0 = inlined_call_operand.hbm [shape: bf16[16,384], index: 0, kind: input, shape index: {}]
  %s1 = inlined_call_operand.hbm [shape: bf16[384,1536], index: 1, kind: input, shape index: {}]
  %s2 = inlined_call_operand.hbm [shape: f32[1,1536], index: 2, kind: input, shape index: {}]
  %s3 = inlined_call_operand.hbm [shape: bf16[1536,384], index: 3, kind: input, shape index: {}]
  %s4 = inlined_call_operand.hbm [shape: f32[1,384], index: 4, kind: input, shape index: {}]
  %s5 = inlined_call_operand.hbm [shape: f32[16,384], index: 5, kind: output, shape index: {}]
  %s6 = sld [smem:[#allocation0]]
  $region73: #{tpu_custom_call.1} parent=0
    _
  %s8 = ssub.s32 1, %s6
  %s9 = scalar_select 0, %s8, %s6
  $region1: #{tpu_custom_call.1} parent=0
    #allocation2 [shape = 'u8[12288]{0}', space=vmem, size = 0x3000, scoped, tag = 'input window, operand 0']
    #allocation3 [shape = 's32[2]{0}', space=sflag, size = 0x8, scoped, tag = 'scoped memory for tpu_custom_call.1']
    #allocation4 [shape = 's32[2]{0}', space=sflag, size = 0x8, scoped, tag = 'scoped memory for tpu_custom_call.1']
    #allocation5 [shape = 'u8[1179648]{0}', space=vmem, size = 0x120000, scoped, tag = 'input window, operand 1, single buffered']
    #allocation6 [shape = 's32[1]{0}', space=sflag, size = 0x4, scoped, tag = 'scoped memory for tpu_custom_call.1']
    #allocation7 [shape = 'u8[6144]{0}', space=vmem, size = 0x1800, scoped, tag = 'input window, operand 2, single buffered']
    #allocation8 [shape = 'u8[1179648]{0}', space=vmem, size = 0x120000, scoped, tag = 'input window, operand 3, single buffered']
    #allocation9 [shape = 's32[1]{0}', space=sflag, size = 0x4, scoped, tag = 'scoped memory for tpu_custom_call.1']
    #allocation10 [shape = 'u8[1536]{0}', space=vmem, size = 0x800, scoped, tag = 'input window, operand 4, single buffered']
    #allocation11 [shape = 'u8[24576]{0}', space=vmem, size = 0x6000, scoped, tag = 'output window, operand 0']
    %10 = vsyncpa [#allocation3], 0
    %s11 = scalar_lea.sflag [#allocation3], 1
    %12 = vsyncpa %s11, 0
    %13 = vsyncpa [#allocation6], 0
    %14 = vsyncpa [#allocation9], 0
    %15 = vsyncpa [#allocation4], 0
    %s16 = scalar_lea.sflag [#allocation4], 1
    %17 = vsyncpa %s16, 0
    loop: start=0, step=1, limit=4
    $region2: #{tpu_custom_call.1} parent=1 // loop_pre_header
      _
    $region3: #{tpu_custom_call.1} parent=1 // loop_header
      %s19 = sphi 0, %s23
      %p20 = scmp.ge.s32.totalorder %s19, 4
      %s29 = sphi 0, %s31
      %s32 = sphi 0, %s29
      %s33 = sphi 0, %s32
      %s49 = sphi 0, %s33
      %s53 = sphi 0, %s53
      %s55 = sphi 0, %s53
      %s56 = sphi 0, %s55
      %s70 = sphi 0, %s56
      %s74 = sphi 0, %s74
      %s76 = sphi 0, %s74
      %s77 = sphi 0, %s76
      %s91 = sphi 0, %s77
      %s95 = sphi 0, %s95
      %s97 = sphi 0, %s95
      %s98 = sphi 0, %s97
      %s112 = sphi 0, %s98
      %s116 = sphi 0, %s116
      %s118 = sphi 0, %s116
      %s119 = sphi 0, %s118
      %s133 = sphi 0, %s119
      %s139 = sphi 0, %s141
      %s142 = sphi 0, %s139
      %s143 = sphi 0, %s142
      %s159 = sphi 0, %s143
    $region4: #{tpu_custom_call.1} parent=1 // loop_header_branch
      %22 = sbr.rel (%p20) target = $region8
    $region5: #{tpu_custom_call.1} parent=1 // loop_body
      %s24 = ssub.s32 %s19, 1
      %s25 = ssub.s32 %s19, 2
      %s26 = sadd.s32 %s19, 1
      %s27 = ssub.s32 %s19, %s26
      %p28 = scmp.eq.s32.totalorder %s27, 0
      %s30 = sadd.s32 %s29, 1
      %s31 = scalar_select %p28, %s29, %s30
      %p34 = pneg %p28
      %p35 = scmp.eq.s32.totalorder %s19, 1
      %p36 = por %p34, %p35
      %p37 = scmp.ne.s32.totalorder %s29, %s32
      %p38 = scmp.eq.s32.totalorder %s19, 0
      %p39 = por %p37, %p38
      %p40 = scmp.ne.s32.totalorder %s29, %s32
      %p41 = scmp.eq.s32.totalorder %s24, 1
      %p42 = por %p40, %p41
      %p43 = scmp.ne.s32.totalorder %s32, %s33
      %p44 = scmp.eq.s32.totalorder %s24, 0
      %p45 = por %p43, %p44
      %p46 = scmp.ne.s32.totalorder %s32, %s33
      %p47 = scmp.eq.s32.totalorder %s25, 1
      %p48 = por %p46, %p47
      %p50 = scmp.ne.s32.totalorder %s33, %s49
      %p51 = scmp.eq.s32.totalorder %s25, 0
      %p52 = por %p50, %p51
      %s54 = sadd.s32 %s53, 1
      %p57 = scmp.eq.s32.totalorder %s19, 1
      %p58 = scmp.ne.s32.totalorder %s53, %s55
      %p59 = scmp.eq.s32.totalorder %s19, 0
      %p60 = por %p58, %p59
      %p61 = scmp.ne.s32.totalorder %s53, %s55
      %p62 = scmp.eq.s32.totalorder %s24, 1
      %p63 = por %p61, %p62
      %p64 = scmp.ne.s32.totalorder %s55, %s56
      %p65 = scmp.eq.s32.totalorder %s24, 0
      %p66 = por %p64, %p65
      %p67 = scmp.ne.s32.totalorder %s55, %s56
      %p68 = scmp.eq.s32.totalorder %s25, 1
      %p69 = por %p67, %p68
      %p71 = scmp.ne.s32.totalorder %s56, %s70
      %p72 = scmp.eq.s32.totalorder %s25, 0
      %p73 = por %p71, %p72
      %s75 = sadd.s32 %s74, 1
      %p78 = scmp.eq.s32.totalorder %s19, 1
      %p79 = scmp.ne.s32.totalorder %s74, %s76
      %p80 = scmp.eq.s32.totalorder %s19, 0
      %p81 = por %p79, %p80
      %p82 = scmp.ne.s32.totalorder %s74, %s76
      %p83 = scmp.eq.s32.totalorder %s24, 1
      %p84 = por %p82, %p83
      %p85 = scmp.ne.s32.totalorder %s76, %s77
      %p86 = scmp.eq.s32.totalorder %s24, 0
      %p87 = por %p85, %p86
      %p88 = scmp.ne.s32.totalorder %s76, %s77
      %p89 = scmp.eq.s32.totalorder %s25, 1
      %p90 = por %p88, %p89
      %p92 = scmp.ne.s32.totalorder %s77, %s91
      %p93 = scmp.eq.s32.totalorder %s25, 0
      %p94 = por %p92, %p93
      %s96 = sadd.s32 %s95, 1
      %p99 = scmp.eq.s32.totalorder %s19, 1
      %p100 = scmp.ne.s32.totalorder %s95, %s97
      %p101 = scmp.eq.s32.totalorder %s19, 0
      %p102 = por %p100, %p101
      %p103 = scmp.ne.s32.totalorder %s95, %s97
      %p104 = scmp.eq.s32.totalorder %s24, 1
      %p105 = por %p103, %p104
      %p106 = scmp.ne.s32.totalorder %s97, %s98
      %p107 = scmp.eq.s32.totalorder %s24, 0
      %p108 = por %p106, %p107
      %p109 = scmp.ne.s32.totalorder %s97, %s98
      %p110 = scmp.eq.s32.totalorder %s25, 1
      %p111 = por %p109, %p110
      %p113 = scmp.ne.s32.totalorder %s98, %s112
      %p114 = scmp.eq.s32.totalorder %s25, 0
      %p115 = por %p113, %p114
      %s117 = sadd.s32 %s116, 1
      %p120 = scmp.eq.s32.totalorder %s19, 1
      %p121 = scmp.ne.s32.totalorder %s116, %s118
      %p122 = scmp.eq.s32.totalorder %s19, 0
      %p123 = por %p121, %p122
      %p124 = scmp.ne.s32.totalorder %s116, %s118
      %p125 = scmp.eq.s32.totalorder %s24, 1
      %p126 = por %p124, %p125
      %p127 = scmp.ne.s32.totalorder %s118, %s119
      %p128 = scmp.eq.s32.totalorder %s24, 0
      %p129 = por %p127, %p128
      %p130 = scmp.ne.s32.totalorder %s118, %s119
      %p131 = scmp.eq.s32.totalorder %s25, 1
      %p132 = por %p130, %p131
      %p134 = scmp.ne.s32.totalorder %s119, %s133
      %p135 = scmp.eq.s32.totalorder %s25, 0
      %p136 = por %p134, %p135
      %s137 = ssub.s32 %s19, %s26
      %p138 = scmp.eq.s32.totalorder %s137, 0
      %s140 = sadd.s32 %s139, 1
      %s141 = scalar_select %p138, %s139, %s140
      %p144 = pneg %p138
      %p145 = scmp.eq.s32.totalorder %s19, 1
      %p146 = por %p144, %p145
      %p147 = scmp.ne.s32.totalorder %s139, %s142
      %p148 = scmp.eq.s32.totalorder %s19, 0
      %p149 = por %p147, %p148
      %p150 = scmp.ne.s32.totalorder %s139, %s142
      %p151 = scmp.eq.s32.totalorder %s24, 1
      %p152 = por %p150, %p151
      %p153 = scmp.ne.s32.totalorder %s142, %s143
      %p154 = scmp.eq.s32.totalorder %s24, 0
      %p155 = por %p153, %p154
      %p156 = scmp.ne.s32.totalorder %s142, %s143
      %p157 = scmp.eq.s32.totalorder %s25, 1
      %p158 = por %p156, %p157
      %p160 = scmp.ne.s32.totalorder %s143, %s159
      %p161 = scmp.eq.s32.totalorder %s25, 0
      %p162 = por %p160, %p161
      %p163 = scmp.le.s32.totalorder 1, %s19
      %p164 = scmp.lt.s32.totalorder %s19, 3
      %p165 = pnand %p163, %p164
      %p166 = pneg %p165
      // Predicated region
      $region9: #{tpu_custom_call.1} parent=5 // pred_check
        _
      $region10: #{tpu_custom_call.1} parent=5 // pred_check_branch
        %168 = sbr.rel (%p165) target = $region12
      $region11: #{tpu_custom_call.1} parent=5 // pred_region
        %s169 = ssub.s32 %s19, 1
        // Predicated region
        $region13: #{tpu_custom_call.1} parent=11 // pred_check
          %p170 = pneg %p66
        $region14: #{tpu_custom_call.1} parent=11 // pred_check_branch
          %172 = sbr.rel (%p170) target = $region16
        $region15: #{tpu_custom_call.1} parent=11 // pred_region
          %s174 = ssub.s32 36864, 36864
          %175 = vsyncadd [#allocation6], %s174
          %s176 = sshll.u32 [#allocation5], 4
          %s177 = int_to_ptr.vmem [resolvable:$true] %s176
          %182 = dma.hbm_to_vmem [thread:$0]  %s1, 36864, %s177, [#allocation6], 768, 768, 48
        $region16: #{tpu_custom_call.1} parent=11 // pred_fallthru
          _
        // Predicated region
        $region17: #{tpu_custom_call.1} parent=11 // pred_check
          %p183 = pneg %p87
        $region18: #{tpu_custom_call.1} parent=11 // pred_check_branch
          %185 = sbr.rel (%p183) target = $region20
        $region19: #{tpu_custom_call.1} parent=11 // pred_region
          %s187 = ssub.s32 192, 192
          %188 = vsyncadd [#allocation6], %s187
          %s190 = sshll.u32 [#allocation7], 4
          %s191 = int_to_ptr.vmem [resolvable:$true] %s190
          %193 = dma.hbm_to_vmem [thread:$0]  %s2, 192, %s191, [#allocation6]
        $region20: #{tpu_custom_call.1} parent=11 // pred_fallthru
          _
        // Predicated region
        $region21: #{tpu_custom_call.1} parent=11 // pred_check
          %p194 = pneg %p108
        $region22: #{tpu_custom_call.1} parent=11 // pred_check_branch
          %196 = sbr.rel (%p194) target = $region24
        $region23: #{tpu_custom_call.1} parent=11 // pred_region
          %s198 = ssub.s32 36864, 36864
          %199 = vsyncadd [#allocation9], %s198
          %s200 = sshll.u32 [#allocation8], 4
          %s201 = int_to_ptr.vmem [resolvable:$true] %s200
          %206 = dma.hbm_to_vmem [thread:$0]  %s3, 36864, %s201, [#allocation9], 192, 192, 12
        $region24: #{tpu_custom_call.1} parent=11 // pred_fallthru
          _
        // Predicated region
        $region25: #{tpu_custom_call.1} parent=11 // pred_check
          %p207 = pneg %p129
        $region26: #{tpu_custom_call.1} parent=11 // pred_check_branch
          %209 = sbr.rel (%p207) target = $region28
        $region27: #{tpu_custom_call.1} parent=11 // pred_region
          %s211 = ssub.s32 48, 48
          %212 = vsyncadd [#allocation9], %s211
          %s214 = sshll.u32 [#allocation10], 4
          %s215 = int_to_ptr.vmem [resolvable:$true] %s214
          %217 = dma.hbm_to_vmem [thread:$0]  %s4, 48, %s215, [#allocation9]
        $region28: #{tpu_custom_call.1} parent=11 // pred_fallthru
          _
      $region12: #{tpu_custom_call.1} parent=5 // pred_fallthru
        _
      %p218 = scmp.lt.s32.totalorder %s19, 2
      // Predicated region
      $region29: #{tpu_custom_call.1} parent=5 // pred_check
        %p219 = pneg %p218
      $region30: #{tpu_custom_call.1} parent=5 // pred_check_branch
        %221 = sbr.rel (%p219) target = $region32
      $region31: #{tpu_custom_call.1} parent=5 // pred_region
        // Predicated region
        $region33: #{tpu_custom_call.1} parent=31 // pred_check
          %p222 = pneg %p39
        $region34: #{tpu_custom_call.1} parent=31 // pred_check_branch
          %224 = sbr.rel (%p222) target = $region36
        $region35: #{tpu_custom_call.1} parent=31 // pred_region
          %s225 = sand.u32 %s29, 1
          %s226 = scalar_lea.sflag [#allocation3], %s225
          %s227 = sand.u32 %s29, 1
          %s228 = smul.addr %s227, 12
          %s229 = scalar_lea.vmem [#allocation2], %s228
          %s231 = ssub.s32 192, 192
          %232 = vsyncadd %s226, %s231
          %s233 = smul.addr %s19, 3
          %s234 = smul.addr %s233, 64
          %s235 = scalar_lea.hbm %s0, %s234
          %s237 = sshll.u32 %s229, 4
          %s238 = int_to_ptr.vmem [resolvable:$true] %s237
          %240 = dma.hbm_to_vmem [thread:$0]  %s235, 192, %s238, %s226
        $region36: #{tpu_custom_call.1} parent=31 // pred_fallthru
          _
      $region32: #{tpu_custom_call.1} parent=5 // pred_fallthru
        _
      %p241 = scmp.le.s32.totalorder 1, %s19
      %p242 = scmp.lt.s32.totalorder %s19, 3
      %p243 = pnand %p241, %p242
      %p244 = pneg %p243
      // Predicated region
      $region37: #{tpu_custom_call.1} parent=5 // pred_check
        _
      $region38: #{tpu_custom_call.1} parent=5 // pred_check_branch
        %246 = sbr.rel (%p243) target = $region40
      $region39: #{tpu_custom_call.1} parent=5 // pred_region
        %s247 = ssub.s32 %s19, 1
        %s248 = sand.u32 %s32, 1
        %s249 = scalar_lea.sflag [#allocation3], %s248
        %s250 = sand.u32 %s32, 1
        %s251 = smul.addr %s250, 12
        %s252 = scalar_lea.vmem [#allocation2], %s251
        // Predicated region
        $region41: #{tpu_custom_call.1} parent=39 // pred_check
          %p253 = pneg %p45
        $region42: #{tpu_custom_call.1} parent=39 // pred_check_branch
          %255 = sbr.rel (%p253) target = $region44
        $region43: #{tpu_custom_call.1} parent=39 // pred_region
          %256 = dma.done %s249, 192
        $region44: #{tpu_custom_call.1} parent=39 // pred_fallthru
          _
        // Predicated region
        $region45: #{tpu_custom_call.1} parent=39 // pred_check
          %p257 = pneg %p66
        $region46: #{tpu_custom_call.1} parent=39 // pred_check_branch
          %259 = sbr.rel (%p257) target = $region48
        $region47: #{tpu_custom_call.1} parent=39 // pred_region
          %260 = dma.done [#allocation6], 36864
        $region48: #{tpu_custom_call.1} parent=39 // pred_fallthru
          _
        // Predicated region
        $region49: #{tpu_custom_call.1} parent=39 // pred_check
          %p261 = pneg %p87
        $region50: #{tpu_custom_call.1} parent=39 // pred_check_branch
          %263 = sbr.rel (%p261) target = $region52
        $region51: #{tpu_custom_call.1} parent=39 // pred_region
          %264 = dma.done [#allocation6], 192
        $region52: #{tpu_custom_call.1} parent=39 // pred_fallthru
          _
        // Predicated region
        $region53: #{tpu_custom_call.1} parent=39 // pred_check
          %p265 = pneg %p108
        $region54: #{tpu_custom_call.1} parent=39 // pred_check_branch
          %267 = sbr.rel (%p265) target = $region56
        $region55: #{tpu_custom_call.1} parent=39 // pred_region
          %268 = dma.done [#allocation9], 36864
        $region56: #{tpu_custom_call.1} parent=39 // pred_fallthru
          _
        // Predicated region
        $region57: #{tpu_custom_call.1} parent=39 // pred_check
          %p269 = pneg %p129
        $region58: #{tpu_custom_call.1} parent=39 // pred_check_branch
          %271 = sbr.rel (%p269) target = $region60
        $region59: #{tpu_custom_call.1} parent=39 // pred_region
          %272 = dma.done [#allocation9], 48
        $region60: #{tpu_custom_call.1} parent=39 // pred_fallthru
          _
        %s273 = sand.u32 %s32, 1
        %s274 = scalar_lea.sflag [#allocation3], %s273
        %s275 = sand.u32 %s32, 1
        %s276 = smul.addr %s275, 12
        %s277 = scalar_lea.vmem [#allocation2], %s276
        %p278 = pneg %p45
        %p279 = pneg %p42
        %p280 = pneg %p66
        %p281 = pneg %p63
        %p282 = pneg %p87
        %p283 = pneg %p84
        %p284 = pneg %p108
        %p285 = pneg %p105
        %p286 = pneg %p129
        %p287 = pneg %p126
        %p288 = pneg %p155
        %p289 = pneg %p152
        %s290 = sand.u32 %s142, 1
        %s291 = scalar_lea.sflag [#allocation4], %s290
        %s292 = sand.u32 %s142, 1
        %s293 = smul.addr %s292, 24
        %s294 = scalar_lea.vmem [#allocation11], %s293
        %v296 = vld [vmem:[%s252] sm:$0xff]
        %v297 = vld [vmem:[%s252 + $0x8] sm:$0xf]
        %v298 = vld [vmem:[#allocation5] sm:$0xff]
        %v299 = vld [vmem:[#allocation5 + $0x8] sm:$0xff]
        %v300 = vld [vmem:[#allocation5 + $0x10] sm:$0xff]
        %v301 = vld [vmem:[#allocation5 + $0x18] sm:$0xff]
        %v302 = vld [vmem:[#allocation5 + $0x20] sm:$0xff]
        %v303 = vld [vmem:[#allocation5 + $0x28] sm:$0xff]
        %v304 = vld [vmem:[#allocation5 + $0x30] sm:$0xff]
        %v305 = vld [vmem:[#allocation5 + $0x38] sm:$0xff]
        %v306 = vld [vmem:[#allocation5 + $0x40] sm:$0xff]
        %v307 = vld [vmem:[#allocation5 + $0x48] sm:$0xff]
        %v308 = vld [vmem:[#allocation5 + $0x50] sm:$0xff]
        %v309 = vld [vmem:[#allocation5 + $0x58] sm:$0xff]
        %v310 = vld [vmem:[#allocation5 + $0x60] sm:$0xff]
        %v311 = vld [vmem:[#allocation5 + $0x68] sm:$0xff]
        %v312 = vld [vmem:[#allocation5 + $0x70] sm:$0xff]
        %v313 = vld [vmem:[#allocation5 + $0x78] sm:$0xff]
        %v314 = vld [vmem:[#allocation5 + $0x80] sm:$0xff]
        %v315 = vld [vmem:[#allocation5 + $0x88] sm:$0xff]
        %v316 = vld [vmem:[#allocation5 + $0x90] sm:$0xff]
        %v317 = vld [vmem:[#allocation5 + $0x98] sm:$0xff]
        %v318 = vld [vmem:[#allocation5 + $0xa0] sm:$0xff]
        %v319 = vld [vmem:[#allocation5 + $0xa8] sm:$0xff]
        %v320 = vld [vmem:[#allocation5 + $0xb0] sm:$0xff]
        %v321 = vld [vmem:[#allocation5 + $0xb8] sm:$0xff]
        %v322 = vld [vmem:[#allocation5 + $0xc0] sm:$0xff]
        %v323 = vld [vmem:[#allocation5 + $0xc8] sm:$0xff]
        %v324 = vld [vmem:[#allocation5 + $0xd0] sm:$0xff]
        %v325 = vld [vmem:[#allocation5 + $0xd8] sm:$0xff]
        %v326 = vld [vmem:[#allocation5 + $0xe0] sm:$0xff]
        %v327 = vld [vmem:[#allocation5 + $0xe8] sm:$0xff]
        %v328 = vld [vmem:[#allocation5 + $0xf0] sm:$0xff]
        %v329 = vld [vmem:[#allocation5 + $0xf8] sm:$0xff]
        %v330 = vld [vmem:[#allocation5 + $0x100] sm:$0xff]
        %v331 = vld [vmem:[#allocation5 + $0x108] sm:$0xff]
        %v332 = vld [vmem:[#allocation5 + $0x110] sm:$0xff]
        %v333 = vld [vmem:[#allocation5 + $0x118] sm:$0xff]
        %v334 = vld [vmem:[#allocation5 + $0x120] sm:$0xff]
        %v335 = vld [vmem:[#allocation5 + $0x128] sm:$0xff]
        %v336 = vld [vmem:[#allocation5 + $0x130] sm:$0xff]
        %v337 = vld [vmem:[#allocation5 + $0x138] sm:$0xff]
        %v338 = vld [vmem:[#allocation5 + $0x140] sm:$0xff]
        %v339 = vld [vmem:[#allocation5 + $0x148] sm:$0xff]
        %v340 = vld [vmem:[#allocation5 + $0x150] sm:$0xff]
        %v341 = vld [vmem:[#allocation5 + $0x158] sm:$0xff]
        %v342 = vld [vmem:[#allocation5 + $0x160] sm:$0xff]
        %v343 = vld [vmem:[#allocation5 + $0x168] sm:$0xff]
        %v344 = vld [vmem:[#allocation5 + $0x170] sm:$0xff]
        %v345 = vld [vmem:[#allocation5 + $0x178] sm:$0xff]
        %v346 = vld [vmem:[#allocation5 + $0x180] sm:$0xff]
        %v347 = vld [vmem:[#allocation5 + $0x188] sm:$0xff]
        %v348 = vld [vmem:[#allocation5 + $0x190] sm:$0xff]
        %v349 = vld [vmem:[#allocation5 + $0x198] sm:$0xff]
        %v350 = vld [vmem:[#allocation5 + $0x1a0] sm:$0xff]
        %v351 = vld [vmem:[#allocation5 + $0x1a8] sm:$0xff]
        %v352 = vld [vmem:[#allocation5 + $0x1b0] sm:$0xff]
        %v353 = vld [vmem:[#allocation5 + $0x1b8] sm:$0xff]
        %v354 = vld [vmem:[#allocation5 + $0x1c0] sm:$0xff]
        %v355 = vld [vmem:[#allocation5 + $0x1c8] sm:$0xff]
        %v356 = vld [vmem:[#allocation5 + $0x1d0] sm:$0xff]
        %v357 = vld [vmem:[#allocation5 + $0x1d8] sm:$0xff]
        %v358 = vld [vmem:[#allocation5 + $0x1e0] sm:$0xff]
        %v359 = vld [vmem:[#allocation5 + $0x1e8] sm:$0xff]
        %v360 = vld [vmem:[#allocation5 + $0x1f0] sm:$0xff]
        %v361 = vld [vmem:[#allocation5 + $0x1f8] sm:$0xff]
        %v362 = vld [vmem:[#allocation5 + $0x200] sm:$0xff]
        %v363 = vld [vmem:[#allocation5 + $0x208] sm:$0xff]
        %v364 = vld [vmem:[#allocation5 + $0x210] sm:$0xff]
        %v365 = vld [vmem:[#allocation5 + $0x218] sm:$0xff]
        %v366 = vld [vmem:[#allocation5 + $0x220] sm:$0xff]
        %v367 = vld [vmem:[#allocation5 + $0x228] sm:$0xff]
        %v368 = vld [vmem:[#allocation5 + $0x230] sm:$0xff]
        %v369 = vld [vmem:[#allocation5 + $0x238] sm:$0xff]
        %v370 = vld [vmem:[#allocation5 + $0x240] sm:$0xff]
        %v371 = vld [vmem:[#allocation5 + $0x248] sm:$0xff]
        %v372 = vld [vmem:[#allocation5 + $0x250] sm:$0xff]
        %v373 = vld [vmem:[#allocation5 + $0x258] sm:$0xff]
        %v374 = vld [vmem:[#allocation5 + $0x260] sm:$0xff]
        %v375 = vld [vmem:[#allocation5 + $0x268] sm:$0xff]
        %v376 = vld [vmem:[#allocation5 + $0x270] sm:$0xff]
        %v377 = vld [vmem:[#allocation5 + $0x278] sm:$0xff]
        %v378 = vld [vmem:[#allocation5 + $0x280] sm:$0xff]
        %v379 = vld [vmem:[#allocation5 + $0x288] sm:$0xff]
        %v380 = vld [vmem:[#allocation5 + $0x290] sm:$0xff]
        %v381 = vld [vmem:[#allocation5 + $0x298] sm:$0xff]
        %v382 = vld [vmem:[#allocation5 + $0x2a0] sm:$0xff]
        %v383 = vld [vmem:[#allocation5 + $0x2a8] sm:$0xff]
        %v384 = vld [vmem:[#allocation5 + $0x2b0] sm:$0xff]
        %v385 = vld [vmem:[#allocation5 + $0x2b8] sm:$0xff]
        %v386 = vld [vmem:[#allocation5 + $0x2c0] sm:$0xff]
        %v387 = vld [vmem:[#allocation5 + $0x2c8] sm:$0xff]
        %v388 = vld [vmem:[#allocation5 + $0x2d0] sm:$0xff]
        %v389 = vld [vmem:[#allocation5 + $0x2d8] sm:$0xff]
        %v390 = vld [vmem:[#allocation5 + $0x2e0] sm:$0xff]
        %v391 = vld [vmem:[#allocation5 + $0x2e8] sm:$0xff]
        %v392 = vld [vmem:[#allocation5 + $0x2f0] sm:$0xff]
        %v393 = vld [vmem:[#allocation5 + $0x2f8] sm:$0xff]
        %v394 = vld [vmem:[#allocation5 + $0x300] sm:$0xff]
        %v395 = vld [vmem:[#allocation5 + $0x308] sm:$0xff]
        %v396 = vld [vmem:[#allocation5 + $0x310] sm:$0xff]
        %v397 = vld [vmem:[#allocation5 + $0x318] sm:$0xff]
        %v398 = vld [vmem:[#allocation5 + $0x320] sm:$0xff]
        %v399 = vld [vmem:[#allocation5 + $0x328] sm:$0xff]
        %v400 = vld [vmem:[#allocation5 + $0x330] sm:$0xff]
        %v401 = vld [vmem:[#allocation5 + $0x338] sm:$0xff]
        %v402 = vld [vmem:[#allocation5 + $0x340] sm:$0xff]
        %v403 = vld [vmem:[#allocation5 + $0x348] sm:$0xff]
        %v404 = vld [vmem:[#allocation5 + $0x350] sm:$0xff]
        %v405 = vld [vmem:[#allocation5 + $0x358] sm:$0xff]
        %v406 = vld [vmem:[#allocation5 + $0x360] sm:$0xff]
        %v407 = vld [vmem:[#allocation5 + $0x368] sm:$0xff]
        %v408 = vld [vmem:[#allocation5 + $0x370] sm:$0xff]
        %v409 = vld [vmem:[#allocation5 + $0x378] sm:$0xff]
        %v410 = vld [vmem:[#allocation5 + $0x380] sm:$0xff]
        %v411 = vld [vmem:[#allocation5 + $0x388] sm:$0xff]
        %v412 = vld [vmem:[#allocation5 + $0x390] sm:$0xff]
        %v413 = vld [vmem:[#allocation5 + $0x398] sm:$0xff]
        %v414 = vld [vmem:[#allocation5 + $0x3a0] sm:$0xff]
        %v415 = vld [vmem:[#allocation5 + $0x3a8] sm:$0xff]
        %v416 = vld [vmem:[#allocation5 + $0x3b0] sm:$0xff]
        %v417 = vld [vmem:[#allocation5 + $0x3b8] sm:$0xff]
        %v418 = vld [vmem:[#allocation5 + $0x3c0] sm:$0xff]
        %v419 = vld [vmem:[#allocation5 + $0x3c8] sm:$0xff]
        %v420 = vld [vmem:[#allocation5 + $0x3d0] sm:$0xff]
        %v421 = vld [vmem:[#allocation5 + $0x3d8] sm:$0xff]
        %v422 = vld [vmem:[#allocation5 + $0x3e0] sm:$0xff]
        %v423 = vld [vmem:[#allocation5 + $0x3e8] sm:$0xff]
        %v424 = vld [vmem:[#allocation5 + $0x3f0] sm:$0xff]
        %v425 = vld [vmem:[#allocation5 + $0x3f8] sm:$0xff]
        %v426 = vld [vmem:[#allocation5 + $0x400] sm:$0xff]
        %v427 = vld [vmem:[#allocation5 + $0x408] sm:$0xff]
        %v428 = vld [vmem:[#allocation5 + $0x410] sm:$0xff]
        %v429 = vld [vmem:[#allocation5 + $0x418] sm:$0xff]
        %v430 = vld [vmem:[#allocation5 + $0x420] sm:$0xff]
        %v431 = vld [vmem:[#allocation5 + $0x428] sm:$0xff]
        %v432 = vld [vmem:[#allocation5 + $0x430] sm:$0xff]
        %v433 = vld [vmem:[#allocation5 + $0x438] sm:$0xff]
        %v434 = vld [vmem:[#allocation5 + $0x440] sm:$0xff]
        %v435 = vld [vmem:[#allocation5 + $0x448] sm:$0xff]
        %v436 = vld [vmem:[#allocation5 + $0x450] sm:$0xff]
        %v437 = vld [vmem:[#allocation5 + $0x458] sm:$0xff]
        %v438 = vld [vmem:[#allocation5 + $0x460] sm:$0xff]
        %v439 = vld [vmem:[#allocation5 + $0x468] sm:$0xff]
        %v440 = vld [vmem:[#allocation5 + $0x470] sm:$0xff]
        %v441 = vld [vmem:[#allocation5 + $0x478] sm:$0xff]
        %v442 = vld [vmem:[#allocation5 + $0x480] sm:$0xff]
        %v443 = vld [vmem:[#allocation5 + $0x488] sm:$0xff]
        %v444 = vld [vmem:[#allocation5 + $0x490] sm:$0xff]
        %v445 = vld [vmem:[#allocation5 + $0x498] sm:$0xff]
        %v446 = vld [vmem:[#allocation5 + $0x4a0] sm:$0xff]
        %v447 = vld [vmem:[#allocation5 + $0x4a8] sm:$0xff]
        %v448 = vld [vmem:[#allocation5 + $0x4b0] sm:$0xff]
        %v449 = vld [vmem:[#allocation5 + $0x4b8] sm:$0xff]
        %v450 = vld [vmem:[#allocation5 + $0x4c0] sm:$0xff]
        %v451 = vld [vmem:[#allocation5 + $0x4c8] sm:$0xff]
        %v452 = vld [vmem:[#allocation5 + $0x4d0] sm:$0xff]
        %v453 = vld [vmem:[#allocation5 + $0x4d8] sm:$0xff]
        %v454 = vld [vmem:[#allocation5 + $0x4e0] sm:$0xff]
        %v455 = vld [vmem:[#allocation5 + $0x4e8] sm:$0xff]
        %v456 = vld [vmem:[#allocation5 + $0x4f0] sm:$0xff]
        %v457 = vld [vmem:[#allocation5 + $0x4f8] sm:$0xff]
        %v458 = vld [vmem:[#allocation5 + $0x500] sm:$0xff]
        %v459 = vld [vmem:[#allocation5 + $0x508] sm:$0xff]
        %v460 = vld [vmem:[#allocation5 + $0x510] sm:$0xff]
        %v461 = vld [vmem:[#allocation5 + $0x518] sm:$0xff]
        %v462 = vld [vmem:[#allocation5 + $0x520] sm:$0xff]
        %v463 = vld [vmem:[#allocation5 + $0x528] sm:$0xff]
        %v464 = vld [vmem:[#allocation5 + $0x530] sm:$0xff]
        %v465 = vld [vmem:[#allocation5 + $0x538] sm:$0xff]
        %v466 = vld [vmem:[#allocation5 + $0x540] sm:$0xff]
        %v467 = vld [vmem:[#allocation5 + $0x548] sm:$0xff]
        %v468 = vld [vmem:[#allocation5 + $0x550] sm:$0xff]
        %v469 = vld [vmem:[#allocation5 + $0x558] sm:$0xff]
        %v470 = vld [vmem:[#allocation5 + $0x560] sm:$0xff]
        %v471 = vld [vmem:[#allocation5 + $0x568] sm:$0xff]
        %v472 = vld [vmem:[#allocation5 + $0x570] sm:$0xff]
        %v473 = vld [vmem:[#allocation5 + $0x578] sm:$0xff]
        %v474 = vld [vmem:[#allocation5 + $0x580] sm:$0xff]
        %v475 = vld [vmem:[#allocation5 + $0x588] sm:$0xff]
        %v476 = vld [vmem:[#allocation5 + $0x590] sm:$0xff]
        %v477 = vld [vmem:[#allocation5 + $0x598] sm:$0xff]
        %v478 = vld [vmem:[#allocation5 + $0x5a0] sm:$0xff]
        %v479 = vld [vmem:[#allocation5 + $0x5a8] sm:$0xff]
        %v480 = vld [vmem:[#allocation5 + $0x5b0] sm:$0xff]
        %v481 = vld [vmem:[#allocation5 + $0x5b8] sm:$0xff]
        %v482 = vld [vmem:[#allocation5 + $0x5c0] sm:$0xff]
        %v483 = vld [vmem:[#allocation5 + $0x5c8] sm:$0xff]
        %v484 = vld [vmem:[#allocation5 + $0x5d0] sm:$0xff]
        %v485 = vld [vmem:[#allocation5 + $0x5d8] sm:$0xff]
        %v486 = vld [vmem:[#allocation5 + $0x5e0] sm:$0xff]
        %v487 = vld [vmem:[#allocation5 + $0x5e8] sm:$0xff]
        %v488 = vld [vmem:[#allocation5 + $0x5f0] sm:$0xff]
        %v489 = vld [vmem:[#allocation5 + $0x5f8] sm:$0xff]
        %v490 = vld [vmem:[#allocation5 + $0x600] sm:$0xff]
        %v491 = vld [vmem:[#allocation5 + $0x608] sm:$0xff]
        %v492 = vld [vmem:[#allocation5 + $0x610] sm:$0xff]
        %v493 = vld [vmem:[#allocation5 + $0x618] sm:$0xff]
        %v494 = vld [vmem:[#allocation5 + $0x620] sm:$0xff]
        %v495 = vld [vmem:[#allocation5 + $0x628] sm:$0xff]
        %v496 = vld [vmem:[#allocation5 + $0x630] sm:$0xff]
        %v497 = vld [vmem:[#allocation5 + $0x638] sm:$0xff]
        %v498 = vld [vmem:[#allocation5 + $0x640] sm:$0xff]
        %v499 = vld [vmem:[#allocation5 + $0x648] sm:$0xff]
        %v500 = vld [vmem:[#allocation5 + $0x650] sm:$0xff]
        %v501 = vld [vmem:[#allocation5 + $0x658] sm:$0xff]
        %v502 = vld [vmem:[#allocation5 + $0x660] sm:$0xff]
        %v503 = vld [vmem:[#allocation5 + $0x668] sm:$0xff]
        %v504 = vld [vmem:[#allocation5 + $0x670] sm:$0xff]
        %v505 = vld [vmem:[#allocation5 + $0x678] sm:$0xff]
        %v506 = vld [vmem:[#allocation5 + $0x680] sm:$0xff]
        %v507 = vld [vmem:[#allocation5 + $0x688] sm:$0xff]
        %v508 = vld [vmem:[#allocation5 + $0x690] sm:$0xff]
        %v509 = vld [vmem:[#allocation5 + $0x698] sm:$0xff]
        %v510 = vld [vmem:[#allocation5 + $0x6a0] sm:$0xff]
        %v511 = vld [vmem:[#allocation5 + $0x6a8] sm:$0xff]
        %v512 = vld [vmem:[#allocation5 + $0x6b0] sm:$0xff]
        %v513 = vld [vmem:[#allocation5 + $0x6b8] sm:$0xff]
        %v514 = vld [vmem:[#allocation5 + $0x6c0] sm:$0xff]
        %v515 = vld [vmem:[#allocation5 + $0x6c8] sm:$0xff]
        %v516 = vld [vmem:[#allocation5 + $0x6d0] sm:$0xff]
        %v517 = vld [vmem:[#allocation5 + $0x6d8] sm:$0xff]
        %v518 = vld [vmem:[#allocation5 + $0x6e0] sm:$0xff]
        %v519 = vld [vmem:[#allocation5 + $0x6e8] sm:$0xff]
        %v520 = vld [vmem:[#allocation5 + $0x6f0] sm:$0xff]
        %v521 = vld [vmem:[#allocation5 + $0x6f8] sm:$0xff]
        %v522 = vld [vmem:[#allocation5 + $0x700] sm:$0xff]
        %v523 = vld [vmem:[#allocation5 + $0x708] sm:$0xff]
        %v524 = vld [vmem:[#allocation5 + $0x710] sm:$0xff]
        %v525 = vld [vmem:[#allocation5 + $0x718] sm:$0xff]
        %v526 = vld [vmem:[#allocation5 + $0x720] sm:$0xff]
        %v527 = vld [vmem:[#allocation5 + $0x728] sm:$0xff]
        %v528 = vld [vmem:[#allocation5 + $0x730] sm:$0xff]
        %v529 = vld [vmem:[#allocation5 + $0x738] sm:$0xff]
        %v530 = vld [vmem:[#allocation5 + $0x740] sm:$0xff]
        %v531 = vld [vmem:[#allocation5 + $0x748] sm:$0xff]
        %v532 = vld [vmem:[#allocation5 + $0x750] sm:$0xff]
        %v533 = vld [vmem:[#allocation5 + $0x758] sm:$0xff]
        %v534 = vld [vmem:[#allocation5 + $0x760] sm:$0xff]
        %v535 = vld [vmem:[#allocation5 + $0x768] sm:$0xff]
        %v536 = vld [vmem:[#allocation5 + $0x770] sm:$0xff]
        %v537 = vld [vmem:[#allocation5 + $0x778] sm:$0xff]
        %v538 = vld [vmem:[#allocation5 + $0x780] sm:$0xff]
        %v539 = vld [vmem:[#allocation5 + $0x788] sm:$0xff]
        %v540 = vld [vmem:[#allocation5 + $0x790] sm:$0xff]
        %v541 = vld [vmem:[#allocation5 + $0x798] sm:$0xff]
        %v542 = vld [vmem:[#allocation5 + $0x7a0] sm:$0xff]
        %v543 = vld [vmem:[#allocation5 + $0x7a8] sm:$0xff]
        %v544 = vld [vmem:[#allocation5 + $0x7b0] sm:$0xff]
        %v545 = vld [vmem:[#allocation5 + $0x7b8] sm:$0xff]
        %v546 = vld [vmem:[#allocation5 + $0x7c0] sm:$0xff]
        %v547 = vld [vmem:[#allocation5 + $0x7c8] sm:$0xff]
        %v548 = vld [vmem:[#allocation5 + $0x7d0] sm:$0xff]
        %v549 = vld [vmem:[#allocation5 + $0x7d8] sm:$0xff]
        %v550 = vld [vmem:[#allocation5 + $0x7e0] sm:$0xff]
        %v551 = vld [vmem:[#allocation5 + $0x7e8] sm:$0xff]
        %v552 = vld [vmem:[#allocation5 + $0x7f0] sm:$0xff]
        %v553 = vld [vmem:[#allocation5 + $0x7f8] sm:$0xff]
        %v554 = vld [vmem:[#allocation5 + $0x800] sm:$0xff]
        %v555 = vld [vmem:[#allocation5 + $0x808] sm:$0xff]
        %v556 = vld [vmem:[#allocation5 + $0x810] sm:$0xff]
        %v557 = vld [vmem:[#allocation5 + $0x818] sm:$0xff]
        %v558 = vld [vmem:[#allocation5 + $0x820] sm:$0xff]
        %v559 = vld [vmem:[#allocation5 + $0x828] sm:$0xff]
        %v560 = vld [vmem:[#allocation5 + $0x830] sm:$0xff]
        %v561 = vld [vmem:[#allocation5 + $0x838] sm:$0xff]
        %v562 = vld [vmem:[#allocation5 + $0x840] sm:$0xff]
        %v563 = vld [vmem:[#allocation5 + $0x848] sm:$0xff]
        %v564 = vld [vmem:[#allocation5 + $0x850] sm:$0xff]
        %v565 = vld [vmem:[#allocation5 + $0x858] sm:$0xff]
        %v566 = vld [vmem:[#allocation5 + $0x860] sm:$0xff]
        %v567 = vld [vmem:[#allocation5 + $0x868] sm:$0xff]
        %v568 = vld [vmem:[#allocation5 + $0x870] sm:$0xff]
        %v569 = vld [vmem:[#allocation5 + $0x878] sm:$0xff]
        %v570 = vld [vmem:[#allocation5 + $0x880] sm:$0xff]
        %v571 = vld [vmem:[#allocation5 + $0x888] sm:$0xff]
        %v572 = vld [vmem:[#allocation5 + $0x890] sm:$0xff]
        %v573 = vld [vmem:[#allocation5 + $0x898] sm:$0xff]
        %v574 = vld [vmem:[#allocation5 + $0x8a0] sm:$0xff]
        %v575 = vld [vmem:[#allocation5 + $0x8a8] sm:$0xff]
        %v576 = vld [vmem:[#allocation5 + $0x8b0] sm:$0xff]
        %v577 = vld [vmem:[#allocation5 + $0x8b8] sm:$0xff]
        %v578 = vld [vmem:[#allocation5 + $0x8c0] sm:$0xff]
        %v579 = vld [vmem:[#allocation5 + $0x8c8] sm:$0xff]
        %v580 = vld [vmem:[#allocation5 + $0x8d0] sm:$0xff]
        %v581 = vld [vmem:[#allocation5 + $0x8d8] sm:$0xff]
        %v582 = vld [vmem:[#allocation5 + $0x8e0] sm:$0xff]
        %v583 = vld [vmem:[#allocation5 + $0x8e8] sm:$0xff]
        %v584 = vld [vmem:[#allocation5 + $0x8f0] sm:$0xff]
        %v585 = vld [vmem:[#allocation5 + $0x8f8] sm:$0xff]
        %v586 = vld [vmem:[#allocation7] sm:$0xff]
        %v587 = vld [vmem:[#allocation7 + $0x8] sm:$0xf]
        %v590 = vlaneseq
        %v591 = vshrl.u32 %v590, 7
        %v592 = vsub.s32 0, %v591
        %v593 = vrot.slane %v586, %v592
        %v594 = vlaneseq
        %v595 = vshrl.u32 %v594, 7
        %v596 = vsub.s32 1, %v595
        %v597 = vrot.slane %v586, %v596
        %v598 = vlaneseq
        %v599 = vshrl.u32 %v598, 7
        %v600 = vsub.s32 2, %v599
        %v601 = vrot.slane %v586, %v600
        %v602 = vlaneseq
        %v603 = vshrl.u32 %v602, 7
        %v604 = vsub.s32 3, %v603
        %v605 = vrot.slane %v586, %v604
        %v606 = vlaneseq
        %v607 = vshrl.u32 %v606, 7
        %v608 = vsub.s32 4, %v607
        %v609 = vrot.slane %v586, %v608
        %v610 = vlaneseq
        %v611 = vshrl.u32 %v610, 7
        %v612 = vsub.s32 5, %v611
        %v613 = vrot.slane %v586, %v612
        %v614 = vlaneseq
        %v615 = vshrl.u32 %v614, 7
        %v616 = vsub.s32 6, %v615
        %v617 = vrot.slane %v586, %v616
        %v618 = vlaneseq
        %v619 = vshrl.u32 %v618, 7
        %v620 = vsub.s32 7, %v619
        %v621 = vrot.slane %v586, %v620
        %v622 = vlaneseq
        %v623 = vshrl.u32 %v622, 7
        %v624 = vsub.s32 0, %v623
        %v625 = vrot.slane %v587, %v624
        %v626 = vlaneseq
        %v627 = vshrl.u32 %v626, 7
        %v628 = vsub.s32 1, %v627
        %v629 = vrot.slane %v587, %v628
        %v630 = vlaneseq
        %v631 = vshrl.u32 %v630, 7
        %v632 = vsub.s32 2, %v631
        %v633 = vrot.slane %v587, %v632
        %v634 = vlaneseq
        %v635 = vshrl.u32 %v634, 7
        %v636 = vsub.s32 3, %v635
        %v637 = vrot.slane %v587, %v636
        %v652 = vunpack.c.l.b16 %v296
        %v653 = vunpack.c.h.b16 %v296
        %v654 = vunpack.c.l.b16 %v297
        %v655 = vpack.c.b16 %v652, %v652
        %v656 = vpack.c.b16 %v653, %v653
        %v657 = vpack.c.b16 %v654, %v654
        %v949 = vunpack.c.l.b16 %v298
        %v950 = vunpack.c.h.b16 %v298
        %v951 = vunpack.c.l.b16 %v299
        %v952 = vunpack.c.h.b16 %v299
        %v953 = vunpack.c.l.b16 %v300
        %v954 = vunpack.c.h.b16 %v300
        %v955 = vunpack.c.l.b16 %v301
        %v956 = vunpack.c.h.b16 %v301
        %v957 = vunpack.c.l.b16 %v302
        %v958 = vunpack.c.h.b16 %v302
        %v959 = vunpack.c.l.b16 %v303
        %v960 = vunpack.c.h.b16 %v303
        %v961 = vunpack.c.l.b16 %v304
        %v962 = vunpack.c.h.b16 %v304
        %v963 = vunpack.c.l.b16 %v305
        %v964 = vunpack.c.h.b16 %v305
        %v965 = vunpack.c.l.b16 %v306
        %v966 = vunpack.c.h.b16 %v306
        %v967 = vunpack.c.l.b16 %v307
        %v968 = vunpack.c.h.b16 %v307
        %v969 = vunpack.c.l.b16 %v308
        %v970 = vunpack.c.h.b16 %v308
        %v971 = vunpack.c.l.b16 %v309
        %v972 = vunpack.c.h.b16 %v309
        %v973 = vunpack.c.l.b16 %v310
        %v974 = vunpack.c.h.b16 %v310
        %v975 = vunpack.c.l.b16 %v311
        %v976 = vunpack.c.h.b16 %v311
        %v977 = vunpack.c.l.b16 %v312
        %v978 = vunpack.c.h.b16 %v312
        %v979 = vunpack.c.l.b16 %v313
        %v980 = vunpack.c.h.b16 %v313
        %v981 = vunpack.c.l.b16 %v314
        %v982 = vunpack.c.h.b16 %v314
        %v983 = vunpack.c.l.b16 %v315
        %v984 = vunpack.c.h.b16 %v315
        %v985 = vunpack.c.l.b16 %v316
        %v986 = vunpack.c.h.b16 %v316
        %v987 = vunpack.c.l.b16 %v317
        %v988 = vunpack.c.h.b16 %v317
        %v989 = vunpack.c.l.b16 %v318
        %v990 = vunpack.c.h.b16 %v318
        %v991 = vunpack.c.l.b16 %v319
        %v992 = vunpack.c.h.b16 %v319
        %v993 = vunpack.c.l.b16 %v320
        %v994 = vunpack.c.h.b16 %v320
        %v995 = vunpack.c.l.b16 %v321
        %v996 = vunpack.c.h.b16 %v321
        %v997 = vunpack.c.l.b16 %v322
        %v998 = vunpack.c.h.b16 %v322
        %v999 = vunpack.c.l.b16 %v323
        %v1000 = vunpack.c.h.b16 %v323
        %v1001 = vunpack.c.l.b16 %v324
        %v1002 = vunpack.c.h.b16 %v324
        %v1003 = vunpack.c.l.b16 %v325
        %v1004 = vunpack.c.h.b16 %v325
        %v1005 = vunpack.c.l.b16 %v326
        %v1006 = vunpack.c.h.b16 %v326
        %v1007 = vunpack.c.l.b16 %v327
        %v1008 = vunpack.c.h.b16 %v327
        %v1009 = vunpack.c.l.b16 %v328
        %v1010 = vunpack.c.h.b16 %v328
        %v1011 = vunpack.c.l.b16 %v329
        %v1012 = vunpack.c.h.b16 %v329
        %v1013 = vunpack.c.l.b16 %v330
        %v1014 = vunpack.c.h.b16 %v330
        %v1015 = vunpack.c.l.b16 %v331
        %v1016 = vunpack.c.h.b16 %v331
        %v1017 = vunpack.c.l.b16 %v332
        %v1018 = vunpack.c.h.b16 %v332
        %v1019 = vunpack.c.l.b16 %v333
        %v1020 = vunpack.c.h.b16 %v333
        %v1021 = vunpack.c.l.b16 %v334
        %v1022 = vunpack.c.h.b16 %v334
        %v1023 = vunpack.c.l.b16 %v335
        %v1024 = vunpack.c.h.b16 %v335
        %v1025 = vunpack.c.l.b16 %v336
        %v1026 = vunpack.c.h.b16 %v336
        %v1027 = vunpack.c.l.b16 %v337
        %v1028 = vunpack.c.h.b16 %v337
        %v1029 = vunpack.c.l.b16 %v338
        %v1030 = vunpack.c.h.b16 %v338
        %v1031 = vunpack.c.l.b16 %v339
        %v1032 = vunpack.c.h.b16 %v339
        %v1033 = vunpack.c.l.b16 %v340
        %v1034 = vunpack.c.h.b16 %v340
        %v1035 = vunpack.c.l.b16 %v341
        %v1036 = vunpack.c.h.b16 %v341
        %v1037 = vunpack.c.l.b16 %v342
        %v1038 = vunpack.c.h.b16 %v342
        %v1039 = vunpack.c.l.b16 %v343
        %v1040 = vunpack.c.h.b16 %v343
        %v1041 = vunpack.c.l.b16 %v344
        %v1042 = vunpack.c.h.b16 %v344
        %v1043 = vunpack.c.l.b16 %v345
        %v1044 = vunpack.c.h.b16 %v345
        %v1045 = vunpack.c.l.b16 %v346
        %v1046 = vunpack.c.h.b16 %v346
        %v1047 = vunpack.c.l.b16 %v347
        %v1048 = vunpack.c.h.b16 %v347
        %v1049 = vunpack.c.l.b16 %v348
        %v1050 = vunpack.c.h.b16 %v348
        %v1051 = vunpack.c.l.b16 %v349
        %v1052 = vunpack.c.h.b16 %v349
        %v1053 = vunpack.c.l.b16 %v350
        %v1054 = vunpack.c.h.b16 %v350
        %v1055 = vunpack.c.l.b16 %v351
        %v1056 = vunpack.c.h.b16 %v351
        %v1057 = vunpack.c.l.b16 %v352
        %v1058 = vunpack.c.h.b16 %v352
        %v1059 = vunpack.c.l.b16 %v353
        %v1060 = vunpack.c.h.b16 %v353
        %v1061 = vunpack.c.l.b16 %v354
        %v1062 = vunpack.c.h.b16 %v354
        %v1063 = vunpack.c.l.b16 %v355
        %v1064 = vunpack.c.h.b16 %v355
        %v1065 = vunpack.c.l.b16 %v356
        %v1066 = vunpack.c.h.b16 %v356
        %v1067 = vunpack.c.l.b16 %v357
        %v1068 = vunpack.c.h.b16 %v357
        %v1069 = vunpack.c.l.b16 %v358
        %v1070 = vunpack.c.h.b16 %v358
        %v1071 = vunpack.c.l.b16 %v359
        %v1072 = vunpack.c.h.b16 %v359
        %v1073 = vunpack.c.l.b16 %v360
        %v1074 = vunpack.c.h.b16 %v360
        %v1075 = vunpack.c.l.b16 %v361
        %v1076 = vunpack.c.h.b16 %v361
        %v1077 = vunpack.c.l.b16 %v362
        %v1078 = vunpack.c.h.b16 %v362
        %v1079 = vunpack.c.l.b16 %v363
        %v1080 = vunpack.c.h.b16 %v363
        %v1081 = vunpack.c.l.b16 %v364
        %v1082 = vunpack.c.h.b16 %v364
        %v1083 = vunpack.c.l.b16 %v365
        %v1084 = vunpack.c.h.b16 %v365
        %v1085 = vunpack.c.l.b16 %v366
        %v1086 = vunpack.c.h.b16 %v366
        %v1087 = vunpack.c.l.b16 %v367
        %v1088 = vunpack.c.h.b16 %v367
        %v1089 = vunpack.c.l.b16 %v368
        %v1090 = vunpack.c.h.b16 %v368
        %v1091 = vunpack.c.l.b16 %v369
        %v1092 = vunpack.c.h.b16 %v369
        %v1093 = vunpack.c.l.b16 %v370
        %v1094 = vunpack.c.h.b16 %v370
        %v1095 = vunpack.c.l.b16 %v371
        %v1096 = vunpack.c.h.b16 %v371
        %v1097 = vunpack.c.l.b16 %v372
        %v1098 = vunpack.c.h.b16 %v372
        %v1099 = vunpack.c.l.b16 %v373
        %v1100 = vunpack.c.h.b16 %v373
        %v1101 = vunpack.c.l.b16 %v374
        %v1102 = vunpack.c.h.b16 %v374
        %v1103 = vunpack.c.l.b16 %v375
        %v1104 = vunpack.c.h.b16 %v375
        %v1105 = vunpack.c.l.b16 %v376
        %v1106 = vunpack.c.h.b16 %v376
        %v1107 = vunpack.c.l.b16 %v377
        %v1108 = vunpack.c.h.b16 %v377
        %v1109 = vunpack.c.l.b16 %v378
        %v1110 = vunpack.c.h.b16 %v378
        %v1111 = vunpack.c.l.b16 %v379
        %v1112 = vunpack.c.h.b16 %v379
        %v1113 = vunpack.c.l.b16 %v380
        %v1114 = vunpack.c.h.b16 %v380
        %v1115 = vunpack.c.l.b16 %v381
        %v1116 = vunpack.c.h.b16 %v381
        %v1117 = vunpack.c.l.b16 %v382
        %v1118 = vunpack.c.h.b16 %v382
        %v1119 = vunpack.c.l.b16 %v383
        %v1120 = vunpack.c.h.b16 %v383
        %v1121 = vunpack.c.l.b16 %v384
        %v1122 = vunpack.c.h.b16 %v384
        %v1123 = vunpack.c.l.b16 %v385
        %v1124 = vunpack.c.h.b16 %v385
        %v1125 = vunpack.c.l.b16 %v386
        %v1126 = vunpack.c.h.b16 %v386
        %v1127 = vunpack.c.l.b16 %v387
        %v1128 = vunpack.c.h.b16 %v387
        %v1129 = vunpack.c.l.b16 %v388
        %v1130 = vunpack.c.h.b16 %v388
        %v1131 = vunpack.c.l.b16 %v389
        %v1132 = vunpack.c.h.b16 %v389
        %v1133 = vunpack.c.l.b16 %v390
        %v1134 = vunpack.c.h.b16 %v390
        %v1135 = vunpack.c.l.b16 %v391
        %v1136 = vunpack.c.h.b16 %v391
        %v1137 = vunpack.c.l.b16 %v392
        %v1138 = vunpack.c.h.b16 %v392
        %v1139 = vunpack.c.l.b16 %v393
        %v1140 = vunpack.c.h.b16 %v393
        %v1141 = vunpack.c.l.b16 %v394
        %v1142 = vunpack.c.h.b16 %v394
        %v1143 = vunpack.c.l.b16 %v395
        %v1144 = vunpack.c.h.b16 %v395
        %v1145 = vunpack.c.l.b16 %v396
        %v1146 = vunpack.c.h.b16 %v396
        %v1147 = vunpack.c.l.b16 %v397
        %v1148 = vunpack.c.h.b16 %v397
        %v1149 = vunpack.c.l.b16 %v398
        %v1150 = vunpack.c.h.b16 %v398
        %v1151 = vunpack.c.l.b16 %v399
        %v1152 = vunpack.c.h.b16 %v399
        %v1153 = vunpack.c.l.b16 %v400
        %v1154 = vunpack.c.h.b16 %v400
        %v1155 = vunpack.c.l.b16 %v401
        %v1156 = vunpack.c.h.b16 %v401
        %v1157 = vunpack.c.l.b16 %v402
        %v1158 = vunpack.c.h.b16 %v402
        %v1159 = vunpack.c.l.b16 %v403
        %v1160 = vunpack.c.h.b16 %v403
        %v1161 = vunpack.c.l.b16 %v404
        %v1162 = vunpack.c.h.b16 %v404
        %v1163 = vunpack.c.l.b16 %v405
        %v1164 = vunpack.c.h.b16 %v405
        %v1165 = vunpack.c.l.b16 %v406
        %v1166 = vunpack.c.h.b16 %v406
        %v1167 = vunpack.c.l.b16 %v407
        %v1168 = vunpack.c.h.b16 %v407
        %v1169 = vunpack.c.l.b16 %v408
        %v1170 = vunpack.c.h.b16 %v408
        %v1171 = vunpack.c.l.b16 %v409
        %v1172 = vunpack.c.h.b16 %v409
        %v1173 = vunpack.c.l.b16 %v410
        %v1174 = vunpack.c.h.b16 %v410
        %v1175 = vunpack.c.l.b16 %v411
        %v1176 = vunpack.c.h.b16 %v411
        %v1177 = vunpack.c.l.b16 %v412
        %v1178 = vunpack.c.h.b16 %v412
        %v1179 = vunpack.c.l.b16 %v413
        %v1180 = vunpack.c.h.b16 %v413
        %v1181 = vunpack.c.l.b16 %v414
        %v1182 = vunpack.c.h.b16 %v414
        %v1183 = vunpack.c.l.b16 %v415
        %v1184 = vunpack.c.h.b16 %v415
        %v1185 = vunpack.c.l.b16 %v416
        %v1186 = vunpack.c.h.b16 %v416
        %v1187 = vunpack.c.l.b16 %v417
        %v1188 = vunpack.c.h.b16 %v417
        %v1189 = vunpack.c.l.b16 %v418
        %v1190 = vunpack.c.h.b16 %v418
        %v1191 = vunpack.c.l.b16 %v419
        %v1192 = vunpack.c.h.b16 %v419
        %v1193 = vunpack.c.l.b16 %v420
        %v1194 = vunpack.c.h.b16 %v420
        %v1195 = vunpack.c.l.b16 %v421
        %v1196 = vunpack.c.h.b16 %v421
        %v1197 = vunpack.c.l.b16 %v422
        %v1198 = vunpack.c.h.b16 %v422
        %v1199 = vunpack.c.l.b16 %v423
        %v1200 = vunpack.c.h.b16 %v423
        %v1201 = vunpack.c.l.b16 %v424
        %v1202 = vunpack.c.h.b16 %v424
        %v1203 = vunpack.c.l.b16 %v425
        %v1204 = vunpack.c.h.b16 %v425
        %v1205 = vunpack.c.l.b16 %v426
        %v1206 = vunpack.c.h.b16 %v426
        %v1207 = vunpack.c.l.b16 %v427
        %v1208 = vunpack.c.h.b16 %v427
        %v1209 = vunpack.c.l.b16 %v428
        %v1210 = vunpack.c.h.b16 %v428
        %v1211 = vunpack.c.l.b16 %v429
        %v1212 = vunpack.c.h.b16 %v429
        %v1213 = vunpack.c.l.b16 %v430
        %v1214 = vunpack.c.h.b16 %v430
        %v1215 = vunpack.c.l.b16 %v431
        %v1216 = vunpack.c.h.b16 %v431
        %v1217 = vunpack.c.l.b16 %v432
        %v1218 = vunpack.c.h.b16 %v432
        %v1219 = vunpack.c.l.b16 %v433
        %v1220 = vunpack.c.h.b16 %v433
        %v1221 = vunpack.c.l.b16 %v434
        %v1222 = vunpack.c.h.b16 %v434
        %v1223 = vunpack.c.l.b16 %v435
        %v1224 = vunpack.c.h.b16 %v435
        %v1225 = vunpack.c.l.b16 %v436
        %v1226 = vunpack.c.h.b16 %v436
        %v1227 = vunpack.c.l.b16 %v437
        %v1228 = vunpack.c.h.b16 %v437
        %v1229 = vunpack.c.l.b16 %v438
        %v1230 = vunpack.c.h.b16 %v438
        %v1231 = vunpack.c.l.b16 %v439
        %v1232 = vunpack.c.h.b16 %v439
        %v1233 = vunpack.c.l.b16 %v440
        %v1234 = vunpack.c.h.b16 %v440
        %v1235 = vunpack.c.l.b16 %v441
        %v1236 = vunpack.c.h.b16 %v441
        %v1237 = vunpack.c.l.b16 %v442
        %v1238 = vunpack.c.h.b16 %v442
        %v1239 = vunpack.c.l.b16 %v443
        %v1240 = vunpack.c.h.b16 %v443
        %v1241 = vunpack.c.l.b16 %v444
        %v1242 = vunpack.c.h.b16 %v444
        %v1243 = vunpack.c.l.b16 %v445
        %v1244 = vunpack.c.h.b16 %v445
        %v1245 = vunpack.c.l.b16 %v446
        %v1246 = vunpack.c.h.b16 %v446
        %v1247 = vunpack.c.l.b16 %v447
        %v1248 = vunpack.c.h.b16 %v447
        %v1249 = vunpack.c.l.b16 %v448
        %v1250 = vunpack.c.h.b16 %v448
        %v1251 = vunpack.c.l.b16 %v449
        %v1252 = vunpack.c.h.b16 %v449
        %v1253 = vunpack.c.l.b16 %v450
        %v1254 = vunpack.c.h.b16 %v450
        %v1255 = vunpack.c.l.b16 %v451
        %v1256 = vunpack.c.h.b16 %v451
        %v1257 = vunpack.c.l.b16 %v452
        %v1258 = vunpack.c.h.b16 %v452
        %v1259 = vunpack.c.l.b16 %v453
        %v1260 = vunpack.c.h.b16 %v453
        %v1261 = vunpack.c.l.b16 %v454
        %v1262 = vunpack.c.h.b16 %v454
        %v1263 = vunpack.c.l.b16 %v455
        %v1264 = vunpack.c.h.b16 %v455
        %v1265 = vunpack.c.l.b16 %v456
        %v1266 = vunpack.c.h.b16 %v456
        %v1267 = vunpack.c.l.b16 %v457
        %v1268 = vunpack.c.h.b16 %v457
        %v1269 = vunpack.c.l.b16 %v458
        %v1270 = vunpack.c.h.b16 %v458
        %v1271 = vunpack.c.l.b16 %v459
        %v1272 = vunpack.c.h.b16 %v459
        %v1273 = vunpack.c.l.b16 %v460
        %v1274 = vunpack.c.h.b16 %v460
        %v1275 = vunpack.c.l.b16 %v461
        %v1276 = vunpack.c.h.b16 %v461
        %v1277 = vunpack.c.l.b16 %v462
        %v1278 = vunpack.c.h.b16 %v462
        %v1279 = vunpack.c.l.b16 %v463
        %v1280 = vunpack.c.h.b16 %v463
        %v1281 = vunpack.c.l.b16 %v464
        %v1282 = vunpack.c.h.b16 %v464
        %v1283 = vunpack.c.l.b16 %v465
        %v1284 = vunpack.c.h.b16 %v465
        %v1285 = vunpack.c.l.b16 %v466
        %v1286 = vunpack.c.h.b16 %v466
        %v1287 = vunpack.c.l.b16 %v467
        %v1288 = vunpack.c.h.b16 %v467
        %v1289 = vunpack.c.l.b16 %v468
        %v1290 = vunpack.c.h.b16 %v468
        %v1291 = vunpack.c.l.b16 %v469
        %v1292 = vunpack.c.h.b16 %v469
        %v1293 = vunpack.c.l.b16 %v470
        %v1294 = vunpack.c.h.b16 %v470
        %v1295 = vunpack.c.l.b16 %v471
        %v1296 = vunpack.c.h.b16 %v471
        %v1297 = vunpack.c.l.b16 %v472
        %v1298 = vunpack.c.h.b16 %v472
        %v1299 = vunpack.c.l.b16 %v473
        %v1300 = vunpack.c.h.b16 %v473
        %v1301 = vunpack.c.l.b16 %v474
        %v1302 = vunpack.c.h.b16 %v474
        %v1303 = vunpack.c.l.b16 %v475
        %v1304 = vunpack.c.h.b16 %v475
        %v1305 = vunpack.c.l.b16 %v476
        %v1306 = vunpack.c.h.b16 %v476
        %v1307 = vunpack.c.l.b16 %v477
        %v1308 = vunpack.c.h.b16 %v477
        %v1309 = vunpack.c.l.b16 %v478
        %v1310 = vunpack.c.h.b16 %v478
        %v1311 = vunpack.c.l.b16 %v479
        %v1312 = vunpack.c.h.b16 %v479
        %v1313 = vunpack.c.l.b16 %v480
        %v1314 = vunpack.c.h.b16 %v480
        %v1315 = vunpack.c.l.b16 %v481
        %v1316 = vunpack.c.h.b16 %v481
        %v1317 = vunpack.c.l.b16 %v482
        %v1318 = vunpack.c.h.b16 %v482
        %v1319 = vunpack.c.l.b16 %v483
        %v1320 = vunpack.c.h.b16 %v483
        %v1321 = vunpack.c.l.b16 %v484
        %v1322 = vunpack.c.h.b16 %v484
        %v1323 = vunpack.c.l.b16 %v485
        %v1324 = vunpack.c.h.b16 %v485
        %v1325 = vunpack.c.l.b16 %v486
        %v1326 = vunpack.c.h.b16 %v486
        %v1327 = vunpack.c.l.b16 %v487
        %v1328 = vunpack.c.h.b16 %v487
        %v1329 = vunpack.c.l.b16 %v488
        %v1330 = vunpack.c.h.b16 %v488
        %v1331 = vunpack.c.l.b16 %v489
        %v1332 = vunpack.c.h.b16 %v489
        %v1333 = vunpack.c.l.b16 %v490
        %v1334 = vunpack.c.h.b16 %v490
        %v1335 = vunpack.c.l.b16 %v491
        %v1336 = vunpack.c.h.b16 %v491
        %v1337 = vunpack.c.l.b16 %v492
        %v1338 = vunpack.c.h.b16 %v492
        %v1339 = vunpack.c.l.b16 %v493
        %v1340 = vunpack.c.h.b16 %v493
        %v1341 = vunpack.c.l.b16 %v494
        %v1342 = vunpack.c.h.b16 %v494
        %v1343 = vunpack.c.l.b16 %v495
        %v1344 = vunpack.c.h.b16 %v495
        %v1345 = vunpack.c.l.b16 %v496
        %v1346 = vunpack.c.h.b16 %v496
        %v1347 = vunpack.c.l.b16 %v497
        %v1348 = vunpack.c.h.b16 %v497
        %v1349 = vunpack.c.l.b16 %v498
        %v1350 = vunpack.c.h.b16 %v498
        %v1351 = vunpack.c.l.b16 %v499
        %v1352 = vunpack.c.h.b16 %v499
        %v1353 = vunpack.c.l.b16 %v500
        %v1354 = vunpack.c.h.b16 %v500
        %v1355 = vunpack.c.l.b16 %v501
        %v1356 = vunpack.c.h.b16 %v501
        %v1357 = vunpack.c.l.b16 %v502
        %v1358 = vunpack.c.h.b16 %v502
        %v1359 = vunpack.c.l.b16 %v503
        %v1360 = vunpack.c.h.b16 %v503
        %v1361 = vunpack.c.l.b16 %v504
        %v1362 = vunpack.c.h.b16 %v504
        %v1363 = vunpack.c.l.b16 %v505
        %v1364 = vunpack.c.h.b16 %v505
        %v1365 = vunpack.c.l.b16 %v506
        %v1366 = vunpack.c.h.b16 %v506
        %v1367 = vunpack.c.l.b16 %v507
        %v1368 = vunpack.c.h.b16 %v507
        %v1369 = vunpack.c.l.b16 %v508
        %v1370 = vunpack.c.h.b16 %v508
        %v1371 = vunpack.c.l.b16 %v509
        %v1372 = vunpack.c.h.b16 %v509
        %v1373 = vunpack.c.l.b16 %v510
        %v1374 = vunpack.c.h.b16 %v510
        %v1375 = vunpack.c.l.b16 %v511
        %v1376 = vunpack.c.h.b16 %v511
        %v1377 = vunpack.c.l.b16 %v512
        %v1378 = vunpack.c.h.b16 %v512
        %v1379 = vunpack.c.l.b16 %v513
        %v1380 = vunpack.c.h.b16 %v513
        %v1381 = vunpack.c.l.b16 %v514
        %v1382 = vunpack.c.h.b16 %v514
        %v1383 = vunpack.c.l.b16 %v515
        %v1384 = vunpack.c.h.b16 %v515
        %v1385 = vunpack.c.l.b16 %v516
        %v1386 = vunpack.c.h.b16 %v516
        %v1387 = vunpack.c.l.b16 %v517
        %v1388 = vunpack.c.h.b16 %v517
        %v1389 = vunpack.c.l.b16 %v518
        %v1390 = vunpack.c.h.b16 %v518
        %v1391 = vunpack.c.l.b16 %v519
        %v1392 = vunpack.c.h.b16 %v519
        %v1393 = vunpack.c.l.b16 %v520
        %v1394 = vunpack.c.h.b16 %v520
        %v1395 = vunpack.c.l.b16 %v521
        %v1396 = vunpack.c.h.b16 %v521
        %v1397 = vunpack.c.l.b16 %v522
        %v1398 = vunpack.c.h.b16 %v522
        %v1399 = vunpack.c.l.b16 %v523
        %v1400 = vunpack.c.h.b16 %v523
        %v1401 = vunpack.c.l.b16 %v524
        %v1402 = vunpack.c.h.b16 %v524
        %v1403 = vunpack.c.l.b16 %v525
        %v1404 = vunpack.c.h.b16 %v525
        %v1405 = vunpack.c.l.b16 %v526
        %v1406 = vunpack.c.h.b16 %v526
        %v1407 = vunpack.c.l.b16 %v527
        %v1408 = vunpack.c.h.b16 %v527
        %v1409 = vunpack.c.l.b16 %v528
        %v1410 = vunpack.c.h.b16 %v528
        %v1411 = vunpack.c.l.b16 %v529
        %v1412 = vunpack.c.h.b16 %v529
        %v1413 = vunpack.c.l.b16 %v530
        %v1414 = vunpack.c.h.b16 %v530
        %v1415 = vunpack.c.l.b16 %v531
        %v1416 = vunpack.c.h.b16 %v531
        %v1417 = vunpack.c.l.b16 %v532
        %v1418 = vunpack.c.h.b16 %v532
        %v1419 = vunpack.c.l.b16 %v533
        %v1420 = vunpack.c.h.b16 %v533
        %v1421 = vunpack.c.l.b16 %v534
        %v1422 = vunpack.c.h.b16 %v534
        %v1423 = vunpack.c.l.b16 %v535
        %v1424 = vunpack.c.h.b16 %v535
        %v1425 = vunpack.c.l.b16 %v536
        %v1426 = vunpack.c.h.b16 %v536
        %v1427 = vunpack.c.l.b16 %v537
        %v1428 = vunpack.c.h.b16 %v537
        %v1429 = vunpack.c.l.b16 %v538
        %v1430 = vunpack.c.h.b16 %v538
        %v1431 = vunpack.c.l.b16 %v539
        %v1432 = vunpack.c.h.b16 %v539
        %v1433 = vunpack.c.l.b16 %v540
        %v1434 = vunpack.c.h.b16 %v540
        %v1435 = vunpack.c.l.b16 %v541
        %v1436 = vunpack.c.h.b16 %v541
        %v1437 = vunpack.c.l.b16 %v542
        %v1438 = vunpack.c.h.b16 %v542
        %v1439 = vunpack.c.l.b16 %v543
        %v1440 = vunpack.c.h.b16 %v543
        %v1441 = vunpack.c.l.b16 %v544
        %v1442 = vunpack.c.h.b16 %v544
        %v1443 = vunpack.c.l.b16 %v545
        %v1444 = vunpack.c.h.b16 %v545
        %v1445 = vunpack.c.l.b16 %v546
        %v1446 = vunpack.c.h.b16 %v546
        %v1447 = vunpack.c.l.b16 %v547
        %v1448 = vunpack.c.h.b16 %v547
        %v1449 = vunpack.c.l.b16 %v548
        %v1450 = vunpack.c.h.b16 %v548
        %v1451 = vunpack.c.l.b16 %v549
        %v1452 = vunpack.c.h.b16 %v549
        %v1453 = vunpack.c.l.b16 %v550
        %v1454 = vunpack.c.h.b16 %v550
        %v1455 = vunpack.c.l.b16 %v551
        %v1456 = vunpack.c.h.b16 %v551
        %v1457 = vunpack.c.l.b16 %v552
        %v1458 = vunpack.c.h.b16 %v552
        %v1459 = vunpack.c.l.b16 %v553
        %v1460 = vunpack.c.h.b16 %v553
        %v1461 = vunpack.c.l.b16 %v554
        %v1462 = vunpack.c.h.b16 %v554
        %v1463 = vunpack.c.l.b16 %v555
        %v1464 = vunpack.c.h.b16 %v555
        %v1465 = vunpack.c.l.b16 %v556
        %v1466 = vunpack.c.h.b16 %v556
        %v1467 = vunpack.c.l.b16 %v557
        %v1468 = vunpack.c.h.b16 %v557
        %v1469 = vunpack.c.l.b16 %v558
        %v1470 = vunpack.c.h.b16 %v558
        %v1471 = vunpack.c.l.b16 %v559
        %v1472 = vunpack.c.h.b16 %v559
        %v1473 = vunpack.c.l.b16 %v560
        %v1474 = vunpack.c.h.b16 %v560
        %v1475 = vunpack.c.l.b16 %v561
        %v1476 = vunpack.c.h.b16 %v561
        %v1477 = vunpack.c.l.b16 %v562
        %v1478 = vunpack.c.h.b16 %v562
        %v1479 = vunpack.c.l.b16 %v563
        %v1480 = vunpack.c.h.b16 %v563
        %v1481 = vunpack.c.l.b16 %v564
        %v1482 = vunpack.c.h.b16 %v564
        %v1483 = vunpack.c.l.b16 %v565
        %v1484 = vunpack.c.h.b16 %v565
        %v1485 = vunpack.c.l.b16 %v566
        %v1486 = vunpack.c.h.b16 %v566
        %v1487 = vunpack.c.l.b16 %v567
        %v1488 = vunpack.c.h.b16 %v567
        %v1489 = vunpack.c.l.b16 %v568
        %v1490 = vunpack.c.h.b16 %v568
        %v1491 = vunpack.c.l.b16 %v569
        %v1492 = vunpack.c.h.b16 %v569
        %v1493 = vunpack.c.l.b16 %v570
        %v1494 = vunpack.c.h.b16 %v570
        %v1495 = vunpack.c.l.b16 %v571
        %v1496 = vunpack.c.h.b16 %v571
        %v1497 = vunpack.c.l.b16 %v572
        %v1498 = vunpack.c.h.b16 %v572
        %v1499 = vunpack.c.l.b16 %v573
        %v1500 = vunpack.c.h.b16 %v573
        %v1501 = vunpack.c.l.b16 %v574
        %v1502 = vunpack.c.h.b16 %v574
        %v1503 = vunpack.c.l.b16 %v575
        %v1504 = vunpack.c.h.b16 %v575
        %v1505 = vunpack.c.l.b16 %v576
        %v1506 = vunpack.c.h.b16 %v576
        %v1507 = vunpack.c.l.b16 %v577
        %v1508 = vunpack.c.h.b16 %v577
        %v1509 = vunpack.c.l.b16 %v578
        %v1510 = vunpack.c.h.b16 %v578
        %v1511 = vunpack.c.l.b16 %v579
        %v1512 = vunpack.c.h.b16 %v579
        %v1513 = vunpack.c.l.b16 %v580
        %v1514 = vunpack.c.h.b16 %v580
        %v1515 = vunpack.c.l.b16 %v581
        %v1516 = vunpack.c.h.b16 %v581
        %v1517 = vunpack.c.l.b16 %v582
        %v1518 = vunpack.c.h.b16 %v582
        %v1519 = vunpack.c.l.b16 %v583
        %v1520 = vunpack.c.h.b16 %v583
        %v1521 = vunpack.c.l.b16 %v584
        %v1522 = vunpack.c.h.b16 %v584
        %v1523 = vunpack.c.l.b16 %v585
        %v1524 = vunpack.c.h.b16 %v585
        %v1525 = vpack.c.b16 %v961, %v949
        %v1526 = vpack.c.b16 %v962, %v950
        %v1527 = vpack.c.b16 %v963, %v951
        %v1528 = vpack.c.b16 %v964, %v952
        %v1529 = vpack.c.b16 %v965, %v953
        %v1530 = vpack.c.b16 %v966, %v954
        %v1531 = vpack.c.b16 %v967, %v955
        %v1532 = vpack.c.b16 %v968, %v956
        %v1533 = vpack.c.b16 %v969, %v957
        %v1534 = vpack.c.b16 %v970, %v958
        %v1535 = vpack.c.b16 %v971, %v959
        %v1536 = vpack.c.b16 %v972, %v960
        %v1537 = vpack.c.b16 %v985, %v973
        %v1538 = vpack.c.b16 %v986, %v974
        %v1539 = vpack.c.b16 %v987, %v975
        %v1540 = vpack.c.b16 %v988, %v976
        %v1541 = vpack.c.b16 %v989, %v977
        %v1542 = vpack.c.b16 %v990, %v978
        %v1543 = vpack.c.b16 %v991, %v979
        %v1544 = vpack.c.b16 %v992, %v980
        %v1545 = vpack.c.b16 %v993, %v981
        %v1546 = vpack.c.b16 %v994, %v982
        %v1547 = vpack.c.b16 %v995, %v983
        %v1548 = vpack.c.b16 %v996, %v984
        %v1549 = vpack.c.b16 %v1009, %v997
        %v1550 = vpack.c.b16 %v1010, %v998
        %v1551 = vpack.c.b16 %v1011, %v999
        %v1552 = vpack.c.b16 %v1012, %v1000
        %v1553 = vpack.c.b16 %v1013, %v1001
        %v1554 = vpack.c.b16 %v1014, %v1002
        %v1555 = vpack.c.b16 %v1015, %v1003
        %v1556 = vpack.c.b16 %v1016, %v1004
        %v1557 = vpack.c.b16 %v1017, %v1005
        %v1558 = vpack.c.b16 %v1018, %v1006
        %v1559 = vpack.c.b16 %v1019, %v1007
        %v1560 = vpack.c.b16 %v1020, %v1008
        %v1561 = vpack.c.b16 %v1033, %v1021
        %v1562 = vpack.c.b16 %v1034, %v1022
        %v1563 = vpack.c.b16 %v1035, %v1023
        %v1564 = vpack.c.b16 %v1036, %v1024
        %v1565 = vpack.c.b16 %v1037, %v1025
        %v1566 = vpack.c.b16 %v1038, %v1026
        %v1567 = vpack.c.b16 %v1039, %v1027
        %v1568 = vpack.c.b16 %v1040, %v1028
        %v1569 = vpack.c.b16 %v1041, %v1029
        %v1570 = vpack.c.b16 %v1042, %v1030
        %v1571 = vpack.c.b16 %v1043, %v1031
        %v1572 = vpack.c.b16 %v1044, %v1032
        %v1573 = vpack.c.b16 %v1057, %v1045
        %v1574 = vpack.c.b16 %v1058, %v1046
        %v1575 = vpack.c.b16 %v1059, %v1047
        %v1576 = vpack.c.b16 %v1060, %v1048
        %v1577 = vpack.c.b16 %v1061, %v1049
        %v1578 = vpack.c.b16 %v1062, %v1050
        %v1579 = vpack.c.b16 %v1063, %v1051
        %v1580 = vpack.c.b16 %v1064, %v1052
        %v1581 = vpack.c.b16 %v1065, %v1053
        %v1582 = vpack.c.b16 %v1066, %v1054
        %v1583 = vpack.c.b16 %v1067, %v1055
        %v1584 = vpack.c.b16 %v1068, %v1056
        %v1585 = vpack.c.b16 %v1081, %v1069
        %v1586 = vpack.c.b16 %v1082, %v1070
        %v1587 = vpack.c.b16 %v1083, %v1071
        %v1588 = vpack.c.b16 %v1084, %v1072
        %v1589 = vpack.c.b16 %v1085, %v1073
        %v1590 = vpack.c.b16 %v1086, %v1074
        %v1591 = vpack.c.b16 %v1087, %v1075
        %v1592 = vpack.c.b16 %v1088, %v1076
        %v1593 = vpack.c.b16 %v1089, %v1077
        %v1594 = vpack.c.b16 %v1090, %v1078
        %v1595 = vpack.c.b16 %v1091, %v1079
        %v1596 = vpack.c.b16 %v1092, %v1080
        %v1597 = vpack.c.b16 %v1105, %v1093
        %v1598 = vpack.c.b16 %v1106, %v1094
        %v1599 = vpack.c.b16 %v1107, %v1095
        %v1600 = vpack.c.b16 %v1108, %v1096
        %v1601 = vpack.c.b16 %v1109, %v1097
        %v1602 = vpack.c.b16 %v1110, %v1098
        %v1603 = vpack.c.b16 %v1111, %v1099
        %v1604 = vpack.c.b16 %v1112, %v1100
        %v1605 = vpack.c.b16 %v1113, %v1101
        %v1606 = vpack.c.b16 %v1114, %v1102
        %v1607 = vpack.c.b16 %v1115, %v1103
        %v1608 = vpack.c.b16 %v1116, %v1104
        %v1609 = vpack.c.b16 %v1129, %v1117
        %v1610 = vpack.c.b16 %v1130, %v1118
        %v1611 = vpack.c.b16 %v1131, %v1119
        %v1612 = vpack.c.b16 %v1132, %v1120
        %v1613 = vpack.c.b16 %v1133, %v1121
        %v1614 = vpack.c.b16 %v1134, %v1122
        %v1615 = vpack.c.b16 %v1135, %v1123
        %v1616 = vpack.c.b16 %v1136, %v1124
        %v1617 = vpack.c.b16 %v1137, %v1125
        %v1618 = vpack.c.b16 %v1138, %v1126
        %v1619 = vpack.c.b16 %v1139, %v1127
        %v1620 = vpack.c.b16 %v1140, %v1128
        %v1621 = vpack.c.b16 %v1153, %v1141
        %v1622 = vpack.c.b16 %v1154, %v1142
        %v1623 = vpack.c.b16 %v1155, %v1143
        %v1624 = vpack.c.b16 %v1156, %v1144
        %v1625 = vpack.c.b16 %v1157, %v1145
        %v1626 = vpack.c.b16 %v1158, %v1146
        %v1627 = vpack.c.b16 %v1159, %v1147
        %v1628 = vpack.c.b16 %v1160, %v1148
        %v1629 = vpack.c.b16 %v1161, %v1149
        %v1630 = vpack.c.b16 %v1162, %v1150
        %v1631 = vpack.c.b16 %v1163, %v1151
        %v1632 = vpack.c.b16 %v1164, %v1152
        %v1633 = vpack.c.b16 %v1177, %v1165
        %v1634 = vpack.c.b16 %v1178, %v1166
        %v1635 = vpack.c.b16 %v1179, %v1167
        %v1636 = vpack.c.b16 %v1180, %v1168
        %v1637 = vpack.c.b16 %v1181, %v1169
        %v1638 = vpack.c.b16 %v1182, %v1170
        %v1639 = vpack.c.b16 %v1183, %v1171
        %v1640 = vpack.c.b16 %v1184, %v1172
        %v1641 = vpack.c.b16 %v1185, %v1173
        %v1642 = vpack.c.b16 %v1186, %v1174
        %v1643 = vpack.c.b16 %v1187, %v1175
        %v1644 = vpack.c.b16 %v1188, %v1176
        %v1645 = vpack.c.b16 %v1201, %v1189
        %v1646 = vpack.c.b16 %v1202, %v1190
        %v1647 = vpack.c.b16 %v1203, %v1191
        %v1648 = vpack.c.b16 %v1204, %v1192
        %v1649 = vpack.c.b16 %v1205, %v1193
        %v1650 = vpack.c.b16 %v1206, %v1194
        %v1651 = vpack.c.b16 %v1207, %v1195
        %v1652 = vpack.c.b16 %v1208, %v1196
        %v1653 = vpack.c.b16 %v1209, %v1197
        %v1654 = vpack.c.b16 %v1210, %v1198
        %v1655 = vpack.c.b16 %v1211, %v1199
        %v1656 = vpack.c.b16 %v1212, %v1200
        %v1657 = vpack.c.b16 %v1225, %v1213
        %v1658 = vpack.c.b16 %v1226, %v1214
        %v1659 = vpack.c.b16 %v1227, %v1215
        %v1660 = vpack.c.b16 %v1228, %v1216
        %v1661 = vpack.c.b16 %v1229, %v1217
        %v1662 = vpack.c.b16 %v1230, %v1218
        %v1663 = vpack.c.b16 %v1231, %v1219
        %v1664 = vpack.c.b16 %v1232, %v1220
        %v1665 = vpack.c.b16 %v1233, %v1221
        %v1666 = vpack.c.b16 %v1234, %v1222
        %v1667 = vpack.c.b16 %v1235, %v1223
        %v1668 = vpack.c.b16 %v1236, %v1224
        %v1669 = vpack.c.b16 %v1249, %v1237
        %v1670 = vpack.c.b16 %v1250, %v1238
        %v1671 = vpack.c.b16 %v1251, %v1239
        %v1672 = vpack.c.b16 %v1252, %v1240
        %v1673 = vpack.c.b16 %v1253, %v1241
        %v1674 = vpack.c.b16 %v1254, %v1242
        %v1675 = vpack.c.b16 %v1255, %v1243
        %v1676 = vpack.c.b16 %v1256, %v1244
        %v1677 = vpack.c.b16 %v1257, %v1245
        %v1678 = vpack.c.b16 %v1258, %v1246
        %v1679 = vpack.c.b16 %v1259, %v1247
        %v1680 = vpack.c.b16 %v1260, %v1248
        %v1681 = vpack.c.b16 %v1273, %v1261
        %v1682 = vpack.c.b16 %v1274, %v1262
        %v1683 = vpack.c.b16 %v1275, %v1263
        %v1684 = vpack.c.b16 %v1276, %v1264
        %v1685 = vpack.c.b16 %v1277, %v1265
        %v1686 = vpack.c.b16 %v1278, %v1266
        %v1687 = vpack.c.b16 %v1279, %v1267
        %v1688 = vpack.c.b16 %v1280, %v1268
        %v1689 = vpack.c.b16 %v1281, %v1269
        %v1690 = vpack.c.b16 %v1282, %v1270
        %v1691 = vpack.c.b16 %v1283, %v1271
        %v1692 = vpack.c.b16 %v1284, %v1272
        %v1693 = vpack.c.b16 %v1297, %v1285
        %v1694 = vpack.c.b16 %v1298, %v1286
        %v1695 = vpack.c.b16 %v1299, %v1287
        %v1696 = vpack.c.b16 %v1300, %v1288
        %v1697 = vpack.c.b16 %v1301, %v1289
        %v1698 = vpack.c.b16 %v1302, %v1290
        %v1699 = vpack.c.b16 %v1303, %v1291
        %v1700 = vpack.c.b16 %v1304, %v1292
        %v1701 = vpack.c.b16 %v1305, %v1293
        %v1702 = vpack.c.b16 %v1306, %v1294
        %v1703 = vpack.c.b16 %v1307, %v1295
        %v1704 = vpack.c.b16 %v1308, %v1296
        %v1705 = vpack.c.b16 %v1321, %v1309
        %v1706 = vpack.c.b16 %v1322, %v1310
        %v1707 = vpack.c.b16 %v1323, %v1311
        %v1708 = vpack.c.b16 %v1324, %v1312
        %v1709 = vpack.c.b16 %v1325, %v1313
        %v1710 = vpack.c.b16 %v1326, %v1314
        %v1711 = vpack.c.b16 %v1327, %v1315
        %v1712 = vpack.c.b16 %v1328, %v1316
        %v1713 = vpack.c.b16 %v1329, %v1317
        %v1714 = vpack.c.b16 %v1330, %v1318
        %v1715 = vpack.c.b16 %v1331, %v1319
        %v1716 = vpack.c.b16 %v1332, %v1320
        %v1717 = vpack.c.b16 %v1345, %v1333
        %v1718 = vpack.c.b16 %v1346, %v1334
        %v1719 = vpack.c.b16 %v1347, %v1335
        %v1720 = vpack.c.b16 %v1348, %v1336
        %v1721 = vpack.c.b16 %v1349, %v1337
        %v1722 = vpack.c.b16 %v1350, %v1338
        %v1723 = vpack.c.b16 %v1351, %v1339
        %v1724 = vpack.c.b16 %v1352, %v1340
        %v1725 = vpack.c.b16 %v1353, %v1341
        %v1726 = vpack.c.b16 %v1354, %v1342
        %v1727 = vpack.c.b16 %v1355, %v1343
        %v1728 = vpack.c.b16 %v1356, %v1344
        %v1729 = vpack.c.b16 %v1369, %v1357
        %v1730 = vpack.c.b16 %v1370, %v1358
        %v1731 = vpack.c.b16 %v1371, %v1359
        %v1732 = vpack.c.b16 %v1372, %v1360
        %v1733 = vpack.c.b16 %v1373, %v1361
        %v1734 = vpack.c.b16 %v1374, %v1362
        %v1735 = vpack.c.b16 %v1375, %v1363
        %v1736 = vpack.c.b16 %v1376, %v1364
        %v1737 = vpack.c.b16 %v1377, %v1365
        %v1738 = vpack.c.b16 %v1378, %v1366
        %v1739 = vpack.c.b16 %v1379, %v1367
        %v1740 = vpack.c.b16 %v1380, %v1368
        %v1741 = vpack.c.b16 %v1393, %v1381
        %v1742 = vpack.c.b16 %v1394, %v1382
        %v1743 = vpack.c.b16 %v1395, %v1383
        %v1744 = vpack.c.b16 %v1396, %v1384
        %v1745 = vpack.c.b16 %v1397, %v1385
        %v1746 = vpack.c.b16 %v1398, %v1386
        %v1747 = vpack.c.b16 %v1399, %v1387
        %v1748 = vpack.c.b16 %v1400, %v1388
        %v1749 = vpack.c.b16 %v1401, %v1389
        %v1750 = vpack.c.b16 %v1402, %v1390
        %v1751 = vpack.c.b16 %v1403, %v1391
        %v1752 = vpack.c.b16 %v1404, %v1392
        %v1753 = vpack.c.b16 %v1417, %v1405
        %v1754 = vpack.c.b16 %v1418, %v1406
        %v1755 = vpack.c.b16 %v1419, %v1407
        %v1756 = vpack.c.b16 %v1420, %v1408
        %v1757 = vpack.c.b16 %v1421, %v1409
        %v1758 = vpack.c.b16 %v1422, %v1410
        %v1759 = vpack.c.b16 %v1423, %v1411
        %v1760 = vpack.c.b16 %v1424, %v1412
        %v1761 = vpack.c.b16 %v1425, %v1413
        %v1762 = vpack.c.b16 %v1426, %v1414
        %v1763 = vpack.c.b16 %v1427, %v1415
        %v1764 = vpack.c.b16 %v1428, %v1416
        %v1765 = vpack.c.b16 %v1441, %v1429
        %v1766 = vpack.c.b16 %v1442, %v1430
        %v1767 = vpack.c.b16 %v1443, %v1431
        %v1768 = vpack.c.b16 %v1444, %v1432
        %v1769 = vpack.c.b16 %v1445, %v1433
        %v1770 = vpack.c.b16 %v1446, %v1434
        %v1771 = vpack.c.b16 %v1447, %v1435
        %v1772 = vpack.c.b16 %v1448, %v1436
        %v1773 = vpack.c.b16 %v1449, %v1437
        %v1774 = vpack.c.b16 %v1450, %v1438
        %v1775 = vpack.c.b16 %v1451, %v1439
        %v1776 = vpack.c.b16 %v1452, %v1440
        %v1777 = vpack.c.b16 %v1465, %v1453
        %v1778 = vpack.c.b16 %v1466, %v1454
        %v1779 = vpack.c.b16 %v1467, %v1455
        %v1780 = vpack.c.b16 %v1468, %v1456
        %v1781 = vpack.c.b16 %v1469, %v1457
        %v1782 = vpack.c.b16 %v1470, %v1458
        %v1783 = vpack.c.b16 %v1471, %v1459
        %v1784 = vpack.c.b16 %v1472, %v1460
        %v1785 = vpack.c.b16 %v1473, %v1461
        %v1786 = vpack.c.b16 %v1474, %v1462
        %v1787 = vpack.c.b16 %v1475, %v1463
        %v1788 = vpack.c.b16 %v1476, %v1464
        %v1789 = vpack.c.b16 %v1489, %v1477
        %v1790 = vpack.c.b16 %v1490, %v1478
        %v1791 = vpack.c.b16 %v1491, %v1479
        %v1792 = vpack.c.b16 %v1492, %v1480
        %v1793 = vpack.c.b16 %v1493, %v1481
        %v1794 = vpack.c.b16 %v1494, %v1482
        %v1795 = vpack.c.b16 %v1495, %v1483
        %v1796 = vpack.c.b16 %v1496, %v1484
        %v1797 = vpack.c.b16 %v1497, %v1485
        %v1798 = vpack.c.b16 %v1498, %v1486
        %v1799 = vpack.c.b16 %v1499, %v1487
        %v1800 = vpack.c.b16 %v1500, %v1488
        %v1801 = vpack.c.b16 %v1513, %v1501
        %v1802 = vpack.c.b16 %v1514, %v1502
        %v1803 = vpack.c.b16 %v1515, %v1503
        %v1804 = vpack.c.b16 %v1516, %v1504
        %v1805 = vpack.c.b16 %v1517, %v1505
        %v1806 = vpack.c.b16 %v1518, %v1506
        %v1807 = vpack.c.b16 %v1519, %v1507
        %v1808 = vpack.c.b16 %v1520, %v1508
        %v1809 = vpack.c.b16 %v1521, %v1509
        %v1810 = vpack.c.b16 %v1522, %v1510
        %v1811 = vpack.c.b16 %v1523, %v1511
        %v1812 = vpack.c.b16 %v1524, %v1512
        %2101 = vmatprep.subr.bf16.mxu0 %v1526
        %2102 = vmatpush1.bf16.msra.mxu0 %v1525
        %2103 = vmatprep.subr.bf16.mxu0 %v1538
        %2104 = vmatpush1.bf16.msra.mxu0 %v1537
        %2105 = vmatprep.subr.bf16.mxu0 %v1550
        %2106 = vmatpush1.bf16.msra.mxu0 %v1549
        %2107 = vmatprep.subr.bf16.mxu0 %v1562
        %2108 = vmatpush1.bf16.msra.mxu0 %v1561
        %2109 = vmatprep.subr.bf16.mxu0 %v1574
        %2110 = vmatpush1.bf16.msra.mxu0 %v1573
        %2111 = vmatprep.subr.bf16.mxu0 %v1586
        %2112 = vmatpush1.bf16.msra.mxu0 %v1585
        %2113 = vmatprep.subr.bf16.mxu0 %v1598
        %2114 = vmatpush1.bf16.msra.mxu0 %v1597
        %2115 = vmatprep.subr.bf16.mxu0 %v1610
        %2116 = vmatpush1.bf16.msra.mxu0 %v1609
        %2117 = vmatprep.subr.bf16.mxu0 %v1622
        %2118 = vmatpush1.bf16.msra.mxu0 %v1621
        %2119 = vmatprep.subr.bf16.mxu0 %v1634
        %2120 = vmatpush1.bf16.msra.mxu0 %v1633
        %2121 = vmatprep.subr.bf16.mxu0 %v1646
        %2122 = vmatpush1.bf16.msra.mxu0 %v1645
        %2123 = vmatprep.subr.bf16.mxu0 %v1658
        %2124 = vmatpush1.bf16.msra.mxu0 %v1657
        %2125 = vmatprep.subr.bf16.mxu0 %v1670
        %2126 = vmatpush1.bf16.msra.mxu0 %v1669
        %2127 = vmatprep.subr.bf16.mxu0 %v1682
        %2128 = vmatpush1.bf16.msra.mxu0 %v1681
        %2129 = vmatprep.subr.bf16.mxu0 %v1694
        %2130 = vmatpush1.bf16.msra.mxu0 %v1693
        %2131 = vmatprep.subr.bf16.mxu0 %v1706
        %2132 = vmatpush1.bf16.msra.mxu0 %v1705
        %2133 = vmatprep.mubr.bf16.mxu0 %v656
        %2134 = vmatmul.mubr.bf16.gmra.mrb[0].mxu0 %v655
        %v2135 = vpop.f32.mrb[0].mxu0
        %v2136 = vadd.f32 %v593, %v2135
        %v2137 = vpop.f32.mrb[0].mxu0
        %v2138 = vadd.f32 %v597, %v2137
        %v2139 = vpop.f32.mrb[0].mxu0
        %v2140 = vpop.f32.mrb[0].mxu0
        %2141 = vdwg.mxu0
        %2142 = vmatprep.subr.bf16.mxu0 %v1718
        %2143 = vmatpush1.bf16.msra.mxu0 %v1717
        %2144 = vmatprep.subr.bf16.mxu0 %v1730
        %2145 = vmatpush1.bf16.msra.mxu0 %v1729
        %2146 = vmatprep.subr.bf16.mxu0 %v1742
        %2147 = vmatpush1.bf16.msra.mxu0 %v1741
        %2148 = vmatprep.subr.bf16.mxu0 %v1754
        %2149 = vmatpush1.bf16.msra.mxu0 %v1753
        %2150 = vmatprep.subr.bf16.mxu0 %v1766
        %2151 = vmatpush1.bf16.msra.mxu0 %v1765
        %2152 = vmatprep.subr.bf16.mxu0 %v1778
        %2153 = vmatpush1.bf16.msra.mxu0 %v1777
        %2154 = vmatprep.subr.bf16.mxu0 %v1790
        %2155 = vmatpush1.bf16.msra.mxu0 %v1789
        %2156 = vmatprep.subr.bf16.mxu0 %v1802
        %2157 = vmatpush1.bf16.msra.mxu0 %v1801
        %2158 = vmatprep.subr.bf16.mxu0 0
        %2159 = vmatpush1.bf16.msra.mxu0 0
        %2160 = vmatprep.subr.bf16.mxu0 0
        %2161 = vmatpush1.bf16.msra.mxu0 0
        %2162 = vmatprep.subr.bf16.mxu0 0
        %2163 = vmatpush1.bf16.msra.mxu0 0
        %2164 = vmatprep.subr.bf16.mxu0 0
        %2165 = vmatpush1.bf16.msra.mxu0 0
        %2166 = vmatprep.subr.bf16.mxu0 0
        %2167 = vmatpush1.bf16.msra.mxu0 0
        %2168 = vmatprep.subr.bf16.mxu0 0
        %2169 = vmatpush1.bf16.msra.mxu0 0
        %2170 = vmatprep.subr.bf16.mxu0 0
        %2171 = vmatpush1.bf16.msra.mxu0 0
        %2172 = vmatprep.subr.bf16.mxu0 0
        %2173 = vmatpush1.bf16.msra.mxu0 0
        %2174 = vmatprep.mubr.bf16.mxu0 0
        %2175 = vmatmul.mubr.bf16.gmra.mrb[0].mxu0 %v657
        %v2176 = vpop.f32.mrb[0].mxu0
        %v2177 = vadd.f32 %v2136, %v2176
        %v2178 = vpop.f32.mrb[0].mxu0
        %v2179 = vadd.f32 %v2138, %v2178
        %v2180 = vpop.f32.mrb[0].mxu0
        %v2181 = vpop.f32.mrb[0].mxu0
        %2182 = vdwg.mxu0
        %2183 = vmatprep.subr.bf16.mxu0 %v1528
        %2184 = vmatpush1.bf16.msra.mxu0 %v1527
        %2185 = vmatprep.subr.bf16.mxu0 %v1540
        %2186 = vmatpush1.bf16.msra.mxu0 %v1539
        %2187 = vmatprep.subr.bf16.mxu0 %v1552
        %2188 = vmatpush1.bf16.msra.mxu0 %v1551
        %2189 = vmatprep.subr.bf16.mxu0 %v1564
        %2190 = vmatpush1.bf16.msra.mxu0 %v1563
        %2191 = vmatprep.subr.bf16.mxu0 %v1576
        %2192 = vmatpush1.bf16.msra.mxu0 %v1575
        %2193 = vmatprep.subr.bf16.mxu0 %v1588
        %2194 = vmatpush1.bf16.msra.mxu0 %v1587
        %2195 = vmatprep.subr.bf16.mxu0 %v1600
        %2196 = vmatpush1.bf16.msra.mxu0 %v1599
        %2197 = vmatprep.subr.bf16.mxu0 %v1612
        %2198 = vmatpush1.bf16.msra.mxu0 %v1611
        %2199 = vmatprep.subr.bf16.mxu0 %v1624
        %2200 = vmatpush1.bf16.msra.mxu0 %v1623
        %2201 = vmatprep.subr.bf16.mxu0 %v1636
        %2202 = vmatpush1.bf16.msra.mxu0 %v1635
        %2203 = vmatprep.subr.bf16.mxu0 %v1648
        %2204 = vmatpush1.bf16.msra.mxu0 %v1647
        %2205 = vmatprep.subr.bf16.mxu0 %v1660
        %2206 = vmatpush1.bf16.msra.mxu0 %v1659
        %2207 = vmatprep.subr.bf16.mxu0 %v1672
        %2208 = vmatpush1.bf16.msra.mxu0 %v1671
        %2209 = vmatprep.subr.bf16.mxu0 %v1684
        %2210 = vmatpush1.bf16.msra.mxu0 %v1683
        %2211 = vmatprep.subr.bf16.mxu0 %v1696
        %2212 = vmatpush1.bf16.msra.mxu0 %v1695
        %2213 = vmatprep.subr.bf16.mxu0 %v1708
        %2214 = vmatpush1.bf16.msra.mxu0 %v1707
        %2215 = vmatprep.mubr.bf16.mxu0 %v656
        %2216 = vmatmul.mubr.bf16.gmra.mrb[0].mxu0 %v655
        %v2217 = vpop.f32.mrb[0].mxu0
        %v2218 = vadd.f32 %v601, %v2217
        %v2219 = vpop.f32.mrb[0].mxu0
        %v2220 = vadd.f32 %v605, %v2219
        %v2221 = vpop.f32.mrb[0].mxu0
        %v2222 = vpop.f32.mrb[0].mxu0
        %2223 = vdwg.mxu0
        %2224 = vmatprep.subr.bf16.mxu0 %v1720
        %2225 = vmatpush1.bf16.msra.mxu0 %v1719
        %2226 = vmatprep.subr.bf16.mxu0 %v1732
        %2227 = vmatpush1.bf16.msra.mxu0 %v1731
        %2228 = vmatprep.subr.bf16.mxu0 %v1744
        %2229 = vmatpush1.bf16.msra.mxu0 %v1743
        %2230 = vmatprep.subr.bf16.mxu0 %v1756
        %2231 = vmatpush1.bf16.msra.mxu0 %v1755
        %2232 = vmatprep.subr.bf16.mxu0 %v1768
        %2233 = vmatpush1.bf16.msra.mxu0 %v1767
        %2234 = vmatprep.subr.bf16.mxu0 %v1780
        %2235 = vmatpush1.bf16.msra.mxu0 %v1779
        %2236 = vmatprep.subr.bf16.mxu0 %v1792
        %2237 = vmatpush1.bf16.msra.mxu0 %v1791
        %2238 = vmatprep.subr.bf16.mxu0 %v1804
        %2239 = vmatpush1.bf16.msra.mxu0 %v1803
        %2240 = vmatprep.subr.bf16.mxu0 0
        %2241 = vmatpush1.bf16.msra.mxu0 0
        %2242 = vmatprep.subr.bf16.mxu0 0
        %2243 = vmatpush1.bf16.msra.mxu0 0
        %2244 = vmatprep.subr.bf16.mxu0 0
        %2245 = vmatpush1.bf16.msra.mxu0 0
        %2246 = vmatprep.subr.bf16.mxu0 0
        %2247 = vmatpush1.bf16.msra.mxu0 0
        %2248 = vmatprep.subr.bf16.mxu0 0
        %2249 = vmatpush1.bf16.msra.mxu0 0
        %2250 = vmatprep.subr.bf16.mxu0 0
        %2251 = vmatpush1.bf16.msra.mxu0 0
        %2252 = vmatprep.subr.bf16.mxu0 0
        %2253 = vmatpush1.bf16.msra.mxu0 0
        %2254 = vmatprep.subr.bf16.mxu0 0
        %2255 = vmatpush1.bf16.msra.mxu0 0
        %2256 = vmatprep.mubr.bf16.mxu0 0
        %2257 = vmatmul.mubr.bf16.gmra.mrb[0].mxu0 %v657
        %v2258 = vpop.f32.mrb[0].mxu0
        %v2259 = vadd.f32 %v2218, %v2258
        %v2260 = vpop.f32.mrb[0].mxu0
        %v2261 = vadd.f32 %v2220, %v2260
        %v2262 = vpop.f32.mrb[0].mxu0
        %v2263 = vpop.f32.mrb[0].mxu0
        %2264 = vdwg.mxu0
        %2265 = vmatprep.subr.bf16.mxu0 %v1530
        %2266 = vmatpush1.bf16.msra.mxu0 %v1529
        %2267 = vmatprep.subr.bf16.mxu0 %v1542
        %2268 = vmatpush1.bf16.msra.mxu0 %v1541
        %2269 = vmatprep.subr.bf16.mxu0 %v1554
        %2270 = vmatpush1.bf16.msra.mxu0 %v1553
        %2271 = vmatprep.subr.bf16.mxu0 %v1566
        %2272 = vmatpush1.bf16.msra.mxu0 %v1565
        %2273 = vmatprep.subr.bf16.mxu0 %v1578
        %2274 = vmatpush1.bf16.msra.mxu0 %v1577
        %2275 = vmatprep.subr.bf16.mxu0 %v1590
        %2276 = vmatpush1.bf16.msra.mxu0 %v1589
        %2277 = vmatprep.subr.bf16.mxu0 %v1602
        %2278 = vmatpush1.bf16.msra.mxu0 %v1601
        %2279 = vmatprep.subr.bf16.mxu0 %v1614
        %2280 = vmatpush1.bf16.msra.mxu0 %v1613
        %2281 = vmatprep.subr.bf16.mxu0 %v1626
        %2282 = vmatpush1.bf16.msra.mxu0 %v1625
        %2283 = vmatprep.subr.bf16.mxu0 %v1638
        %2284 = vmatpush1.bf16.msra.mxu0 %v1637
        %2285 = vmatprep.subr.bf16.mxu0 %v1650
        %2286 = vmatpush1.bf16.msra.mxu0 %v1649
        %2287 = vmatprep.subr.bf16.mxu0 %v1662
        %2288 = vmatpush1.bf16.msra.mxu0 %v1661
        %2289 = vmatprep.subr.bf16.mxu0 %v1674
        %2290 = vmatpush1.bf16.msra.mxu0 %v1673
        %2291 = vmatprep.subr.bf16.mxu0 %v1686
        %2292 = vmatpush1.bf16.msra.mxu0 %v1685
        %2293 = vmatprep.subr.bf16.mxu0 %v1698
        %2294 = vmatpush1.bf16.msra.mxu0 %v1697
        %2295 = vmatprep.subr.bf16.mxu0 %v1710
        %2296 = vmatpush1.bf16.msra.mxu0 %v1709
        %2297 = vmatprep.mubr.bf16.mxu0 %v656
        %2298 = vmatmul.mubr.bf16.gmra.mrb[0].mxu0 %v655
        %v2299 = vpop.f32.mrb[0].mxu0
        %v2300 = vadd.f32 %v609, %v2299
        %v2301 = vpop.f32.mrb[0].mxu0
        %v2302 = vadd.f32 %v613, %v2301
        %v2303 = vpop.f32.mrb[0].mxu0
        %v2304 = vpop.f32.mrb[0].mxu0
        %2305 = vdwg.mxu0
        %2306 = vmatprep.subr.bf16.mxu0 %v1722
        %2307 = vmatpush1.bf16.msra.mxu0 %v1721
        %2308 = vmatprep.subr.bf16.mxu0 %v1734
        %2309 = vmatpush1.bf16.msra.mxu0 %v1733
        %2310 = vmatprep.subr.bf16.mxu0 %v1746
        %2311 = vmatpush1.bf16.msra.mxu0 %v1745
        %2312 = vmatprep.subr.bf16.mxu0 %v1758
        %2313 = vmatpush1.bf16.msra.mxu0 %v1757
        %2314 = vmatprep.subr.bf16.mxu0 %v1770
        %2315 = vmatpush1.bf16.msra.mxu0 %v1769
        %2316 = vmatprep.subr.bf16.mxu0 %v1782
        %2317 = vmatpush1.bf16.msra.mxu0 %v1781
        %2318 = vmatprep.subr.bf16.mxu0 %v1794
        %2319 = vmatpush1.bf16.msra.mxu0 %v1793
        %2320 = vmatprep.subr.bf16.mxu0 %v1806
        %2321 = vmatpush1.bf16.msra.mxu0 %v1805
        %2322 = vmatprep.subr.bf16.mxu0 0
        %2323 = vmatpush1.bf16.msra.mxu0 0
        %2324 = vmatprep.subr.bf16.mxu0 0
        %2325 = vmatpush1.bf16.msra.mxu0 0
        %2326 = vmatprep.subr.bf16.mxu0 0
        %2327 = vmatpush1.bf16.msra.mxu0 0
        %2328 = vmatprep.subr.bf16.mxu0 0
        %2329 = vmatpush1.bf16.msra.mxu0 0
        %2330 = vmatprep.subr.bf16.mxu0 0
        %2331 = vmatpush1.bf16.msra.mxu0 0
        %2332 = vmatprep.subr.bf16.mxu0 0
        %2333 = vmatpush1.bf16.msra.mxu0 0
        %2334 = vmatprep.subr.bf16.mxu0 0
        %2335 = vmatpush1.bf16.msra.mxu0 0
        %2336 = vmatprep.subr.bf16.mxu0 0
        %2337 = vmatpush1.bf16.msra.mxu0 0
        %2338 = vmatprep.mubr.bf16.mxu0 0
        %2339 = vmatmul.mubr.bf16.gmra.mrb[0].mxu0 %v657
        %v2340 = vpop.f32.mrb[0].mxu0
        %v2341 = vadd.f32 %v2300, %v2340
        %v2342 = vpop.f32.mrb[0].mxu0
        %v2343 = vadd.f32 %v2302, %v2342
        %v2344 = vpop.f32.mrb[0].mxu0
        %v2345 = vpop.f32.mrb[0].mxu0
        %2346 = vdwg.mxu0
        %2347 = vmatprep.subr.bf16.mxu0 %v1532
        %2348 = vmatpush1.bf16.msra.mxu0 %v1531
        %2349 = vmatprep.subr.bf16.mxu0 %v1544
        %2350 = vmatpush1.bf16.msra.mxu0 %v1543
        %2351 = vmatprep.subr.bf16.mxu0 %v1556
        %2352 = vmatpush1.bf16.msra.mxu0 %v1555
        %2353 = vmatprep.subr.bf16.mxu0 %v1568
        %2354 = vmatpush1.bf16.msra.mxu0 %v1567
        %2355 = vmatprep.subr.bf16.mxu0 %v1580
        %2356 = vmatpush1.bf16.msra.mxu0 %v1579
        %2357 = vmatprep.subr.bf16.mxu0 %v1592
        %2358 = vmatpush1.bf16.msra.mxu0 %v1591
        %2359 = vmatprep.subr.bf16.mxu0 %v1604
        %2360 = vmatpush1.bf16.msra.mxu0 %v1603
        %2361 = vmatprep.subr.bf16.mxu0 %v1616
        %2362 = vmatpush1.bf16.msra.mxu0 %v1615
        %2363 = vmatprep.subr.bf16.mxu0 %v1628
        %2364 = vmatpush1.bf16.msra.mxu0 %v1627
        %2365 = vmatprep.subr.bf16.mxu0 %v1640
        %2366 = vmatpush1.bf16.msra.mxu0 %v1639
        %2367 = vmatprep.subr.bf16.mxu0 %v1652
        %2368 = vmatpush1.bf16.msra.mxu0 %v1651
        %2369 = vmatprep.subr.bf16.mxu0 %v1664
        %2370 = vmatpush1.bf16.msra.mxu0 %v1663
        %2371 = vmatprep.subr.bf16.mxu0 %v1676
        %2372 = vmatpush1.bf16.msra.mxu0 %v1675
        %2373 = vmatprep.subr.bf16.mxu0 %v1688
        %2374 = vmatpush1.bf16.msra.mxu0 %v1687
        %2375 = vmatprep.subr.bf16.mxu0 %v1700
        %2376 = vmatpush1.bf16.msra.mxu0 %v1699
        %2377 = vmatprep.subr.bf16.mxu0 %v1712
        %2378 = vmatpush1.bf16.msra.mxu0 %v1711
        %2379 = vmatprep.mubr.bf16.mxu0 %v656
        %2380 = vmatmul.mubr.bf16.gmra.mrb[0].mxu0 %v655
        %v2381 = vpop.f32.mrb[0].mxu0
        %v2382 = vadd.f32 %v617, %v2381
        %v2383 = vpop.f32.mrb[0].mxu0
        %v2384 = vadd.f32 %v621, %v2383
        %v2385 = vpop.f32.mrb[0].mxu0
        %v2386 = vpop.f32.mrb[0].mxu0
        %2387 = vdwg.mxu0
        %2388 = vmatprep.subr.bf16.mxu0 %v1724
        %2389 = vmatpush1.bf16.msra.mxu0 %v1723
        %2390 = vmatprep.subr.bf16.mxu0 %v1736
        %2391 = vmatpush1.bf16.msra.mxu0 %v1735
        %2392 = vmatprep.subr.bf16.mxu0 %v1748
        %2393 = vmatpush1.bf16.msra.mxu0 %v1747
        %2394 = vmatprep.subr.bf16.mxu0 %v1760
        %2395 = vmatpush1.bf16.msra.mxu0 %v1759
        %2396 = vmatprep.subr.bf16.mxu0 %v1772
        %2397 = vmatpush1.bf16.msra.mxu0 %v1771
        %2398 = vmatprep.subr.bf16.mxu0 %v1784
        %2399 = vmatpush1.bf16.msra.mxu0 %v1783
        %2400 = vmatprep.subr.bf16.mxu0 %v1796
        %2401 = vmatpush1.bf16.msra.mxu0 %v1795
        %2402 = vmatprep.subr.bf16.mxu0 %v1808
        %2403 = vmatpush1.bf16.msra.mxu0 %v1807
        %2404 = vmatprep.subr.bf16.mxu0 0
        %2405 = vmatpush1.bf16.msra.mxu0 0
        %2406 = vmatprep.subr.bf16.mxu0 0
        %2407 = vmatpush1.bf16.msra.mxu0 0
        %2408 = vmatprep.subr.bf16.mxu0 0
        %2409 = vmatpush1.bf16.msra.mxu0 0
        %2410 = vmatprep.subr.bf16.mxu0 0
        %2411 = vmatpush1.bf16.msra.mxu0 0
        %2412 = vmatprep.subr.bf16.mxu0 0
        %2413 = vmatpush1.bf16.msra.mxu0 0
        %2414 = vmatprep.subr.bf16.mxu0 0
        %2415 = vmatpush1.bf16.msra.mxu0 0
        %2416 = vmatprep.subr.bf16.mxu0 0
        %2417 = vmatpush1.bf16.msra.mxu0 0
        %2418 = vmatprep.subr.bf16.mxu0 0
        %2419 = vmatpush1.bf16.msra.mxu0 0
        %2420 = vmatprep.mubr.bf16.mxu0 0
        %2421 = vmatmul.mubr.bf16.gmra.mrb[0].mxu0 %v657
        %v2422 = vpop.f32.mrb[0].mxu0
        %v2423 = vadd.f32 %v2382, %v2422
        %v2424 = vpop.f32.mrb[0].mxu0
        %v2425 = vadd.f32 %v2384, %v2424
        %v2426 = vpop.f32.mrb[0].mxu0
        %v2427 = vpop.f32.mrb[0].mxu0
        %2428 = vdwg.mxu0
        %2429 = vmatprep.subr.bf16.mxu0 %v1534
        %2430 = vmatpush1.bf16.msra.mxu0 %v1533
        %2431 = vmatprep.subr.bf16.mxu0 %v1546
        %2432 = vmatpush1.bf16.msra.mxu0 %v1545
        %2433 = vmatprep.subr.bf16.mxu0 %v1558
        %2434 = vmatpush1.bf16.msra.mxu0 %v1557
        %2435 = vmatprep.subr.bf16.mxu0 %v1570
        %2436 = vmatpush1.bf16.msra.mxu0 %v1569
        %2437 = vmatprep.subr.bf16.mxu0 %v1582
        %2438 = vmatpush1.bf16.msra.mxu0 %v1581
        %2439 = vmatprep.subr.bf16.mxu0 %v1594
        %2440 = vmatpush1.bf16.msra.mxu0 %v1593
        %2441 = vmatprep.subr.bf16.mxu0 %v1606
        %2442 = vmatpush1.bf16.msra.mxu0 %v1605
        %2443 = vmatprep.subr.bf16.mxu0 %v1618
        %2444 = vmatpush1.bf16.msra.mxu0 %v1617
        %2445 = vmatprep.subr.bf16.mxu0 %v1630
        %2446 = vmatpush1.bf16.msra.mxu0 %v1629
        %2447 = vmatprep.subr.bf16.mxu0 %v1642
        %2448 = vmatpush1.bf16.msra.mxu0 %v1641
        %2449 = vmatprep.subr.bf16.mxu0 %v1654
        %2450 = vmatpush1.bf16.msra.mxu0 %v1653
        %2451 = vmatprep.subr.bf16.mxu0 %v1666
        %2452 = vmatpush1.bf16.msra.mxu0 %v1665
        %2453 = vmatprep.subr.bf16.mxu0 %v1678
        %2454 = vmatpush1.bf16.msra.mxu0 %v1677
        %2455 = vmatprep.subr.bf16.mxu0 %v1690
        %2456 = vmatpush1.bf16.msra.mxu0 %v1689
        %2457 = vmatprep.subr.bf16.mxu0 %v1702
        %2458 = vmatpush1.bf16.msra.mxu0 %v1701
        %2459 = vmatprep.subr.bf16.mxu0 %v1714
        %2460 = vmatpush1.bf16.msra.mxu0 %v1713
        %2461 = vmatprep.mubr.bf16.mxu0 %v656
        %2462 = vmatmul.mubr.bf16.gmra.mrb[0].mxu0 %v655
        %v2463 = vpop.f32.mrb[0].mxu0
        %v2464 = vadd.f32 %v625, %v2463
        %v2465 = vpop.f32.mrb[0].mxu0
        %v2466 = vadd.f32 %v629, %v2465
        %v2467 = vpop.f32.mrb[0].mxu0
        %v2468 = vpop.f32.mrb[0].mxu0
        %2469 = vdwg.mxu0
        %2470 = vmatprep.subr.bf16.mxu0 %v1726
        %2471 = vmatpush1.bf16.msra.mxu0 %v1725
        %2472 = vmatprep.subr.bf16.mxu0 %v1738
        %2473 = vmatpush1.bf16.msra.mxu0 %v1737
        %2474 = vmatprep.subr.bf16.mxu0 %v1750
        %2475 = vmatpush1.bf16.msra.mxu0 %v1749
        %2476 = vmatprep.subr.bf16.mxu0 %v1762
        %2477 = vmatpush1.bf16.msra.mxu0 %v1761
        %2478 = vmatprep.subr.bf16.mxu0 %v1774
        %2479 = vmatpush1.bf16.msra.mxu0 %v1773
        %2480 = vmatprep.subr.bf16.mxu0 %v1786
        %2481 = vmatpush1.bf16.msra.mxu0 %v1785
        %2482 = vmatprep.subr.bf16.mxu0 %v1798
        %2483 = vmatpush1.bf16.msra.mxu0 %v1797
        %2484 = vmatprep.subr.bf16.mxu0 %v1810
        %2485 = vmatpush1.bf16.msra.mxu0 %v1809
        %2486 = vmatprep.subr.bf16.mxu0 0
        %2487 = vmatpush1.bf16.msra.mxu0 0
        %2488 = vmatprep.subr.bf16.mxu0 0
        %2489 = vmatpush1.bf16.msra.mxu0 0
        %2490 = vmatprep.subr.bf16.mxu0 0
        %2491 = vmatpush1.bf16.msra.mxu0 0
        %2492 = vmatprep.subr.bf16.mxu0 0
        %2493 = vmatpush1.bf16.msra.mxu0 0
        %2494 = vmatprep.subr.bf16.mxu0 0
        %2495 = vmatpush1.bf16.msra.mxu0 0
        %2496 = vmatprep.subr.bf16.mxu0 0
        %2497 = vmatpush1.bf16.msra.mxu0 0
        %2498 = vmatprep.subr.bf16.mxu0 0
        %2499 = vmatpush1.bf16.msra.mxu0 0
        %2500 = vmatprep.subr.bf16.mxu0 0
        %2501 = vmatpush1.bf16.msra.mxu0 0
        %2502 = vmatprep.mubr.bf16.mxu0 0
        %2503 = vmatmul.mubr.bf16.gmra.mrb[0].mxu0 %v657
        %v2504 = vpop.f32.mrb[0].mxu0
        %v2505 = vadd.f32 %v2464, %v2504
        %v2506 = vpop.f32.mrb[0].mxu0
        %v2507 = vadd.f32 %v2466, %v2506
        %v2508 = vpop.f32.mrb[0].mxu0
        %v2509 = vpop.f32.mrb[0].mxu0
        %2510 = vdwg.mxu0
        %2511 = vmatprep.subr.bf16.mxu0 %v1536
        %2512 = vmatpush1.bf16.msra.mxu0 %v1535
        %2513 = vmatprep.subr.bf16.mxu0 %v1548
        %2514 = vmatpush1.bf16.msra.mxu0 %v1547
        %2515 = vmatprep.subr.bf16.mxu0 %v1560
        %2516 = vmatpush1.bf16.msra.mxu0 %v1559
        %2517 = vmatprep.subr.bf16.mxu0 %v1572
        %2518 = vmatpush1.bf16.msra.mxu0 %v1571
        %2519 = vmatprep.subr.bf16.mxu0 %v1584
        %2520 = vmatpush1.bf16.msra.mxu0 %v1583
        %2521 = vmatprep.subr.bf16.mxu0 %v1596
        %2522 = vmatpush1.bf16.msra.mxu0 %v1595
        %2523 = vmatprep.subr.bf16.mxu0 %v1608
        %2524 = vmatpush1.bf16.msra.mxu0 %v1607
        %2525 = vmatprep.subr.bf16.mxu0 %v1620
        %2526 = vmatpush1.bf16.msra.mxu0 %v1619
        %2527 = vmatprep.subr.bf16.mxu0 %v1632
        %2528 = vmatpush1.bf16.msra.mxu0 %v1631
        %2529 = vmatprep.subr.bf16.mxu0 %v1644
        %2530 = vmatpush1.bf16.msra.mxu0 %v1643
        %2531 = vmatprep.subr.bf16.mxu0 %v1656
        %2532 = vmatpush1.bf16.msra.mxu0 %v1655
        %2533 = vmatprep.subr.bf16.mxu0 %v1668
        %2534 = vmatpush1.bf16.msra.mxu0 %v1667
        %2535 = vmatprep.subr.bf16.mxu0 %v1680
        %2536 = vmatpush1.bf16.msra.mxu0 %v1679
        %2537 = vmatprep.subr.bf16.mxu0 %v1692
        %2538 = vmatpush1.bf16.msra.mxu0 %v1691
        %2539 = vmatprep.subr.bf16.mxu0 %v1704
        %2540 = vmatpush1.bf16.msra.mxu0 %v1703
        %2541 = vmatprep.subr.bf16.mxu0 %v1716
        %2542 = vmatpush1.bf16.msra.mxu0 %v1715
        %2543 = vmatprep.mubr.bf16.mxu0 %v656
        %2544 = vmatmul.mubr.bf16.gmra.mrb[0].mxu0 %v655
        %v2545 = vpop.f32.mrb[0].mxu0
        %v2546 = vadd.f32 %v633, %v2545
        %v2547 = vpop.f32.mrb[0].mxu0
        %v2548 = vadd.f32 %v637, %v2547
        %v2549 = vpop.f32.mrb[0].mxu0
        %v2550 = vpop.f32.mrb[0].mxu0
        %2551 = vdwg.mxu0
        %2552 = vmatprep.subr.bf16.mxu0 %v1728
        %2553 = vmatpush1.bf16.msra.mxu0 %v1727
        %2554 = vmatprep.subr.bf16.mxu0 %v1740
        %2555 = vmatpush1.bf16.msra.mxu0 %v1739
        %2556 = vmatprep.subr.bf16.mxu0 %v1752
        %2557 = vmatpush1.bf16.msra.mxu0 %v1751
        %2558 = vmatprep.subr.bf16.mxu0 %v1764
        %2559 = vmatpush1.bf16.msra.mxu0 %v1763
        %2560 = vmatprep.subr.bf16.mxu0 %v1776
        %2561 = vmatpush1.bf16.msra.mxu0 %v1775
        %2562 = vmatprep.subr.bf16.mxu0 %v1788
        %2563 = vmatpush1.bf16.msra.mxu0 %v1787
        %2564 = vmatprep.subr.bf16.mxu0 %v1800
        %2565 = vmatpush1.bf16.msra.mxu0 %v1799
        %2566 = vmatprep.subr.bf16.mxu0 %v1812
        %2567 = vmatpush1.bf16.msra.mxu0 %v1811
        %2568 = vmatprep.subr.bf16.mxu0 0
        %2569 = vmatpush1.bf16.msra.mxu0 0
        %2570 = vmatprep.subr.bf16.mxu0 0
        %2571 = vmatpush1.bf16.msra.mxu0 0
        %2572 = vmatprep.subr.bf16.mxu0 0
        %2573 = vmatpush1.bf16.msra.mxu0 0
        %2574 = vmatprep.subr.bf16.mxu0 0
        %2575 = vmatpush1.bf16.msra.mxu0 0
        %2576 = vmatprep.subr.bf16.mxu0 0
        %2577 = vmatpush1.bf16.msra.mxu0 0
        %2578 = vmatprep.subr.bf16.mxu0 0
        %2579 = vmatpush1.bf16.msra.mxu0 0
        %2580 = vmatprep.subr.bf16.mxu0 0
        %2581 = vmatpush1.bf16.msra.mxu0 0
        %2582 = vmatprep.subr.bf16.mxu0 0
        %2583 = vmatpush1.bf16.msra.mxu0 0
        %2584 = vmatprep.mubr.bf16.mxu0 0
        %2585 = vmatmul.mubr.bf16.gmra.mrb[0].mxu0 %v657
        %v2586 = vpop.f32.mrb[0].mxu0
        %v2587 = vadd.f32 %v2546, %v2586
        %v2588 = vpop.f32.mrb[0].mxu0
        %v2589 = vadd.f32 %v2548, %v2588
        %v2590 = vpop.f32.mrb[0].mxu0
        %v2591 = vpop.f32.mrb[0].mxu0
        %2592 = vdwg.mxu0
        %v2593 = vmax.f32 %v2177, 0.0
        %v2594 = vmax.f32 %v2179, 0.0
        %v2595 = vmax.f32 %v2259, 0.0
        %v2596 = vmax.f32 %v2261, 0.0
        %v2597 = vmax.f32 %v2341, 0.0
        %v2598 = vmax.f32 %v2343, 0.0
        %v2599 = vmax.f32 %v2423, 0.0
        %v2600 = vmax.f32 %v2425, 0.0
        %v2601 = vmax.f32 %v2505, 0.0
        %v2602 = vmax.f32 %v2507, 0.0
        %v2603 = vmax.f32 %v2587, 0.0
        %v2604 = vmax.f32 %v2589, 0.0
        %v2605 = vpack.c.bf16 %v2593, %v2593
        %v2606 = vpack.c.bf16 %v2594, %v2594
        %v2607 = vpack.c.bf16 %v2595, %v2595
        %v2608 = vpack.c.bf16 %v2596, %v2596
        %v2609 = vpack.c.bf16 %v2597, %v2597
        %v2610 = vpack.c.bf16 %v2598, %v2598
        %v2611 = vpack.c.bf16 %v2599, %v2599
        %v2612 = vpack.c.bf16 %v2600, %v2600
        %v2613 = vpack.c.bf16 %v2601, %v2601
        %v2614 = vpack.c.bf16 %v2602, %v2602
        %v2615 = vpack.c.bf16 %v2603, %v2603
        %v2616 = vpack.c.bf16 %v2604, %v2604
        %v2617 = vld [vmem:[#allocation8] sm:$0xff]
        %v2618 = vld [vmem:[#allocation8 + $0x8] sm:$0xf]
        %v2619 = vld [vmem:[#allocation8 + $0xc] sm:$0xff]
        %v2620 = vld [vmem:[#allocation8 + $0x14] sm:$0xf]
        %v2621 = vld [vmem:[#allocation8 + $0x18] sm:$0xff]
        %v2622 = vld [vmem:[#allocation8 + $0x20] sm:$0xf]
        %v2623 = vld [vmem:[#allocation8 + $0x24] sm:$0xff]
        %v2624 = vld [vmem:[#allocation8 + $0x2c] sm:$0xf]
        %v2625 = vld [vmem:[#allocation8 + $0x30] sm:$0xff]
        %v2626 = vld [vmem:[#allocation8 + $0x38] sm:$0xf]
        %v2627 = vld [vmem:[#allocation8 + $0x3c] sm:$0xff]
        %v2628 = vld [vmem:[#allocation8 + $0x44] sm:$0xf]
        %v2629 = vld [vmem:[#allocation8 + $0x48] sm:$0xff]
        %v2630 = vld [vmem:[#allocation8 + $0x50] sm:$0xf]
        %v2631 = vld [vmem:[#allocation8 + $0x54] sm:$0xff]
        %v2632 = vld [vmem:[#allocation8 + $0x5c] sm:$0xf]
        %v2633 = vld [vmem:[#allocation8 + $0x60] sm:$0xff]
        %v2634 = vld [vmem:[#allocation8 + $0x68] sm:$0xf]
        %v2635 = vld [vmem:[#allocation8 + $0x6c] sm:$0xff]
        %v2636 = vld [vmem:[#allocation8 + $0x74] sm:$0xf]
        %v2637 = vld [vmem:[#allocation8 + $0x78] sm:$0xff]
        %v2638 = vld [vmem:[#allocation8 + $0x80] sm:$0xf]
        %v2639 = vld [vmem:[#allocation8 + $0x84] sm:$0xff]
        %v2640 = vld [vmem:[#allocation8 + $0x8c] sm:$0xf]
        %v2641 = vld [vmem:[#allocation8 + $0x90] sm:$0xff]
        %v2642 = vld [vmem:[#allocation8 + $0x98] sm:$0xf]
        %v2643 = vld [vmem:[#allocation8 + $0x9c] sm:$0xff]
        %v2644 = vld [vmem:[#allocation8 + $0xa4] sm:$0xf]
        %v2645 = vld [vmem:[#allocation8 + $0xa8] sm:$0xff]
        %v2646 = vld [vmem:[#allocation8 + $0xb0] sm:$0xf]
        %v2647 = vld [vmem:[#allocation8 + $0xb4] sm:$0xff]
        %v2648 = vld [vmem:[#allocation8 + $0xbc] sm:$0xf]
        %v2649 = vld [vmem:[#allocation8 + $0xc0] sm:$0xff]
        %v2650 = vld [vmem:[#allocation8 + $0xc8] sm:$0xf]
        %v2651 = vld [vmem:[#allocation8 + $0xcc] sm:$0xff]
        %v2652 = vld [vmem:[#allocation8 + $0xd4] sm:$0xf]
        %v2653 = vld [vmem:[#allocation8 + $0xd8] sm:$0xff]
        %v2654 = vld [vmem:[#allocation8 + $0xe0] sm:$0xf]
        %v2655 = vld [vmem:[#allocation8 + $0xe4] sm:$0xff]
        %v2656 = vld [vmem:[#allocation8 + $0xec] sm:$0xf]
        %v2657 = vld [vmem:[#allocation8 + $0xf0] sm:$0xff]
        %v2658 = vld [vmem:[#allocation8 + $0xf8] sm:$0xf]
        %v2659 = vld [vmem:[#allocation8 + $0xfc] sm:$0xff]
        %v2660 = vld [vmem:[#allocation8 + $0x104] sm:$0xf]
        %v2661 = vld [vmem:[#allocation8 + $0x108] sm:$0xff]
        %v2662 = vld [vmem:[#allocation8 + $0x110] sm:$0xf]
        %v2663 = vld [vmem:[#allocation8 + $0x114] sm:$0xff]
        %v2664 = vld [vmem:[#allocation8 + $0x11c] sm:$0xf]
        %v2665 = vld [vmem:[#allocation8 + $0x120] sm:$0xff]
        %v2666 = vld [vmem:[#allocation8 + $0x128] sm:$0xf]
        %v2667 = vld [vmem:[#allocation8 + $0x12c] sm:$0xff]
        %v2668 = vld [vmem:[#allocation8 + $0x134] sm:$0xf]
        %v2669 = vld [vmem:[#allocation8 + $0x138] sm:$0xff]
        %v2670 = vld [vmem:[#allocation8 + $0x140] sm:$0xf]
        %v2671 = vld [vmem:[#allocation8 + $0x144] sm:$0xff]
        %v2672 = vld [vmem:[#allocation8 + $0x14c] sm:$0xf]
        %v2673 = vld [vmem:[#allocation8 + $0x150] sm:$0xff]
        %v2674 = vld [vmem:[#allocation8 + $0x158] sm:$0xf]
        %v2675 = vld [vmem:[#allocation8 + $0x15c] sm:$0xff]
        %v2676 = vld [vmem:[#allocation8 + $0x164] sm:$0xf]
        %v2677 = vld [vmem:[#allocation8 + $0x168] sm:$0xff]
        %v2678 = vld [vmem:[#allocation8 + $0x170] sm:$0xf]
        %v2679 = vld [vmem:[#allocation8 + $0x174] sm:$0xff]
        %v2680 = vld [vmem:[#allocation8 + $0x17c] sm:$0xf]
        %v2681 = vld [vmem:[#allocation8 + $0x180] sm:$0xff]
        %v2682 = vld [vmem:[#allocation8 + $0x188] sm:$0xf]
        %v2683 = vld [vmem:[#allocation8 + $0x18c] sm:$0xff]
        %v2684 = vld [vmem:[#allocation8 + $0x194] sm:$0xf]
        %v2685 = vld [vmem:[#allocation8 + $0x198] sm:$0xff]
        %v2686 = vld [vmem:[#allocation8 + $0x1a0] sm:$0xf]
        %v2687 = vld [vmem:[#allocation8 + $0x1a4] sm:$0xff]
        %v2688 = vld [vmem:[#allocation8 + $0x1ac] sm:$0xf]
        %v2689 = vld [vmem:[#allocation8 + $0x1b0] sm:$0xff]
        %v2690 = vld [vmem:[#allocation8 + $0x1b8] sm:$0xf]
        %v2691 = vld [vmem:[#allocation8 + $0x1bc] sm:$0xff]
        %v2692 = vld [vmem:[#allocation8 + $0x1c4] sm:$0xf]
        %v2693 = vld [vmem:[#allocation8 + $0x1c8] sm:$0xff]
        %v2694 = vld [vmem:[#allocation8 + $0x1d0] sm:$0xf]
        %v2695 = vld [vmem:[#allocation8 + $0x1d4] sm:$0xff]
        %v2696 = vld [vmem:[#allocation8 + $0x1dc] sm:$0xf]
        %v2697 = vld [vmem:[#allocation8 + $0x1e0] sm:$0xff]
        %v2698 = vld [vmem:[#allocation8 + $0x1e8] sm:$0xf]
        %v2699 = vld [vmem:[#allocation8 + $0x1ec] sm:$0xff]
        %v2700 = vld [vmem:[#allocation8 + $0x1f4] sm:$0xf]
        %v2701 = vld [vmem:[#allocation8 + $0x1f8] sm:$0xff]
        %v2702 = vld [vmem:[#allocation8 + $0x200] sm:$0xf]
        %v2703 = vld [vmem:[#allocation8 + $0x204] sm:$0xff]
        %v2704 = vld [vmem:[#allocation8 + $0x20c] sm:$0xf]
        %v2705 = vld [vmem:[#allocation8 + $0x210] sm:$0xff]
        %v2706 = vld [vmem:[#allocation8 + $0x218] sm:$0xf]
        %v2707 = vld [vmem:[#allocation8 + $0x21c] sm:$0xff]
        %v2708 = vld [vmem:[#allocation8 + $0x224] sm:$0xf]
        %v2709 = vld [vmem:[#allocation8 + $0x228] sm:$0xff]
        %v2710 = vld [vmem:[#allocation8 + $0x230] sm:$0xf]
        %v2711 = vld [vmem:[#allocation8 + $0x234] sm:$0xff]
        %v2712 = vld [vmem:[#allocation8 + $0x23c] sm:$0xf]
        %v2713 = vld [vmem:[#allocation8 + $0x240] sm:$0xff]
        %v2714 = vld [vmem:[#allocation8 + $0x248] sm:$0xf]
        %v2715 = vld [vmem:[#allocation8 + $0x24c] sm:$0xff]
        %v2716 = vld [vmem:[#allocation8 + $0x254] sm:$0xf]
        %v2717 = vld [vmem:[#allocation8 + $0x258] sm:$0xff]
        %v2718 = vld [vmem:[#allocation8 + $0x260] sm:$0xf]
        %v2719 = vld [vmem:[#allocation8 + $0x264] sm:$0xff]
        %v2720 = vld [vmem:[#allocation8 + $0x26c] sm:$0xf]
        %v2721 = vld [vmem:[#allocation8 + $0x270] sm:$0xff]
        %v2722 = vld [vmem:[#allocation8 + $0x278] sm:$0xf]
        %v2723 = vld [vmem:[#allocation8 + $0x27c] sm:$0xff]
        %v2724 = vld [vmem:[#allocation8 + $0x284] sm:$0xf]
        %v2725 = vld [vmem:[#allocation8 + $0x288] sm:$0xff]
        %v2726 = vld [vmem:[#allocation8 + $0x290] sm:$0xf]
        %v2727 = vld [vmem:[#allocation8 + $0x294] sm:$0xff]
        %v2728 = vld [vmem:[#allocation8 + $0x29c] sm:$0xf]
        %v2729 = vld [vmem:[#allocation8 + $0x2a0] sm:$0xff]
        %v2730 = vld [vmem:[#allocation8 + $0x2a8] sm:$0xf]
        %v2731 = vld [vmem:[#allocation8 + $0x2ac] sm:$0xff]
        %v2732 = vld [vmem:[#allocation8 + $0x2b4] sm:$0xf]
        %v2733 = vld [vmem:[#allocation8 + $0x2b8] sm:$0xff]
        %v2734 = vld [vmem:[#allocation8 + $0x2c0] sm:$0xf]
        %v2735 = vld [vmem:[#allocation8 + $0x2c4] sm:$0xff]
        %v2736 = vld [vmem:[#allocation8 + $0x2cc] sm:$0xf]
        %v2737 = vld [vmem:[#allocation8 + $0x2d0] sm:$0xff]
        %v2738 = vld [vmem:[#allocation8 + $0x2d8] sm:$0xf]
        %v2739 = vld [vmem:[#allocation8 + $0x2dc] sm:$0xff]
        %v2740 = vld [vmem:[#allocation8 + $0x2e4] sm:$0xf]
        %v2741 = vld [vmem:[#allocation8 + $0x2e8] sm:$0xff]
        %v2742 = vld [vmem:[#allocation8 + $0x2f0] sm:$0xf]
        %v2743 = vld [vmem:[#allocation8 + $0x2f4] sm:$0xff]
        %v2744 = vld [vmem:[#allocation8 + $0x2fc] sm:$0xf]
        %v2745 = vld [vmem:[#allocation8 + $0x300] sm:$0xff]
        %v2746 = vld [vmem:[#allocation8 + $0x308] sm:$0xf]
        %v2747 = vld [vmem:[#allocation8 + $0x30c] sm:$0xff]
        %v2748 = vld [vmem:[#allocation8 + $0x314] sm:$0xf]
        %v2749 = vld [vmem:[#allocation8 + $0x318] sm:$0xff]
        %v2750 = vld [vmem:[#allocation8 + $0x320] sm:$0xf]
        %v2751 = vld [vmem:[#allocation8 + $0x324] sm:$0xff]
        %v2752 = vld [vmem:[#allocation8 + $0x32c] sm:$0xf]
        %v2753 = vld [vmem:[#allocation8 + $0x330] sm:$0xff]
        %v2754 = vld [vmem:[#allocation8 + $0x338] sm:$0xf]
        %v2755 = vld [vmem:[#allocation8 + $0x33c] sm:$0xff]
        %v2756 = vld [vmem:[#allocation8 + $0x344] sm:$0xf]
        %v2757 = vld [vmem:[#allocation8 + $0x348] sm:$0xff]
        %v2758 = vld [vmem:[#allocation8 + $0x350] sm:$0xf]
        %v2759 = vld [vmem:[#allocation8 + $0x354] sm:$0xff]
        %v2760 = vld [vmem:[#allocation8 + $0x35c] sm:$0xf]
        %v2761 = vld [vmem:[#allocation8 + $0x360] sm:$0xff]
        %v2762 = vld [vmem:[#allocation8 + $0x368] sm:$0xf]
        %v2763 = vld [vmem:[#allocation8 + $0x36c] sm:$0xff]
        %v2764 = vld [vmem:[#allocation8 + $0x374] sm:$0xf]
        %v2765 = vld [vmem:[#allocation8 + $0x378] sm:$0xff]
        %v2766 = vld [vmem:[#allocation8 + $0x380] sm:$0xf]
        %v2767 = vld [vmem:[#allocation8 + $0x384] sm:$0xff]
        %v2768 = vld [vmem:[#allocation8 + $0x38c] sm:$0xf]
        %v2769 = vld [vmem:[#allocation8 + $0x390] sm:$0xff]
        %v2770 = vld [vmem:[#allocation8 + $0x398] sm:$0xf]
        %v2771 = vld [vmem:[#allocation8 + $0x39c] sm:$0xff]
        %v2772 = vld [vmem:[#allocation8 + $0x3a4] sm:$0xf]
        %v2773 = vld [vmem:[#allocation8 + $0x3a8] sm:$0xff]
        %v2774 = vld [vmem:[#allocation8 + $0x3b0] sm:$0xf]
        %v2775 = vld [vmem:[#allocation8 + $0x3b4] sm:$0xff]
        %v2776 = vld [vmem:[#allocation8 + $0x3bc] sm:$0xf]
        %v2777 = vld [vmem:[#allocation8 + $0x3c0] sm:$0xff]
        %v2778 = vld [vmem:[#allocation8 + $0x3c8] sm:$0xf]
        %v2779 = vld [vmem:[#allocation8 + $0x3cc] sm:$0xff]
        %v2780 = vld [vmem:[#allocation8 + $0x3d4] sm:$0xf]
        %v2781 = vld [vmem:[#allocation8 + $0x3d8] sm:$0xff]
        %v2782 = vld [vmem:[#allocation8 + $0x3e0] sm:$0xf]
        %v2783 = vld [vmem:[#allocation8 + $0x3e4] sm:$0xff]
        %v2784 = vld [vmem:[#allocation8 + $0x3ec] sm:$0xf]
        %v2785 = vld [vmem:[#allocation8 + $0x3f0] sm:$0xff]
        %v2786 = vld [vmem:[#allocation8 + $0x3f8] sm:$0xf]
        %v2787 = vld [vmem:[#allocation8 + $0x3fc] sm:$0xff]
        %v2788 = vld [vmem:[#allocation8 + $0x404] sm:$0xf]
        %v2789 = vld [vmem:[#allocation8 + $0x408] sm:$0xff]
        %v2790 = vld [vmem:[#allocation8 + $0x410] sm:$0xf]
        %v2791 = vld [vmem:[#allocation8 + $0x414] sm:$0xff]
        %v2792 = vld [vmem:[#allocation8 + $0x41c] sm:$0xf]
        %v2793 = vld [vmem:[#allocation8 + $0x420] sm:$0xff]
        %v2794 = vld [vmem:[#allocation8 + $0x428] sm:$0xf]
        %v2795 = vld [vmem:[#allocation8 + $0x42c] sm:$0xff]
        %v2796 = vld [vmem:[#allocation8 + $0x434] sm:$0xf]
        %v2797 = vld [vmem:[#allocation8 + $0x438] sm:$0xff]
        %v2798 = vld [vmem:[#allocation8 + $0x440] sm:$0xf]
        %v2799 = vld [vmem:[#allocation8 + $0x444] sm:$0xff]
        %v2800 = vld [vmem:[#allocation8 + $0x44c] sm:$0xf]
        %v2801 = vld [vmem:[#allocation8 + $0x450] sm:$0xff]
        %v2802 = vld [vmem:[#allocation8 + $0x458] sm:$0xf]
        %v2803 = vld [vmem:[#allocation8 + $0x45c] sm:$0xff]
        %v2804 = vld [vmem:[#allocation8 + $0x464] sm:$0xf]
        %v2805 = vld [vmem:[#allocation8 + $0x468] sm:$0xff]
        %v2806 = vld [vmem:[#allocation8 + $0x470] sm:$0xf]
        %v2807 = vld [vmem:[#allocation8 + $0x474] sm:$0xff]
        %v2808 = vld [vmem:[#allocation8 + $0x47c] sm:$0xf]
        %v2809 = vld [vmem:[#allocation8 + $0x480] sm:$0xff]
        %v2810 = vld [vmem:[#allocation8 + $0x488] sm:$0xf]
        %v2811 = vld [vmem:[#allocation8 + $0x48c] sm:$0xff]
        %v2812 = vld [vmem:[#allocation8 + $0x494] sm:$0xf]
        %v2813 = vld [vmem:[#allocation8 + $0x498] sm:$0xff]
        %v2814 = vld [vmem:[#allocation8 + $0x4a0] sm:$0xf]
        %v2815 = vld [vmem:[#allocation8 + $0x4a4] sm:$0xff]
        %v2816 = vld [vmem:[#allocation8 + $0x4ac] sm:$0xf]
        %v2817 = vld [vmem:[#allocation8 + $0x4b0] sm:$0xff]
        %v2818 = vld [vmem:[#allocation8 + $0x4b8] sm:$0xf]
        %v2819 = vld [vmem:[#allocation8 + $0x4bc] sm:$0xff]
        %v2820 = vld [vmem:[#allocation8 + $0x4c4] sm:$0xf]
        %v2821 = vld [vmem:[#allocation8 + $0x4c8] sm:$0xff]
        %v2822 = vld [vmem:[#allocation8 + $0x4d0] sm:$0xf]
        %v2823 = vld [vmem:[#allocation8 + $0x4d4] sm:$0xff]
        %v2824 = vld [vmem:[#allocation8 + $0x4dc] sm:$0xf]
        %v2825 = vld [vmem:[#allocation8 + $0x4e0] sm:$0xff]
        %v2826 = vld [vmem:[#allocation8 + $0x4e8] sm:$0xf]
        %v2827 = vld [vmem:[#allocation8 + $0x4ec] sm:$0xff]
        %v2828 = vld [vmem:[#allocation8 + $0x4f4] sm:$0xf]
        %v2829 = vld [vmem:[#allocation8 + $0x4f8] sm:$0xff]
        %v2830 = vld [vmem:[#allocation8 + $0x500] sm:$0xf]
        %v2831 = vld [vmem:[#allocation8 + $0x504] sm:$0xff]
        %v2832 = vld [vmem:[#allocation8 + $0x50c] sm:$0xf]
        %v2833 = vld [vmem:[#allocation8 + $0x510] sm:$0xff]
        %v2834 = vld [vmem:[#allocation8 + $0x518] sm:$0xf]
        %v2835 = vld [vmem:[#allocation8 + $0x51c] sm:$0xff]
        %v2836 = vld [vmem:[#allocation8 + $0x524] sm:$0xf]
        %v2837 = vld [vmem:[#allocation8 + $0x528] sm:$0xff]
        %v2838 = vld [vmem:[#allocation8 + $0x530] sm:$0xf]
        %v2839 = vld [vmem:[#allocation8 + $0x534] sm:$0xff]
        %v2840 = vld [vmem:[#allocation8 + $0x53c] sm:$0xf]
        %v2841 = vld [vmem:[#allocation8 + $0x540] sm:$0xff]
        %v2842 = vld [vmem:[#allocation8 + $0x548] sm:$0xf]
        %v2843 = vld [vmem:[#allocation8 + $0x54c] sm:$0xff]
        %v2844 = vld [vmem:[#allocation8 + $0x554] sm:$0xf]
        %v2845 = vld [vmem:[#allocation8 + $0x558] sm:$0xff]
        %v2846 = vld [vmem:[#allocation8 + $0x560] sm:$0xf]
        %v2847 = vld [vmem:[#allocation8 + $0x564] sm:$0xff]
        %v2848 = vld [vmem:[#allocation8 + $0x56c] sm:$0xf]
        %v2849 = vld [vmem:[#allocation8 + $0x570] sm:$0xff]
        %v2850 = vld [vmem:[#allocation8 + $0x578] sm:$0xf]
        %v2851 = vld [vmem:[#allocation8 + $0x57c] sm:$0xff]
        %v2852 = vld [vmem:[#allocation8 + $0x584] sm:$0xf]
        %v2853 = vld [vmem:[#allocation8 + $0x588] sm:$0xff]
        %v2854 = vld [vmem:[#allocation8 + $0x590] sm:$0xf]
        %v2855 = vld [vmem:[#allocation8 + $0x594] sm:$0xff]
        %v2856 = vld [vmem:[#allocation8 + $0x59c] sm:$0xf]
        %v2857 = vld [vmem:[#allocation8 + $0x5a0] sm:$0xff]
        %v2858 = vld [vmem:[#allocation8 + $0x5a8] sm:$0xf]
        %v2859 = vld [vmem:[#allocation8 + $0x5ac] sm:$0xff]
        %v2860 = vld [vmem:[#allocation8 + $0x5b4] sm:$0xf]
        %v2861 = vld [vmem:[#allocation8 + $0x5b8] sm:$0xff]
        %v2862 = vld [vmem:[#allocation8 + $0x5c0] sm:$0xf]
        %v2863 = vld [vmem:[#allocation8 + $0x5c4] sm:$0xff]
        %v2864 = vld [vmem:[#allocation8 + $0x5cc] sm:$0xf]
        %v2865 = vld [vmem:[#allocation8 + $0x5d0] sm:$0xff]
        %v2866 = vld [vmem:[#allocation8 + $0x5d8] sm:$0xf]
        %v2867 = vld [vmem:[#allocation8 + $0x5dc] sm:$0xff]
        %v2868 = vld [vmem:[#allocation8 + $0x5e4] sm:$0xf]
        %v2869 = vld [vmem:[#allocation8 + $0x5e8] sm:$0xff]
        %v2870 = vld [vmem:[#allocation8 + $0x5f0] sm:$0xf]
        %v2871 = vld [vmem:[#allocation8 + $0x5f4] sm:$0xff]
        %v2872 = vld [vmem:[#allocation8 + $0x5fc] sm:$0xf]
        %v2873 = vld [vmem:[#allocation8 + $0x600] sm:$0xff]
        %v2874 = vld [vmem:[#allocation8 + $0x608] sm:$0xf]
        %v2875 = vld [vmem:[#allocation8 + $0x60c] sm:$0xff]
        %v2876 = vld [vmem:[#allocation8 + $0x614] sm:$0xf]
        %v2877 = vld [vmem:[#allocation8 + $0x618] sm:$0xff]
        %v2878 = vld [vmem:[#allocation8 + $0x620] sm:$0xf]
        %v2879 = vld [vmem:[#allocation8 + $0x624] sm:$0xff]
        %v2880 = vld [vmem:[#allocation8 + $0x62c] sm:$0xf]
        %v2881 = vld [vmem:[#allocation8 + $0x630] sm:$0xff]
        %v2882 = vld [vmem:[#allocation8 + $0x638] sm:$0xf]
        %v2883 = vld [vmem:[#allocation8 + $0x63c] sm:$0xff]
        %v2884 = vld [vmem:[#allocation8 + $0x644] sm:$0xf]
        %v2885 = vld [vmem:[#allocation8 + $0x648] sm:$0xff]
        %v2886 = vld [vmem:[#allocation8 + $0x650] sm:$0xf]
        %v2887 = vld [vmem:[#allocation8 + $0x654] sm:$0xff]
        %v2888 = vld [vmem:[#allocation8 + $0x65c] sm:$0xf]
        %v2889 = vld [vmem:[#allocation8 + $0x660] sm:$0xff]
        %v2890 = vld [vmem:[#allocation8 + $0x668] sm:$0xf]
        %v2891 = vld [vmem:[#allocation8 + $0x66c] sm:$0xff]
        %v2892 = vld [vmem:[#allocation8 + $0x674] sm:$0xf]
        %v2893 = vld [vmem:[#allocation8 + $0x678] sm:$0xff]
        %v2894 = vld [vmem:[#allocation8 + $0x680] sm:$0xf]
        %v2895 = vld [vmem:[#allocation8 + $0x684] sm:$0xff]
        %v2896 = vld [vmem:[#allocation8 + $0x68c] sm:$0xf]
        %v2897 = vld [vmem:[#allocation8 + $0x690] sm:$0xff]
        %v2898 = vld [vmem:[#allocation8 + $0x698] sm:$0xf]
        %v2899 = vld [vmem:[#allocation8 + $0x69c] sm:$0xff]
        %v2900 = vld [vmem:[#allocation8 + $0x6a4] sm:$0xf]
        %v2901 = vld [vmem:[#allocation8 + $0x6a8] sm:$0xff]
        %v2902 = vld [vmem:[#allocation8 + $0x6b0] sm:$0xf]
        %v2903 = vld [vmem:[#allocation8 + $0x6b4] sm:$0xff]
        %v2904 = vld [vmem:[#allocation8 + $0x6bc] sm:$0xf]
        %v2905 = vld [vmem:[#allocation8 + $0x6c0] sm:$0xff]
        %v2906 = vld [vmem:[#allocation8 + $0x6c8] sm:$0xf]
        %v2907 = vld [vmem:[#allocation8 + $0x6cc] sm:$0xff]
        %v2908 = vld [vmem:[#allocation8 + $0x6d4] sm:$0xf]
        %v2909 = vld [vmem:[#allocation8 + $0x6d8] sm:$0xff]
        %v2910 = vld [vmem:[#allocation8 + $0x6e0] sm:$0xf]
        %v2911 = vld [vmem:[#allocation8 + $0x6e4] sm:$0xff]
        %v2912 = vld [vmem:[#allocation8 + $0x6ec] sm:$0xf]
        %v2913 = vld [vmem:[#allocation8 + $0x6f0] sm:$0xff]
        %v2914 = vld [vmem:[#allocation8 + $0x6f8] sm:$0xf]
        %v2915 = vld [vmem:[#allocation8 + $0x6fc] sm:$0xff]
        %v2916 = vld [vmem:[#allocation8 + $0x704] sm:$0xf]
        %v2917 = vld [vmem:[#allocation8 + $0x708] sm:$0xff]
        %v2918 = vld [vmem:[#allocation8 + $0x710] sm:$0xf]
        %v2919 = vld [vmem:[#allocation8 + $0x714] sm:$0xff]
        %v2920 = vld [vmem:[#allocation8 + $0x71c] sm:$0xf]
        %v2921 = vld [vmem:[#allocation8 + $0x720] sm:$0xff]
        %v2922 = vld [vmem:[#allocation8 + $0x728] sm:$0xf]
        %v2923 = vld [vmem:[#allocation8 + $0x72c] sm:$0xff]
        %v2924 = vld [vmem:[#allocation8 + $0x734] sm:$0xf]
        %v2925 = vld [vmem:[#allocation8 + $0x738] sm:$0xff]
        %v2926 = vld [vmem:[#allocation8 + $0x740] sm:$0xf]
        %v2927 = vld [vmem:[#allocation8 + $0x744] sm:$0xff]
        %v2928 = vld [vmem:[#allocation8 + $0x74c] sm:$0xf]
        %v2929 = vld [vmem:[#allocation8 + $0x750] sm:$0xff]
        %v2930 = vld [vmem:[#allocation8 + $0x758] sm:$0xf]
        %v2931 = vld [vmem:[#allocation8 + $0x75c] sm:$0xff]
        %v2932 = vld [vmem:[#allocation8 + $0x764] sm:$0xf]
        %v2933 = vld [vmem:[#allocation8 + $0x768] sm:$0xff]
        %v2934 = vld [vmem:[#allocation8 + $0x770] sm:$0xf]
        %v2935 = vld [vmem:[#allocation8 + $0x774] sm:$0xff]
        %v2936 = vld [vmem:[#allocation8 + $0x77c] sm:$0xf]
        %v2937 = vld [vmem:[#allocation8 + $0x780] sm:$0xff]
        %v2938 = vld [vmem:[#allocation8 + $0x788] sm:$0xf]
        %v2939 = vld [vmem:[#allocation8 + $0x78c] sm:$0xff]
        %v2940 = vld [vmem:[#allocation8 + $0x794] sm:$0xf]
        %v2941 = vld [vmem:[#allocation8 + $0x798] sm:$0xff]
        %v2942 = vld [vmem:[#allocation8 + $0x7a0] sm:$0xf]
        %v2943 = vld [vmem:[#allocation8 + $0x7a4] sm:$0xff]
        %v2944 = vld [vmem:[#allocation8 + $0x7ac] sm:$0xf]
        %v2945 = vld [vmem:[#allocation8 + $0x7b0] sm:$0xff]
        %v2946 = vld [vmem:[#allocation8 + $0x7b8] sm:$0xf]
        %v2947 = vld [vmem:[#allocation8 + $0x7bc] sm:$0xff]
        %v2948 = vld [vmem:[#allocation8 + $0x7c4] sm:$0xf]
        %v2949 = vld [vmem:[#allocation8 + $0x7c8] sm:$0xff]
        %v2950 = vld [vmem:[#allocation8 + $0x7d0] sm:$0xf]
        %v2951 = vld [vmem:[#allocation8 + $0x7d4] sm:$0xff]
        %v2952 = vld [vmem:[#allocation8 + $0x7dc] sm:$0xf]
        %v2953 = vld [vmem:[#allocation8 + $0x7e0] sm:$0xff]
        %v2954 = vld [vmem:[#allocation8 + $0x7e8] sm:$0xf]
        %v2955 = vld [vmem:[#allocation8 + $0x7ec] sm:$0xff]
        %v2956 = vld [vmem:[#allocation8 + $0x7f4] sm:$0xf]
        %v2957 = vld [vmem:[#allocation8 + $0x7f8] sm:$0xff]
        %v2958 = vld [vmem:[#allocation8 + $0x800] sm:$0xf]
        %v2959 = vld [vmem:[#allocation8 + $0x804] sm:$0xff]
        %v2960 = vld [vmem:[#allocation8 + $0x80c] sm:$0xf]
        %v2961 = vld [vmem:[#allocation8 + $0x810] sm:$0xff]
        %v2962 = vld [vmem:[#allocation8 + $0x818] sm:$0xf]
        %v2963 = vld [vmem:[#allocation8 + $0x81c] sm:$0xff]
        %v2964 = vld [vmem:[#allocation8 + $0x824] sm:$0xf]
        %v2965 = vld [vmem:[#allocation8 + $0x828] sm:$0xff]
        %v2966 = vld [vmem:[#allocation8 + $0x830] sm:$0xf]
        %v2967 = vld [vmem:[#allocation8 + $0x834] sm:$0xff]
        %v2968 = vld [vmem:[#allocation8 + $0x83c] sm:$0xf]
        %v2969 = vld [vmem:[#allocation8 + $0x840] sm:$0xff]
        %v2970 = vld [vmem:[#allocation8 + $0x848] sm:$0xf]
        %v2971 = vld [vmem:[#allocation8 + $0x84c] sm:$0xff]
        %v2972 = vld [vmem:[#allocation8 + $0x854] sm:$0xf]
        %v2973 = vld [vmem:[#allocation8 + $0x858] sm:$0xff]
        %v2974 = vld [vmem:[#allocation8 + $0x860] sm:$0xf]
        %v2975 = vld [vmem:[#allocation8 + $0x864] sm:$0xff]
        %v2976 = vld [vmem:[#allocation8 + $0x86c] sm:$0xf]
        %v2977 = vld [vmem:[#allocation8 + $0x870] sm:$0xff]
        %v2978 = vld [vmem:[#allocation8 + $0x878] sm:$0xf]
        %v2979 = vld [vmem:[#allocation8 + $0x87c] sm:$0xff]
        %v2980 = vld [vmem:[#allocation8 + $0x884] sm:$0xf]
        %v2981 = vld [vmem:[#allocation8 + $0x888] sm:$0xff]
        %v2982 = vld [vmem:[#allocation8 + $0x890] sm:$0xf]
        %v2983 = vld [vmem:[#allocation8 + $0x894] sm:$0xff]
        %v2984 = vld [vmem:[#allocation8 + $0x89c] sm:$0xf]
        %v2985 = vld [vmem:[#allocation8 + $0x8a0] sm:$0xff]
        %v2986 = vld [vmem:[#allocation8 + $0x8a8] sm:$0xf]
        %v2987 = vld [vmem:[#allocation8 + $0x8ac] sm:$0xff]
        %v2988 = vld [vmem:[#allocation8 + $0x8b4] sm:$0xf]
        %v2989 = vld [vmem:[#allocation8 + $0x8b8] sm:$0xff]
        %v2990 = vld [vmem:[#allocation8 + $0x8c0] sm:$0xf]
        %v2991 = vld [vmem:[#allocation8 + $0x8c4] sm:$0xff]
        %v2992 = vld [vmem:[#allocation8 + $0x8cc] sm:$0xf]
        %v2993 = vld [vmem:[#allocation8 + $0x8d0] sm:$0xff]
        %v2994 = vld [vmem:[#allocation8 + $0x8d8] sm:$0xf]
        %v2995 = vld [vmem:[#allocation8 + $0x8dc] sm:$0xff]
        %v2996 = vld [vmem:[#allocation8 + $0x8e4] sm:$0xf]
        %v2997 = vld [vmem:[#allocation8 + $0x8e8] sm:$0xff]
        %v2998 = vld [vmem:[#allocation8 + $0x8f0] sm:$0xf]
        %v2999 = vld [vmem:[#allocation8 + $0x8f4] sm:$0xff]
        %v3000 = vld [vmem:[#allocation8 + $0x8fc] sm:$0xf]
        %v3001 = vld [vmem:[#allocation10] sm:$0x7]
        %v3003 = vlaneseq
        %v3004 = vshrl.u32 %v3003, 7
        %v3005 = vsub.s32 0, %v3004
        %v3006 = vrot.slane %v3001, %v3005
        %v3007 = vlaneseq
        %v3008 = vshrl.u32 %v3007, 7
        %v3009 = vsub.s32 1, %v3008
        %v3010 = vrot.slane %v3001, %v3009
        %v3011 = vlaneseq
        %v3012 = vshrl.u32 %v3011, 7
        %v3013 = vsub.s32 2, %v3012
        %v3014 = vrot.slane %v3001, %v3013
        %v3402 = vunpack.c.l.b16 %v2617
        %v3403 = vunpack.c.h.b16 %v2617
        %v3404 = vunpack.c.l.b16 %v2618
        %v3405 = vunpack.c.l.b16 %v2619
        %v3406 = vunpack.c.h.b16 %v2619
        %v3407 = vunpack.c.l.b16 %v2620
        %v3408 = vunpack.c.l.b16 %v2621
        %v3409 = vunpack.c.h.b16 %v2621
        %v3410 = vunpack.c.l.b16 %v2622
        %v3411 = vunpack.c.l.b16 %v2623
        %v3412 = vunpack.c.h.b16 %v2623
        %v3413 = vunpack.c.l.b16 %v2624
        %v3414 = vunpack.c.l.b16 %v2625
        %v3415 = vunpack.c.h.b16 %v2625
        %v3416 = vunpack.c.l.b16 %v2626
        %v3417 = vunpack.c.l.b16 %v2627
        %v3418 = vunpack.c.h.b16 %v2627
        %v3419 = vunpack.c.l.b16 %v2628
        %v3420 = vunpack.c.l.b16 %v2629
        %v3421 = vunpack.c.h.b16 %v2629
        %v3422 = vunpack.c.l.b16 %v2630
        %v3423 = vunpack.c.l.b16 %v2631
        %v3424 = vunpack.c.h.b16 %v2631
        %v3425 = vunpack.c.l.b16 %v2632
        %v3426 = vunpack.c.l.b16 %v2633
        %v3427 = vunpack.c.h.b16 %v2633
        %v3428 = vunpack.c.l.b16 %v2634
        %v3429 = vunpack.c.l.b16 %v2635
        %v3430 = vunpack.c.h.b16 %v2635
        %v3431 = vunpack.c.l.b16 %v2636
        %v3432 = vunpack.c.l.b16 %v2637
        %v3433 = vunpack.c.h.b16 %v2637
        %v3434 = vunpack.c.l.b16 %v2638
        %v3435 = vunpack.c.l.b16 %v2639
        %v3436 = vunpack.c.h.b16 %v2639
        %v3437 = vunpack.c.l.b16 %v2640
        %v3438 = vunpack.c.l.b16 %v2641
        %v3439 = vunpack.c.h.b16 %v2641
        %v3440 = vunpack.c.l.b16 %v2642
        %v3441 = vunpack.c.l.b16 %v2643
        %v3442 = vunpack.c.h.b16 %v2643
        %v3443 = vunpack.c.l.b16 %v2644
        %v3444 = vunpack.c.l.b16 %v2645
        %v3445 = vunpack.c.h.b16 %v2645
        %v3446 = vunpack.c.l.b16 %v2646
        %v3447 = vunpack.c.l.b16 %v2647
        %v3448 = vunpack.c.h.b16 %v2647
        %v3449 = vunpack.c.l.b16 %v2648
        %v3450 = vunpack.c.l.b16 %v2649
        %v3451 = vunpack.c.h.b16 %v2649
        %v3452 = vunpack.c.l.b16 %v2650
        %v3453 = vunpack.c.l.b16 %v2651
        %v3454 = vunpack.c.h.b16 %v2651
        %v3455 = vunpack.c.l.b16 %v2652
        %v3456 = vunpack.c.l.b16 %v2653
        %v3457 = vunpack.c.h.b16 %v2653
        %v3458 = vunpack.c.l.b16 %v2654
        %v3459 = vunpack.c.l.b16 %v2655
        %v3460 = vunpack.c.h.b16 %v2655
        %v3461 = vunpack.c.l.b16 %v2656
        %v3462 = vunpack.c.l.b16 %v2657
        %v3463 = vunpack.c.h.b16 %v2657
        %v3464 = vunpack.c.l.b16 %v2658
        %v3465 = vunpack.c.l.b16 %v2659
        %v3466 = vunpack.c.h.b16 %v2659
        %v3467 = vunpack.c.l.b16 %v2660
        %v3468 = vunpack.c.l.b16 %v2661
        %v3469 = vunpack.c.h.b16 %v2661
        %v3470 = vunpack.c.l.b16 %v2662
        %v3471 = vunpack.c.l.b16 %v2663
        %v3472 = vunpack.c.h.b16 %v2663
        %v3473 = vunpack.c.l.b16 %v2664
        %v3474 = vunpack.c.l.b16 %v2665
        %v3475 = vunpack.c.h.b16 %v2665
        %v3476 = vunpack.c.l.b16 %v2666
        %v3477 = vunpack.c.l.b16 %v2667
        %v3478 = vunpack.c.h.b16 %v2667
        %v3479 = vunpack.c.l.b16 %v2668
        %v3480 = vunpack.c.l.b16 %v2669
        %v3481 = vunpack.c.h.b16 %v2669
        %v3482 = vunpack.c.l.b16 %v2670
        %v3483 = vunpack.c.l.b16 %v2671
        %v3484 = vunpack.c.h.b16 %v2671
        %v3485 = vunpack.c.l.b16 %v2672
        %v3486 = vunpack.c.l.b16 %v2673
        %v3487 = vunpack.c.h.b16 %v2673
        %v3488 = vunpack.c.l.b16 %v2674
        %v3489 = vunpack.c.l.b16 %v2675
        %v3490 = vunpack.c.h.b16 %v2675
        %v3491 = vunpack.c.l.b16 %v2676
        %v3492 = vunpack.c.l.b16 %v2677
        %v3493 = vunpack.c.h.b16 %v2677
        %v3494 = vunpack.c.l.b16 %v2678
        %v3495 = vunpack.c.l.b16 %v2679
        %v3496 = vunpack.c.h.b16 %v2679
        %v3497 = vunpack.c.l.b16 %v2680
        %v3498 = vunpack.c.l.b16 %v2681
        %v3499 = vunpack.c.h.b16 %v2681
        %v3500 = vunpack.c.l.b16 %v2682
        %v3501 = vunpack.c.l.b16 %v2683
        %v3502 = vunpack.c.h.b16 %v2683
        %v3503 = vunpack.c.l.b16 %v2684
        %v3504 = vunpack.c.l.b16 %v2685
        %v3505 = vunpack.c.h.b16 %v2685
        %v3506 = vunpack.c.l.b16 %v2686
        %v3507 = vunpack.c.l.b16 %v2687
        %v3508 = vunpack.c.h.b16 %v2687
        %v3509 = vunpack.c.l.b16 %v2688
        %v3510 = vunpack.c.l.b16 %v2689
        %v3511 = vunpack.c.h.b16 %v2689
        %v3512 = vunpack.c.l.b16 %v2690
        %v3513 = vunpack.c.l.b16 %v2691
        %v3514 = vunpack.c.h.b16 %v2691
        %v3515 = vunpack.c.l.b16 %v2692
        %v3516 = vunpack.c.l.b16 %v2693
        %v3517 = vunpack.c.h.b16 %v2693
        %v3518 = vunpack.c.l.b16 %v2694
        %v3519 = vunpack.c.l.b16 %v2695
        %v3520 = vunpack.c.h.b16 %v2695
        %v3521 = vunpack.c.l.b16 %v2696
        %v3522 = vunpack.c.l.b16 %v2697
        %v3523 = vunpack.c.h.b16 %v2697
        %v3524 = vunpack.c.l.b16 %v2698
        %v3525 = vunpack.c.l.b16 %v2699
        %v3526 = vunpack.c.h.b16 %v2699
        %v3527 = vunpack.c.l.b16 %v2700
        %v3528 = vunpack.c.l.b16 %v2701
        %v3529 = vunpack.c.h.b16 %v2701
        %v3530 = vunpack.c.l.b16 %v2702
        %v3531 = vunpack.c.l.b16 %v2703
        %v3532 = vunpack.c.h.b16 %v2703
        %v3533 = vunpack.c.l.b16 %v2704
        %v3534 = vunpack.c.l.b16 %v2705
        %v3535 = vunpack.c.h.b16 %v2705
        %v3536 = vunpack.c.l.b16 %v2706
        %v3537 = vunpack.c.l.b16 %v2707
        %v3538 = vunpack.c.h.b16 %v2707
        %v3539 = vunpack.c.l.b16 %v2708
        %v3540 = vunpack.c.l.b16 %v2709
        %v3541 = vunpack.c.h.b16 %v2709
        %v3542 = vunpack.c.l.b16 %v2710
        %v3543 = vunpack.c.l.b16 %v2711
        %v3544 = vunpack.c.h.b16 %v2711
        %v3545 = vunpack.c.l.b16 %v2712
        %v3546 = vunpack.c.l.b16 %v2713
        %v3547 = vunpack.c.h.b16 %v2713
        %v3548 = vunpack.c.l.b16 %v2714
        %v3549 = vunpack.c.l.b16 %v2715
        %v3550 = vunpack.c.h.b16 %v2715
        %v3551 = vunpack.c.l.b16 %v2716
        %v3552 = vunpack.c.l.b16 %v2717
        %v3553 = vunpack.c.h.b16 %v2717
        %v3554 = vunpack.c.l.b16 %v2718
        %v3555 = vunpack.c.l.b16 %v2719
        %v3556 = vunpack.c.h.b16 %v2719
        %v3557 = vunpack.c.l.b16 %v2720
        %v3558 = vunpack.c.l.b16 %v2721
        %v3559 = vunpack.c.h.b16 %v2721
        %v3560 = vunpack.c.l.b16 %v2722
        %v3561 = vunpack.c.l.b16 %v2723
        %v3562 = vunpack.c.h.b16 %v2723
        %v3563 = vunpack.c.l.b16 %v2724
        %v3564 = vunpack.c.l.b16 %v2725
        %v3565 = vunpack.c.h.b16 %v2725
        %v3566 = vunpack.c.l.b16 %v2726
        %v3567 = vunpack.c.l.b16 %v2727
        %v3568 = vunpack.c.h.b16 %v2727
        %v3569 = vunpack.c.l.b16 %v2728
        %v3570 = vunpack.c.l.b16 %v2729
        %v3571 = vunpack.c.h.b16 %v2729
        %v3572 = vunpack.c.l.b16 %v2730
        %v3573 = vunpack.c.l.b16 %v2731
        %v3574 = vunpack.c.h.b16 %v2731
        %v3575 = vunpack.c.l.b16 %v2732
        %v3576 = vunpack.c.l.b16 %v2733
        %v3577 = vunpack.c.h.b16 %v2733
        %v3578 = vunpack.c.l.b16 %v2734
        %v3579 = vunpack.c.l.b16 %v2735
        %v3580 = vunpack.c.h.b16 %v2735
        %v3581 = vunpack.c.l.b16 %v2736
        %v3582 = vunpack.c.l.b16 %v2737
        %v3583 = vunpack.c.h.b16 %v2737
        %v3584 = vunpack.c.l.b16 %v2738
        %v3585 = vunpack.c.l.b16 %v2739
        %v3586 = vunpack.c.h.b16 %v2739
        %v3587 = vunpack.c.l.b16 %v2740
        %v3588 = vunpack.c.l.b16 %v2741
        %v3589 = vunpack.c.h.b16 %v2741
        %v3590 = vunpack.c.l.b16 %v2742
        %v3591 = vunpack.c.l.b16 %v2743
        %v3592 = vunpack.c.h.b16 %v2743
        %v3593 = vunpack.c.l.b16 %v2744
        %v3594 = vunpack.c.l.b16 %v2745
        %v3595 = vunpack.c.h.b16 %v2745
        %v3596 = vunpack.c.l.b16 %v2746
        %v3597 = vunpack.c.l.b16 %v2747
        %v3598 = vunpack.c.h.b16 %v2747
        %v3599 = vunpack.c.l.b16 %v2748
        %v3600 = vunpack.c.l.b16 %v2749
        %v3601 = vunpack.c.h.b16 %v2749
        %v3602 = vunpack.c.l.b16 %v2750
        %v3603 = vunpack.c.l.b16 %v2751
        %v3604 = vunpack.c.h.b16 %v2751
        %v3605 = vunpack.c.l.b16 %v2752
        %v3606 = vunpack.c.l.b16 %v2753
        %v3607 = vunpack.c.h.b16 %v2753
        %v3608 = vunpack.c.l.b16 %v2754
        %v3609 = vunpack.c.l.b16 %v2755
        %v3610 = vunpack.c.h.b16 %v2755
        %v3611 = vunpack.c.l.b16 %v2756
        %v3612 = vunpack.c.l.b16 %v2757
        %v3613 = vunpack.c.h.b16 %v2757
        %v3614 = vunpack.c.l.b16 %v2758
        %v3615 = vunpack.c.l.b16 %v2759
        %v3616 = vunpack.c.h.b16 %v2759
        %v3617 = vunpack.c.l.b16 %v2760
        %v3618 = vunpack.c.l.b16 %v2761
        %v3619 = vunpack.c.h.b16 %v2761
        %v3620 = vunpack.c.l.b16 %v2762
        %v3621 = vunpack.c.l.b16 %v2763
        %v3622 = vunpack.c.h.b16 %v2763
        %v3623 = vunpack.c.l.b16 %v2764
        %v3624 = vunpack.c.l.b16 %v2765
        %v3625 = vunpack.c.h.b16 %v2765
        %v3626 = vunpack.c.l.b16 %v2766
        %v3627 = vunpack.c.l.b16 %v2767
        %v3628 = vunpack.c.h.b16 %v2767
        %v3629 = vunpack.c.l.b16 %v2768
        %v3630 = vunpack.c.l.b16 %v2769
        %v3631 = vunpack.c.h.b16 %v2769
        %v3632 = vunpack.c.l.b16 %v2770
        %v3633 = vunpack.c.l.b16 %v2771
        %v3634 = vunpack.c.h.b16 %v2771
        %v3635 = vunpack.c.l.b16 %v2772
        %v3636 = vunpack.c.l.b16 %v2773
        %v3637 = vunpack.c.h.b16 %v2773
        %v3638 = vunpack.c.l.b16 %v2774
        %v3639 = vunpack.c.l.b16 %v2775
        %v3640 = vunpack.c.h.b16 %v2775
        %v3641 = vunpack.c.l.b16 %v2776
        %v3642 = vunpack.c.l.b16 %v2777
        %v3643 = vunpack.c.h.b16 %v2777
        %v3644 = vunpack.c.l.b16 %v2778
        %v3645 = vunpack.c.l.b16 %v2779
        %v3646 = vunpack.c.h.b16 %v2779
        %v3647 = vunpack.c.l.b16 %v2780
        %v3648 = vunpack.c.l.b16 %v2781
        %v3649 = vunpack.c.h.b16 %v2781
        %v3650 = vunpack.c.l.b16 %v2782
        %v3651 = vunpack.c.l.b16 %v2783
        %v3652 = vunpack.c.h.b16 %v2783
        %v3653 = vunpack.c.l.b16 %v2784
        %v3654 = vunpack.c.l.b16 %v2785
        %v3655 = vunpack.c.h.b16 %v2785
        %v3656 = vunpack.c.l.b16 %v2786
        %v3657 = vunpack.c.l.b16 %v2787
        %v3658 = vunpack.c.h.b16 %v2787
        %v3659 = vunpack.c.l.b16 %v2788
        %v3660 = vunpack.c.l.b16 %v2789
        %v3661 = vunpack.c.h.b16 %v2789
        %v3662 = vunpack.c.l.b16 %v2790
        %v3663 = vunpack.c.l.b16 %v2791
        %v3664 = vunpack.c.h.b16 %v2791
        %v3665 = vunpack.c.l.b16 %v2792
        %v3666 = vunpack.c.l.b16 %v2793
        %v3667 = vunpack.c.h.b16 %v2793
        %v3668 = vunpack.c.l.b16 %v2794
        %v3669 = vunpack.c.l.b16 %v2795
        %v3670 = vunpack.c.h.b16 %v2795
        %v3671 = vunpack.c.l.b16 %v2796
        %v3672 = vunpack.c.l.b16 %v2797
        %v3673 = vunpack.c.h.b16 %v2797
        %v3674 = vunpack.c.l.b16 %v2798
        %v3675 = vunpack.c.l.b16 %v2799
        %v3676 = vunpack.c.h.b16 %v2799
        %v3677 = vunpack.c.l.b16 %v2800
        %v3678 = vunpack.c.l.b16 %v2801
        %v3679 = vunpack.c.h.b16 %v2801
        %v3680 = vunpack.c.l.b16 %v2802
        %v3681 = vunpack.c.l.b16 %v2803
        %v3682 = vunpack.c.h.b16 %v2803
        %v3683 = vunpack.c.l.b16 %v2804
        %v3684 = vunpack.c.l.b16 %v2805
        %v3685 = vunpack.c.h.b16 %v2805
        %v3686 = vunpack.c.l.b16 %v2806
        %v3687 = vunpack.c.l.b16 %v2807
        %v3688 = vunpack.c.h.b16 %v2807
        %v3689 = vunpack.c.l.b16 %v2808
        %v3690 = vunpack.c.l.b16 %v2809
        %v3691 = vunpack.c.h.b16 %v2809
        %v3692 = vunpack.c.l.b16 %v2810
        %v3693 = vunpack.c.l.b16 %v2811
        %v3694 = vunpack.c.h.b16 %v2811
        %v3695 = vunpack.c.l.b16 %v2812
        %v3696 = vunpack.c.l.b16 %v2813
        %v3697 = vunpack.c.h.b16 %v2813
        %v3698 = vunpack.c.l.b16 %v2814
        %v3699 = vunpack.c.l.b16 %v2815
        %v3700 = vunpack.c.h.b16 %v2815
        %v3701 = vunpack.c.l.b16 %v2816
        %v3702 = vunpack.c.l.b16 %v2817
        %v3703 = vunpack.c.h.b16 %v2817
        %v3704 = vunpack.c.l.b16 %v2818
        %v3705 = vunpack.c.l.b16 %v2819
        %v3706 = vunpack.c.h.b16 %v2819
        %v3707 = vunpack.c.l.b16 %v2820
        %v3708 = vunpack.c.l.b16 %v2821
        %v3709 = vunpack.c.h.b16 %v2821
        %v3710 = vunpack.c.l.b16 %v2822
        %v3711 = vunpack.c.l.b16 %v2823
        %v3712 = vunpack.c.h.b16 %v2823
        %v3713 = vunpack.c.l.b16 %v2824
        %v3714 = vunpack.c.l.b16 %v2825
        %v3715 = vunpack.c.h.b16 %v2825
        %v3716 = vunpack.c.l.b16 %v2826
        %v3717 = vunpack.c.l.b16 %v2827
        %v3718 = vunpack.c.h.b16 %v2827
        %v3719 = vunpack.c.l.b16 %v2828
        %v3720 = vunpack.c.l.b16 %v2829
        %v3721 = vunpack.c.h.b16 %v2829
        %v3722 = vunpack.c.l.b16 %v2830
        %v3723 = vunpack.c.l.b16 %v2831
        %v3724 = vunpack.c.h.b16 %v2831
        %v3725 = vunpack.c.l.b16 %v2832
        %v3726 = vunpack.c.l.b16 %v2833
        %v3727 = vunpack.c.h.b16 %v2833
        %v3728 = vunpack.c.l.b16 %v2834
        %v3729 = vunpack.c.l.b16 %v2835
        %v3730 = vunpack.c.h.b16 %v2835
        %v3731 = vunpack.c.l.b16 %v2836
        %v3732 = vunpack.c.l.b16 %v2837
        %v3733 = vunpack.c.h.b16 %v2837
        %v3734 = vunpack.c.l.b16 %v2838
        %v3735 = vunpack.c.l.b16 %v2839
        %v3736 = vunpack.c.h.b16 %v2839
        %v3737 = vunpack.c.l.b16 %v2840
        %v3738 = vunpack.c.l.b16 %v2841
        %v3739 = vunpack.c.h.b16 %v2841
        %v3740 = vunpack.c.l.b16 %v2842
        %v3741 = vunpack.c.l.b16 %v2843
        %v3742 = vunpack.c.h.b16 %v2843
        %v3743 = vunpack.c.l.b16 %v2844
        %v3744 = vunpack.c.l.b16 %v2845
        %v3745 = vunpack.c.h.b16 %v2845
        %v3746 = vunpack.c.l.b16 %v2846
        %v3747 = vunpack.c.l.b16 %v2847
        %v3748 = vunpack.c.h.b16 %v2847
        %v3749 = vunpack.c.l.b16 %v2848
        %v3750 = vunpack.c.l.b16 %v2849
        %v3751 = vunpack.c.h.b16 %v2849
        %v3752 = vunpack.c.l.b16 %v2850
        %v3753 = vunpack.c.l.b16 %v2851
        %v3754 = vunpack.c.h.b16 %v2851
        %v3755 = vunpack.c.l.b16 %v2852
        %v3756 = vunpack.c.l.b16 %v2853
        %v3757 = vunpack.c.h.b16 %v2853
        %v3758 = vunpack.c.l.b16 %v2854
        %v3759 = vunpack.c.l.b16 %v2855
        %v3760 = vunpack.c.h.b16 %v2855
        %v3761 = vunpack.c.l.b16 %v2856
        %v3762 = vunpack.c.l.b16 %v2857
        %v3763 = vunpack.c.h.b16 %v2857
        %v3764 = vunpack.c.l.b16 %v2858
        %v3765 = vunpack.c.l.b16 %v2859
        %v3766 = vunpack.c.h.b16 %v2859
        %v3767 = vunpack.c.l.b16 %v2860
        %v3768 = vunpack.c.l.b16 %v2861
        %v3769 = vunpack.c.h.b16 %v2861
        %v3770 = vunpack.c.l.b16 %v2862
        %v3771 = vunpack.c.l.b16 %v2863
        %v3772 = vunpack.c.h.b16 %v2863
        %v3773 = vunpack.c.l.b16 %v2864
        %v3774 = vunpack.c.l.b16 %v2865
        %v3775 = vunpack.c.h.b16 %v2865
        %v3776 = vunpack.c.l.b16 %v2866
        %v3777 = vunpack.c.l.b16 %v2867
        %v3778 = vunpack.c.h.b16 %v2867
        %v3779 = vunpack.c.l.b16 %v2868
        %v3780 = vunpack.c.l.b16 %v2869
        %v3781 = vunpack.c.h.b16 %v2869
        %v3782 = vunpack.c.l.b16 %v2870
        %v3783 = vunpack.c.l.b16 %v2871
        %v3784 = vunpack.c.h.b16 %v2871
        %v3785 = vunpack.c.l.b16 %v2872
        %v3786 = vunpack.c.l.b16 %v2873
        %v3787 = vunpack.c.h.b16 %v2873
        %v3788 = vunpack.c.l.b16 %v2874
        %v3789 = vunpack.c.l.b16 %v2875
        %v3790 = vunpack.c.h.b16 %v2875
        %v3791 = vunpack.c.l.b16 %v2876
        %v3792 = vunpack.c.l.b16 %v2877
        %v3793 = vunpack.c.h.b16 %v2877
        %v3794 = vunpack.c.l.b16 %v2878
        %v3795 = vunpack.c.l.b16 %v2879
        %v3796 = vunpack.c.h.b16 %v2879
        %v3797 = vunpack.c.l.b16 %v2880
        %v3798 = vunpack.c.l.b16 %v2881
        %v3799 = vunpack.c.h.b16 %v2881
        %v3800 = vunpack.c.l.b16 %v2882
        %v3801 = vunpack.c.l.b16 %v2883
        %v3802 = vunpack.c.h.b16 %v2883
        %v3803 = vunpack.c.l.b16 %v2884
        %v3804 = vunpack.c.l.b16 %v2885
        %v3805 = vunpack.c.h.b16 %v2885
        %v3806 = vunpack.c.l.b16 %v2886
        %v3807 = vunpack.c.l.b16 %v2887
        %v3808 = vunpack.c.h.b16 %v2887
        %v3809 = vunpack.c.l.b16 %v2888
        %v3810 = vunpack.c.l.b16 %v2889
        %v3811 = vunpack.c.h.b16 %v2889
        %v3812 = vunpack.c.l.b16 %v2890
        %v3813 = vunpack.c.l.b16 %v2891
        %v3814 = vunpack.c.h.b16 %v2891
        %v3815 = vunpack.c.l.b16 %v2892
        %v3816 = vunpack.c.l.b16 %v2893
        %v3817 = vunpack.c.h.b16 %v2893
        %v3818 = vunpack.c.l.b16 %v2894
        %v3819 = vunpack.c.l.b16 %v2895
        %v3820 = vunpack.c.h.b16 %v2895
        %v3821 = vunpack.c.l.b16 %v2896
        %v3822 = vunpack.c.l.b16 %v2897
        %v3823 = vunpack.c.h.b16 %v2897
        %v3824 = vunpack.c.l.b16 %v2898
        %v3825 = vunpack.c.l.b16 %v2899
        %v3826 = vunpack.c.h.b16 %v2899
        %v3827 = vunpack.c.l.b16 %v2900
        %v3828 = vunpack.c.l.b16 %v2901
        %v3829 = vunpack.c.h.b16 %v2901
        %v3830 = vunpack.c.l.b16 %v2902
        %v3831 = vunpack.c.l.b16 %v2903
        %v3832 = vunpack.c.h.b16 %v2903
        %v3833 = vunpack.c.l.b16 %v2904
        %v3834 = vunpack.c.l.b16 %v2905
        %v3835 = vunpack.c.h.b16 %v2905
        %v3836 = vunpack.c.l.b16 %v2906
        %v3837 = vunpack.c.l.b16 %v2907
        %v3838 = vunpack.c.h.b16 %v2907
        %v3839 = vunpack.c.l.b16 %v2908
        %v3840 = vunpack.c.l.b16 %v2909
        %v3841 = vunpack.c.h.b16 %v2909
        %v3842 = vunpack.c.l.b16 %v2910
        %v3843 = vunpack.c.l.b16 %v2911
        %v3844 = vunpack.c.h.b16 %v2911
        %v3845 = vunpack.c.l.b16 %v2912
        %v3846 = vunpack.c.l.b16 %v2913
        %v3847 = vunpack.c.h.b16 %v2913
        %v3848 = vunpack.c.l.b16 %v2914
        %v3849 = vunpack.c.l.b16 %v2915
        %v3850 = vunpack.c.h.b16 %v2915
        %v3851 = vunpack.c.l.b16 %v2916
        %v3852 = vunpack.c.l.b16 %v2917
        %v3853 = vunpack.c.h.b16 %v2917
        %v3854 = vunpack.c.l.b16 %v2918
        %v3855 = vunpack.c.l.b16 %v2919
        %v3856 = vunpack.c.h.b16 %v2919
        %v3857 = vunpack.c.l.b16 %v2920
        %v3858 = vunpack.c.l.b16 %v2921
        %v3859 = vunpack.c.h.b16 %v2921
        %v3860 = vunpack.c.l.b16 %v2922
        %v3861 = vunpack.c.l.b16 %v2923
        %v3862 = vunpack.c.h.b16 %v2923
        %v3863 = vunpack.c.l.b16 %v2924
        %v3864 = vunpack.c.l.b16 %v2925
        %v3865 = vunpack.c.h.b16 %v2925
        %v3866 = vunpack.c.l.b16 %v2926
        %v3867 = vunpack.c.l.b16 %v2927
        %v3868 = vunpack.c.h.b16 %v2927
        %v3869 = vunpack.c.l.b16 %v2928
        %v3870 = vunpack.c.l.b16 %v2929
        %v3871 = vunpack.c.h.b16 %v2929
        %v3872 = vunpack.c.l.b16 %v2930
        %v3873 = vunpack.c.l.b16 %v2931
        %v3874 = vunpack.c.h.b16 %v2931
        %v3875 = vunpack.c.l.b16 %v2932
        %v3876 = vunpack.c.l.b16 %v2933
        %v3877 = vunpack.c.h.b16 %v2933
        %v3878 = vunpack.c.l.b16 %v2934
        %v3879 = vunpack.c.l.b16 %v2935
        %v3880 = vunpack.c.h.b16 %v2935
        %v3881 = vunpack.c.l.b16 %v2936
        %v3882 = vunpack.c.l.b16 %v2937
        %v3883 = vunpack.c.h.b16 %v2937
        %v3884 = vunpack.c.l.b16 %v2938
        %v3885 = vunpack.c.l.b16 %v2939
        %v3886 = vunpack.c.h.b16 %v2939
        %v3887 = vunpack.c.l.b16 %v2940
        %v3888 = vunpack.c.l.b16 %v2941
        %v3889 = vunpack.c.h.b16 %v2941
        %v3890 = vunpack.c.l.b16 %v2942
        %v3891 = vunpack.c.l.b16 %v2943
        %v3892 = vunpack.c.h.b16 %v2943
        %v3893 = vunpack.c.l.b16 %v2944
        %v3894 = vunpack.c.l.b16 %v2945
        %v3895 = vunpack.c.h.b16 %v2945
        %v3896 = vunpack.c.l.b16 %v2946
        %v3897 = vunpack.c.l.b16 %v2947
        %v3898 = vunpack.c.h.b16 %v2947
        %v3899 = vunpack.c.l.b16 %v2948
        %v3900 = vunpack.c.l.b16 %v2949
        %v3901 = vunpack.c.h.b16 %v2949
        %v3902 = vunpack.c.l.b16 %v2950
        %v3903 = vunpack.c.l.b16 %v2951
        %v3904 = vunpack.c.h.b16 %v2951
        %v3905 = vunpack.c.l.b16 %v2952
        %v3906 = vunpack.c.l.b16 %v2953
        %v3907 = vunpack.c.h.b16 %v2953
        %v3908 = vunpack.c.l.b16 %v2954
        %v3909 = vunpack.c.l.b16 %v2955
        %v3910 = vunpack.c.h.b16 %v2955
        %v3911 = vunpack.c.l.b16 %v2956
        %v3912 = vunpack.c.l.b16 %v2957
        %v3913 = vunpack.c.h.b16 %v2957
        %v3914 = vunpack.c.l.b16 %v2958
        %v3915 = vunpack.c.l.b16 %v2959
        %v3916 = vunpack.c.h.b16 %v2959
        %v3917 = vunpack.c.l.b16 %v2960
        %v3918 = vunpack.c.l.b16 %v2961
        %v3919 = vunpack.c.h.b16 %v2961
        %v3920 = vunpack.c.l.b16 %v2962
        %v3921 = vunpack.c.l.b16 %v2963
        %v3922 = vunpack.c.h.b16 %v2963
        %v3923 = vunpack.c.l.b16 %v2964
        %v3924 = vunpack.c.l.b16 %v2965
        %v3925 = vunpack.c.h.b16 %v2965
        %v3926 = vunpack.c.l.b16 %v2966
        %v3927 = vunpack.c.l.b16 %v2967
        %v3928 = vunpack.c.h.b16 %v2967
        %v3929 = vunpack.c.l.b16 %v2968
        %v3930 = vunpack.c.l.b16 %v2969
        %v3931 = vunpack.c.h.b16 %v2969
        %v3932 = vunpack.c.l.b16 %v2970
        %v3933 = vunpack.c.l.b16 %v2971
        %v3934 = vunpack.c.h.b16 %v2971
        %v3935 = vunpack.c.l.b16 %v2972
        %v3936 = vunpack.c.l.b16 %v2973
        %v3937 = vunpack.c.h.b16 %v2973
        %v3938 = vunpack.c.l.b16 %v2974
        %v3939 = vunpack.c.l.b16 %v2975
        %v3940 = vunpack.c.h.b16 %v2975
        %v3941 = vunpack.c.l.b16 %v2976
        %v3942 = vunpack.c.l.b16 %v2977
        %v3943 = vunpack.c.h.b16 %v2977
        %v3944 = vunpack.c.l.b16 %v2978
        %v3945 = vunpack.c.l.b16 %v2979
        %v3946 = vunpack.c.h.b16 %v2979
        %v3947 = vunpack.c.l.b16 %v2980
        %v3948 = vunpack.c.l.b16 %v2981
        %v3949 = vunpack.c.h.b16 %v2981
        %v3950 = vunpack.c.l.b16 %v2982
        %v3951 = vunpack.c.l.b16 %v2983
        %v3952 = vunpack.c.h.b16 %v2983
        %v3953 = vunpack.c.l.b16 %v2984
        %v3954 = vunpack.c.l.b16 %v2985
        %v3955 = vunpack.c.h.b16 %v2985
        %v3956 = vunpack.c.l.b16 %v2986
        %v3957 = vunpack.c.l.b16 %v2987
        %v3958 = vunpack.c.h.b16 %v2987
        %v3959 = vunpack.c.l.b16 %v2988
        %v3960 = vunpack.c.l.b16 %v2989
        %v3961 = vunpack.c.h.b16 %v2989
        %v3962 = vunpack.c.l.b16 %v2990
        %v3963 = vunpack.c.l.b16 %v2991
        %v3964 = vunpack.c.h.b16 %v2991
        %v3965 = vunpack.c.l.b16 %v2992
        %v3966 = vunpack.c.l.b16 %v2993
        %v3967 = vunpack.c.h.b16 %v2993
        %v3968 = vunpack.c.l.b16 %v2994
        %v3969 = vunpack.c.l.b16 %v2995
        %v3970 = vunpack.c.h.b16 %v2995
        %v3971 = vunpack.c.l.b16 %v2996
        %v3972 = vunpack.c.l.b16 %v2997
        %v3973 = vunpack.c.h.b16 %v2997
        %v3974 = vunpack.c.l.b16 %v2998
        %v3975 = vunpack.c.l.b16 %v2999
        %v3976 = vunpack.c.h.b16 %v2999
        %v3977 = vunpack.c.l.b16 %v3000
        %v3978 = vpack.c.b16 %v3405, %v3402
        %v3979 = vpack.c.b16 %v3406, %v3403
        %v3980 = vpack.c.b16 %v3407, %v3404
        %v3981 = vpack.c.b16 %v3411, %v3408
        %v3982 = vpack.c.b16 %v3412, %v3409
        %v3983 = vpack.c.b16 %v3413, %v3410
        %v3984 = vpack.c.b16 %v3417, %v3414
        %v3985 = vpack.c.b16 %v3418, %v3415
        %v3986 = vpack.c.b16 %v3419, %v3416
        %v3987 = vpack.c.b16 %v3423, %v3420
        %v3988 = vpack.c.b16 %v3424, %v3421
        %v3989 = vpack.c.b16 %v3425, %v3422
        %v3990 = vpack.c.b16 %v3429, %v3426
        %v3991 = vpack.c.b16 %v3430, %v3427
        %v3992 = vpack.c.b16 %v3431, %v3428
        %v3993 = vpack.c.b16 %v3435, %v3432
        %v3994 = vpack.c.b16 %v3436, %v3433
        %v3995 = vpack.c.b16 %v3437, %v3434
        %v3996 = vpack.c.b16 %v3441, %v3438
        %v3997 = vpack.c.b16 %v3442, %v3439
        %v3998 = vpack.c.b16 %v3443, %v3440
        %v3999 = vpack.c.b16 %v3447, %v3444
        %v4000 = vpack.c.b16 %v3448, %v3445
        %v4001 = vpack.c.b16 %v3449, %v3446
        %v4002 = vpack.c.b16 %v3453, %v3450
        %v4003 = vpack.c.b16 %v3454, %v3451
        %v4004 = vpack.c.b16 %v3455, %v3452
        %v4005 = vpack.c.b16 %v3459, %v3456
        %v4006 = vpack.c.b16 %v3460, %v3457
        %v4007 = vpack.c.b16 %v3461, %v3458
        %v4008 = vpack.c.b16 %v3465, %v3462
        %v4009 = vpack.c.b16 %v3466, %v3463
        %v4010 = vpack.c.b16 %v3467, %v3464
        %v4011 = vpack.c.b16 %v3471, %v3468
        %v4012 = vpack.c.b16 %v3472, %v3469
        %v4013 = vpack.c.b16 %v3473, %v3470
        %v4014 = vpack.c.b16 %v3477, %v3474
        %v4015 = vpack.c.b16 %v3478, %v3475
        %v4016 = vpack.c.b16 %v3479, %v3476
        %v4017 = vpack.c.b16 %v3483, %v3480
        %v4018 = vpack.c.b16 %v3484, %v3481
        %v4019 = vpack.c.b16 %v3485, %v3482
        %v4020 = vpack.c.b16 %v3489, %v3486
        %v4021 = vpack.c.b16 %v3490, %v3487
        %v4022 = vpack.c.b16 %v3491, %v3488
        %v4023 = vpack.c.b16 %v3495, %v3492
        %v4024 = vpack.c.b16 %v3496, %v3493
        %v4025 = vpack.c.b16 %v3497, %v3494
        %v4026 = vpack.c.b16 %v3501, %v3498
        %v4027 = vpack.c.b16 %v3502, %v3499
        %v4028 = vpack.c.b16 %v3503, %v3500
        %v4029 = vpack.c.b16 %v3507, %v3504
        %v4030 = vpack.c.b16 %v3508, %v3505
        %v4031 = vpack.c.b16 %v3509, %v3506
        %v4032 = vpack.c.b16 %v3513, %v3510
        %v4033 = vpack.c.b16 %v3514, %v3511
        %v4034 = vpack.c.b16 %v3515, %v3512
        %v4035 = vpack.c.b16 %v3519, %v3516
        %v4036 = vpack.c.b16 %v3520, %v3517
        %v4037 = vpack.c.b16 %v3521, %v3518
        %v4038 = vpack.c.b16 %v3525, %v3522
        %v4039 = vpack.c.b16 %v3526, %v3523
        %v4040 = vpack.c.b16 %v3527, %v3524
        %v4041 = vpack.c.b16 %v3531, %v3528
        %v4042 = vpack.c.b16 %v3532, %v3529
        %v4043 = vpack.c.b16 %v3533, %v3530
        %v4044 = vpack.c.b16 %v3537, %v3534
        %v4045 = vpack.c.b16 %v3538, %v3535
        %v4046 = vpack.c.b16 %v3539, %v3536
        %v4047 = vpack.c.b16 %v3543, %v3540
        %v4048 = vpack.c.b16 %v3544, %v3541
        %v4049 = vpack.c.b16 %v3545, %v3542
        %v4050 = vpack.c.b16 %v3549, %v3546
        %v4051 = vpack.c.b16 %v3550, %v3547
        %v4052 = vpack.c.b16 %v3551, %v3548
        %v4053 = vpack.c.b16 %v3555, %v3552
        %v4054 = vpack.c.b16 %v3556, %v3553
        %v4055 = vpack.c.b16 %v3557, %v3554
        %v4056 = vpack.c.b16 %v3561, %v3558
        %v4057 = vpack.c.b16 %v3562, %v3559
        %v4058 = vpack.c.b16 %v3563, %v3560
        %v4059 = vpack.c.b16 %v3567, %v3564
        %v4060 = vpack.c.b16 %v3568, %v3565
        %v4061 = vpack.c.b16 %v3569, %v3566
        %v4062 = vpack.c.b16 %v3573, %v3570
        %v4063 = vpack.c.b16 %v3574, %v3571
        %v4064 = vpack.c.b16 %v3575, %v3572
        %v4065 = vpack.c.b16 %v3579, %v3576
        %v4066 = vpack.c.b16 %v3580, %v3577
        %v4067 = vpack.c.b16 %v3581, %v3578
        %v4068 = vpack.c.b16 %v3585, %v3582
        %v4069 = vpack.c.b16 %v3586, %v3583
        %v4070 = vpack.c.b16 %v3587, %v3584
        %v4071 = vpack.c.b16 %v3591, %v3588
        %v4072 = vpack.c.b16 %v3592, %v3589
        %v4073 = vpack.c.b16 %v3593, %v3590
        %v4074 = vpack.c.b16 %v3597, %v3594
        %v4075 = vpack.c.b16 %v3598, %v3595
        %v4076 = vpack.c.b16 %v3599, %v3596
        %v4077 = vpack.c.b16 %v3603, %v3600
        %v4078 = vpack.c.b16 %v3604, %v3601
        %v4079 = vpack.c.b16 %v3605, %v3602
        %v4080 = vpack.c.b16 %v3609, %v3606
        %v4081 = vpack.c.b16 %v3610, %v3607
        %v4082 = vpack.c.b16 %v3611, %v3608
        %v4083 = vpack.c.b16 %v3615, %v3612
        %v4084 = vpack.c.b16 %v3616, %v3613
        %v4085 = vpack.c.b16 %v3617, %v3614
        %v4086 = vpack.c.b16 %v3621, %v3618
        %v4087 = vpack.c.b16 %v3622, %v3619
        %v4088 = vpack.c.b16 %v3623, %v3620
        %v4089 = vpack.c.b16 %v3627, %v3624
        %v4090 = vpack.c.b16 %v3628, %v3625
        %v4091 = vpack.c.b16 %v3629, %v3626
        %v4092 = vpack.c.b16 %v3633, %v3630
        %v4093 = vpack.c.b16 %v3634, %v3631
        %v4094 = vpack.c.b16 %v3635, %v3632
        %v4095 = vpack.c.b16 %v3639, %v3636
        %v4096 = vpack.c.b16 %v3640, %v3637
        %v4097 = vpack.c.b16 %v3641, %v3638
        %v4098 = vpack.c.b16 %v3645, %v3642
        %v4099 = vpack.c.b16 %v3646, %v3643
        %v4100 = vpack.c.b16 %v3647, %v3644
        %v4101 = vpack.c.b16 %v3651, %v3648
        %v4102 = vpack.c.b16 %v3652, %v3649
        %v4103 = vpack.c.b16 %v3653, %v3650
        %v4104 = vpack.c.b16 %v3657, %v3654
        %v4105 = vpack.c.b16 %v3658, %v3655
        %v4106 = vpack.c.b16 %v3659, %v3656
        %v4107 = vpack.c.b16 %v3663, %v3660
        %v4108 = vpack.c.b16 %v3664, %v3661
        %v4109 = vpack.c.b16 %v3665, %v3662
        %v4110 = vpack.c.b16 %v3669, %v3666
        %v4111 = vpack.c.b16 %v3670, %v3667
        %v4112 = vpack.c.b16 %v3671, %v3668
        %v4113 = vpack.c.b16 %v3675, %v3672
        %v4114 = vpack.c.b16 %v3676, %v3673
        %v4115 = vpack.c.b16 %v3677, %v3674
        %v4116 = vpack.c.b16 %v3681, %v3678
        %v4117 = vpack.c.b16 %v3682, %v3679
        %v4118 = vpack.c.b16 %v3683, %v3680
        %v4119 = vpack.c.b16 %v3687, %v3684
        %v4120 = vpack.c.b16 %v3688, %v3685
        %v4121 = vpack.c.b16 %v3689, %v3686
        %v4122 = vpack.c.b16 %v3693, %v3690
        %v4123 = vpack.c.b16 %v3694, %v3691
        %v4124 = vpack.c.b16 %v3695, %v3692
        %v4125 = vpack.c.b16 %v3699, %v3696
        %v4126 = vpack.c.b16 %v3700, %v3697
        %v4127 = vpack.c.b16 %v3701, %v3698
        %v4128 = vpack.c.b16 %v3705, %v3702
        %v4129 = vpack.c.b16 %v3706, %v3703
        %v4130 = vpack.c.b16 %v3707, %v3704
        %v4131 = vpack.c.b16 %v3711, %v3708
        %v4132 = vpack.c.b16 %v3712, %v3709
        %v4133 = vpack.c.b16 %v3713, %v3710
        %v4134 = vpack.c.b16 %v3717, %v3714
        %v4135 = vpack.c.b16 %v3718, %v3715
        %v4136 = vpack.c.b16 %v3719, %v3716
        %v4137 = vpack.c.b16 %v3723, %v3720
        %v4138 = vpack.c.b16 %v3724, %v3721
        %v4139 = vpack.c.b16 %v3725, %v3722
        %v4140 = vpack.c.b16 %v3729, %v3726
        %v4141 = vpack.c.b16 %v3730, %v3727
        %v4142 = vpack.c.b16 %v3731, %v3728
        %v4143 = vpack.c.b16 %v3735, %v3732
        %v4144 = vpack.c.b16 %v3736, %v3733
        %v4145 = vpack.c.b16 %v3737, %v3734
        %v4146 = vpack.c.b16 %v3741, %v3738
        %v4147 = vpack.c.b16 %v3742, %v3739
        %v4148 = vpack.c.b16 %v3743, %v3740
        %v4149 = vpack.c.b16 %v3747, %v3744
        %v4150 = vpack.c.b16 %v3748, %v3745
        %v4151 = vpack.c.b16 %v3749, %v3746
        %v4152 = vpack.c.b16 %v3753, %v3750
        %v4153 = vpack.c.b16 %v3754, %v3751
        %v4154 = vpack.c.b16 %v3755, %v3752
        %v4155 = vpack.c.b16 %v3759, %v3756
        %v4156 = vpack.c.b16 %v3760, %v3757
        %v4157 = vpack.c.b16 %v3761, %v3758
        %v4158 = vpack.c.b16 %v3765, %v3762
        %v4159 = vpack.c.b16 %v3766, %v3763
        %v4160 = vpack.c.b16 %v3767, %v3764
        %v4161 = vpack.c.b16 %v3771, %v3768
        %v4162 = vpack.c.b16 %v3772, %v3769
        %v4163 = vpack.c.b16 %v3773, %v3770
        %v4164 = vpack.c.b16 %v3777, %v3774
        %v4165 = vpack.c.b16 %v3778, %v3775
        %v4166 = vpack.c.b16 %v3779, %v3776
        %v4167 = vpack.c.b16 %v3783, %v3780
        %v4168 = vpack.c.b16 %v3784, %v3781
        %v4169 = vpack.c.b16 %v3785, %v3782
        %v4170 = vpack.c.b16 %v3789, %v3786
        %v4171 = vpack.c.b16 %v3790, %v3787
        %v4172 = vpack.c.b16 %v3791, %v3788
        %v4173 = vpack.c.b16 %v3795, %v3792
        %v4174 = vpack.c.b16 %v3796, %v3793
        %v4175 = vpack.c.b16 %v3797, %v3794
        %v4176 = vpack.c.b16 %v3801, %v3798
        %v4177 = vpack.c.b16 %v3802, %v3799
        %v4178 = vpack.c.b16 %v3803, %v3800
        %v4179 = vpack.c.b16 %v3807, %v3804
        %v4180 = vpack.c.b16 %v3808, %v3805
        %v4181 = vpack.c.b16 %v3809, %v3806
        %v4182 = vpack.c.b16 %v3813, %v3810
        %v4183 = vpack.c.b16 %v3814, %v3811
        %v4184 = vpack.c.b16 %v3815, %v3812
        %v4185 = vpack.c.b16 %v3819, %v3816
        %v4186 = vpack.c.b16 %v3820, %v3817
        %v4187 = vpack.c.b16 %v3821, %v3818
        %v4188 = vpack.c.b16 %v3825, %v3822
        %v4189 = vpack.c.b16 %v3826, %v3823
        %v4190 = vpack.c.b16 %v3827, %v3824
        %v4191 = vpack.c.b16 %v3831, %v3828
        %v4192 = vpack.c.b16 %v3832, %v3829
        %v4193 = vpack.c.b16 %v3833, %v3830
        %v4194 = vpack.c.b16 %v3837, %v3834
        %v4195 = vpack.c.b16 %v3838, %v3835
        %v4196 = vpack.c.b16 %v3839, %v3836
        %v4197 = vpack.c.b16 %v3843, %v3840
        %v4198 = vpack.c.b16 %v3844, %v3841
        %v4199 = vpack.c.b16 %v3845, %v3842
        %v4200 = vpack.c.b16 %v3849, %v3846
        %v4201 = vpack.c.b16 %v3850, %v3847
        %v4202 = vpack.c.b16 %v3851, %v3848
        %v4203 = vpack.c.b16 %v3855, %v3852
        %v4204 = vpack.c.b16 %v3856, %v3853
        %v4205 = vpack.c.b16 %v3857, %v3854
        %v4206 = vpack.c.b16 %v3861, %v3858
        %v4207 = vpack.c.b16 %v3862, %v3859
        %v4208 = vpack.c.b16 %v3863, %v3860
        %v4209 = vpack.c.b16 %v3867, %v3864
        %v4210 = vpack.c.b16 %v3868, %v3865
        %v4211 = vpack.c.b16 %v3869, %v3866
        %v4212 = vpack.c.b16 %v3873, %v3870
        %v4213 = vpack.c.b16 %v3874, %v3871
        %v4214 = vpack.c.b16 %v3875, %v3872
        %v4215 = vpack.c.b16 %v3879, %v3876
        %v4216 = vpack.c.b16 %v3880, %v3877
        %v4217 = vpack.c.b16 %v3881, %v3878
        %v4218 = vpack.c.b16 %v3885, %v3882
        %v4219 = vpack.c.b16 %v3886, %v3883
        %v4220 = vpack.c.b16 %v3887, %v3884
        %v4221 = vpack.c.b16 %v3891, %v3888
        %v4222 = vpack.c.b16 %v3892, %v3889
        %v4223 = vpack.c.b16 %v3893, %v3890
        %v4224 = vpack.c.b16 %v3897, %v3894
        %v4225 = vpack.c.b16 %v3898, %v3895
        %v4226 = vpack.c.b16 %v3899, %v3896
        %v4227 = vpack.c.b16 %v3903, %v3900
        %v4228 = vpack.c.b16 %v3904, %v3901
        %v4229 = vpack.c.b16 %v3905, %v3902
        %v4230 = vpack.c.b16 %v3909, %v3906
        %v4231 = vpack.c.b16 %v3910, %v3907
        %v4232 = vpack.c.b16 %v3911, %v3908
        %v4233 = vpack.c.b16 %v3915, %v3912
        %v4234 = vpack.c.b16 %v3916, %v3913
        %v4235 = vpack.c.b16 %v3917, %v3914
        %v4236 = vpack.c.b16 %v3921, %v3918
        %v4237 = vpack.c.b16 %v3922, %v3919
        %v4238 = vpack.c.b16 %v3923, %v3920
        %v4239 = vpack.c.b16 %v3927, %v3924
        %v4240 = vpack.c.b16 %v3928, %v3925
        %v4241 = vpack.c.b16 %v3929, %v3926
        %v4242 = vpack.c.b16 %v3933, %v3930
        %v4243 = vpack.c.b16 %v3934, %v3931
        %v4244 = vpack.c.b16 %v3935, %v3932
        %v4245 = vpack.c.b16 %v3939, %v3936
        %v4246 = vpack.c.b16 %v3940, %v3937
        %v4247 = vpack.c.b16 %v3941, %v3938
        %v4248 = vpack.c.b16 %v3945, %v3942
        %v4249 = vpack.c.b16 %v3946, %v3943
        %v4250 = vpack.c.b16 %v3947, %v3944
        %v4251 = vpack.c.b16 %v3951, %v3948
        %v4252 = vpack.c.b16 %v3952, %v3949
        %v4253 = vpack.c.b16 %v3953, %v3950
        %v4254 = vpack.c.b16 %v3957, %v3954
        %v4255 = vpack.c.b16 %v3958, %v3955
        %v4256 = vpack.c.b16 %v3959, %v3956
        %v4257 = vpack.c.b16 %v3963, %v3960
        %v4258 = vpack.c.b16 %v3964, %v3961
        %v4259 = vpack.c.b16 %v3965, %v3962
        %v4260 = vpack.c.b16 %v3969, %v3966
        %v4261 = vpack.c.b16 %v3970, %v3967
        %v4262 = vpack.c.b16 %v3971, %v3968
        %v4263 = vpack.c.b16 %v3975, %v3972
        %v4264 = vpack.c.b16 %v3976, %v3973
        %v4265 = vpack.c.b16 %v3977, %v3974
        %4554 = vmatprep.subr.bf16.mxu0 %v3979
        %4555 = vmatpush1.bf16.msra.mxu0 %v3978
        %4556 = vmatprep.subr.bf16.mxu0 %v3982
        %4557 = vmatpush1.bf16.msra.mxu0 %v3981
        %4558 = vmatprep.subr.bf16.mxu0 %v3985
        %4559 = vmatpush1.bf16.msra.mxu0 %v3984
        %4560 = vmatprep.subr.bf16.mxu0 %v3988
        %4561 = vmatpush1.bf16.msra.mxu0 %v3987
        %4562 = vmatprep.subr.bf16.mxu0 %v3991
        %4563 = vmatpush1.bf16.msra.mxu0 %v3990
        %4564 = vmatprep.subr.bf16.mxu0 %v3994
        %4565 = vmatpush1.bf16.msra.mxu0 %v3993
        %4566 = vmatprep.subr.bf16.mxu0 %v3997
        %4567 = vmatpush1.bf16.msra.mxu0 %v3996
        %4568 = vmatprep.subr.bf16.mxu0 %v4000
        %4569 = vmatpush1.bf16.msra.mxu0 %v3999
        %4570 = vmatprep.subr.bf16.mxu0 %v4003
        %4571 = vmatpush1.bf16.msra.mxu0 %v4002
        %4572 = vmatprep.subr.bf16.mxu0 %v4006
        %4573 = vmatpush1.bf16.msra.mxu0 %v4005
        %4574 = vmatprep.subr.bf16.mxu0 %v4009
        %4575 = vmatpush1.bf16.msra.mxu0 %v4008
        %4576 = vmatprep.subr.bf16.mxu0 %v4012
        %4577 = vmatpush1.bf16.msra.mxu0 %v4011
        %4578 = vmatprep.subr.bf16.mxu0 %v4015
        %4579 = vmatpush1.bf16.msra.mxu0 %v4014
        %4580 = vmatprep.subr.bf16.mxu0 %v4018
        %4581 = vmatpush1.bf16.msra.mxu0 %v4017
        %4582 = vmatprep.subr.bf16.mxu0 %v4021
        %4583 = vmatpush1.bf16.msra.mxu0 %v4020
        %4584 = vmatprep.subr.bf16.mxu0 %v4024
        %4585 = vmatpush1.bf16.msra.mxu0 %v4023
        %4586 = vmatprep.mubr.bf16.mxu0 %v2606
        %4587 = vmatmul.mubr.bf16.gmra.mrb[0].mxu0 %v2605
        %v4588 = vpop.f32.mrb[0].mxu0
        %v4589 = vadd.f32 %v3006, %v4588
        %v4590 = vpop.f32.mrb[0].mxu0
        %v4591 = vadd.f32 %v3010, %v4590
        %v4592 = vpop.f32.mrb[0].mxu0
        %v4593 = vpop.f32.mrb[0].mxu0
        %4594 = vdwg.mxu0
        %4595 = vmatprep.subr.bf16.mxu0 %v4027
        %4596 = vmatpush1.bf16.msra.mxu0 %v4026
        %4597 = vmatprep.subr.bf16.mxu0 %v4030
        %4598 = vmatpush1.bf16.msra.mxu0 %v4029
        %4599 = vmatprep.subr.bf16.mxu0 %v4033
        %4600 = vmatpush1.bf16.msra.mxu0 %v4032
        %4601 = vmatprep.subr.bf16.mxu0 %v4036
        %4602 = vmatpush1.bf16.msra.mxu0 %v4035
        %4603 = vmatprep.subr.bf16.mxu0 %v4039
        %4604 = vmatpush1.bf16.msra.mxu0 %v4038
        %4605 = vmatprep.subr.bf16.mxu0 %v4042
        %4606 = vmatpush1.bf16.msra.mxu0 %v4041
        %4607 = vmatprep.subr.bf16.mxu0 %v4045
        %4608 = vmatpush1.bf16.msra.mxu0 %v4044
        %4609 = vmatprep.subr.bf16.mxu0 %v4048
        %4610 = vmatpush1.bf16.msra.mxu0 %v4047
        %4611 = vmatprep.subr.bf16.mxu0 %v4051
        %4612 = vmatpush1.bf16.msra.mxu0 %v4050
        %4613 = vmatprep.subr.bf16.mxu0 %v4054
        %4614 = vmatpush1.bf16.msra.mxu0 %v4053
        %4615 = vmatprep.subr.bf16.mxu0 %v4057
        %4616 = vmatpush1.bf16.msra.mxu0 %v4056
        %4617 = vmatprep.subr.bf16.mxu0 %v4060
        %4618 = vmatpush1.bf16.msra.mxu0 %v4059
        %4619 = vmatprep.subr.bf16.mxu0 %v4063
        %4620 = vmatpush1.bf16.msra.mxu0 %v4062
        %4621 = vmatprep.subr.bf16.mxu0 %v4066
        %4622 = vmatpush1.bf16.msra.mxu0 %v4065
        %4623 = vmatprep.subr.bf16.mxu0 %v4069
        %4624 = vmatpush1.bf16.msra.mxu0 %v4068
        %4625 = vmatprep.subr.bf16.mxu0 %v4072
        %4626 = vmatpush1.bf16.msra.mxu0 %v4071
        %4627 = vmatprep.mubr.bf16.mxu0 %v2608
        %4628 = vmatmul.mubr.bf16.gmra.mrb[0].mxu0 %v2607
        %v4629 = vpop.f32.mrb[0].mxu0
        %v4630 = vadd.f32 %v4589, %v4629
        %v4631 = vpop.f32.mrb[0].mxu0
        %v4632 = vadd.f32 %v4591, %v4631
        %v4633 = vpop.f32.mrb[0].mxu0
        %v4634 = vpop.f32.mrb[0].mxu0
        %4635 = vdwg.mxu0
        %4636 = vmatprep.subr.bf16.mxu0 %v4075
        %4637 = vmatpush1.bf16.msra.mxu0 %v4074
        %4638 = vmatprep.subr.bf16.mxu0 %v4078
        %4639 = vmatpush1.bf16.msra.mxu0 %v4077
        %4640 = vmatprep.subr.bf16.mxu0 %v4081
        %4641 = vmatpush1.bf16.msra.mxu0 %v4080
        %4642 = vmatprep.subr.bf16.mxu0 %v4084
        %4643 = vmatpush1.bf16.msra.mxu0 %v4083
        %4644 = vmatprep.subr.bf16.mxu0 %v4087
        %4645 = vmatpush1.bf16.msra.mxu0 %v4086
        %4646 = vmatprep.subr.bf16.mxu0 %v4090
        %4647 = vmatpush1.bf16.msra.mxu0 %v4089
        %4648 = vmatprep.subr.bf16.mxu0 %v4093
        %4649 = vmatpush1.bf16.msra.mxu0 %v4092
        %4650 = vmatprep.subr.bf16.mxu0 %v4096
        %4651 = vmatpush1.bf16.msra.mxu0 %v4095
        %4652 = vmatprep.subr.bf16.mxu0 %v4099
        %4653 = vmatpush1.bf16.msra.mxu0 %v4098
        %4654 = vmatprep.subr.bf16.mxu0 %v4102
        %4655 = vmatpush1.bf16.msra.mxu0 %v4101
        %4656 = vmatprep.subr.bf16.mxu0 %v4105
        %4657 = vmatpush1.bf16.msra.mxu0 %v4104
        %4658 = vmatprep.subr.bf16.mxu0 %v4108
        %4659 = vmatpush1.bf16.msra.mxu0 %v4107
        %4660 = vmatprep.subr.bf16.mxu0 %v4111
        %4661 = vmatpush1.bf16.msra.mxu0 %v4110
        %4662 = vmatprep.subr.bf16.mxu0 %v4114
        %4663 = vmatpush1.bf16.msra.mxu0 %v4113
        %4664 = vmatprep.subr.bf16.mxu0 %v4117
        %4665 = vmatpush1.bf16.msra.mxu0 %v4116
        %4666 = vmatprep.subr.bf16.mxu0 %v4120
        %4667 = vmatpush1.bf16.msra.mxu0 %v4119
        %4668 = vmatprep.mubr.bf16.mxu0 %v2610
        %4669 = vmatmul.mubr.bf16.gmra.mrb[0].mxu0 %v2609
        %v4670 = vpop.f32.mrb[0].mxu0
        %v4671 = vadd.f32 %v4630, %v4670
        %v4672 = vpop.f32.mrb[0].mxu0
        %v4673 = vadd.f32 %v4632, %v4672
        %v4674 = vpop.f32.mrb[0].mxu0
        %v4675 = vpop.f32.mrb[0].mxu0
        %4676 = vdwg.mxu0
        %4677 = vmatprep.subr.bf16.mxu0 %v4123
        %4678 = vmatpush1.bf16.msra.mxu0 %v4122
        %4679 = vmatprep.subr.bf16.mxu0 %v4126
        %4680 = vmatpush1.bf16.msra.mxu0 %v4125
        %4681 = vmatprep.subr.bf16.mxu0 %v4129
        %4682 = vmatpush1.bf16.msra.mxu0 %v4128
        %4683 = vmatprep.subr.bf16.mxu0 %v4132
        %4684 = vmatpush1.bf16.msra.mxu0 %v4131
        %4685 = vmatprep.subr.bf16.mxu0 %v4135
        %4686 = vmatpush1.bf16.msra.mxu0 %v4134
        %4687 = vmatprep.subr.bf16.mxu0 %v4138
        %4688 = vmatpush1.bf16.msra.mxu0 %v4137
        %4689 = vmatprep.subr.bf16.mxu0 %v4141
        %4690 = vmatpush1.bf16.msra.mxu0 %v4140
        %4691 = vmatprep.subr.bf16.mxu0 %v4144
        %4692 = vmatpush1.bf16.msra.mxu0 %v4143
        %4693 = vmatprep.subr.bf16.mxu0 %v4147
        %4694 = vmatpush1.bf16.msra.mxu0 %v4146
        %4695 = vmatprep.subr.bf16.mxu0 %v4150
        %4696 = vmatpush1.bf16.msra.mxu0 %v4149
        %4697 = vmatprep.subr.bf16.mxu0 %v4153
        %4698 = vmatpush1.bf16.msra.mxu0 %v4152
        %4699 = vmatprep.subr.bf16.mxu0 %v4156
        %4700 = vmatpush1.bf16.msra.mxu0 %v4155
        %4701 = vmatprep.subr.bf16.mxu0 %v4159
        %4702 = vmatpush1.bf16.msra.mxu0 %v4158
        %4703 = vmatprep.subr.bf16.mxu0 %v4162
        %4704 = vmatpush1.bf16.msra.mxu0 %v4161
        %4705 = vmatprep.subr.bf16.mxu0 %v4165
        %4706 = vmatpush1.bf16.msra.mxu0 %v4164
        %4707 = vmatprep.subr.bf16.mxu0 %v4168
        %4708 = vmatpush1.bf16.msra.mxu0 %v4167
        %4709 = vmatprep.mubr.bf16.mxu0 %v2612
        %4710 = vmatmul.mubr.bf16.gmra.mrb[0].mxu0 %v2611
        %v4711 = vpop.f32.mrb[0].mxu0
        %v4712 = vadd.f32 %v4671, %v4711
        %v4713 = vpop.f32.mrb[0].mxu0
        %v4714 = vadd.f32 %v4673, %v4713
        %v4715 = vpop.f32.mrb[0].mxu0
        %v4716 = vpop.f32.mrb[0].mxu0
        %4717 = vdwg.mxu0
        %4718 = vmatprep.subr.bf16.mxu0 %v4171
        %4719 = vmatpush1.bf16.msra.mxu0 %v4170
        %4720 = vmatprep.subr.bf16.mxu0 %v4174
        %4721 = vmatpush1.bf16.msra.mxu0 %v4173
        %4722 = vmatprep.subr.bf16.mxu0 %v4177
        %4723 = vmatpush1.bf16.msra.mxu0 %v4176
        %4724 = vmatprep.subr.bf16.mxu0 %v4180
        %4725 = vmatpush1.bf16.msra.mxu0 %v4179
        %4726 = vmatprep.subr.bf16.mxu0 %v4183
        %4727 = vmatpush1.bf16.msra.mxu0 %v4182
        %4728 = vmatprep.subr.bf16.mxu0 %v4186
        %4729 = vmatpush1.bf16.msra.mxu0 %v4185
        %4730 = vmatprep.subr.bf16.mxu0 %v4189
        %4731 = vmatpush1.bf16.msra.mxu0 %v4188
        %4732 = vmatprep.subr.bf16.mxu0 %v4192
        %4733 = vmatpush1.bf16.msra.mxu0 %v4191
        %4734 = vmatprep.subr.bf16.mxu0 %v4195
        %4735 = vmatpush1.bf16.msra.mxu0 %v4194
        %4736 = vmatprep.subr.bf16.mxu0 %v4198
        %4737 = vmatpush1.bf16.msra.mxu0 %v4197
        %4738 = vmatprep.subr.bf16.mxu0 %v4201
        %4739 = vmatpush1.bf16.msra.mxu0 %v4200
        %4740 = vmatprep.subr.bf16.mxu0 %v4204
        %4741 = vmatpush1.bf16.msra.mxu0 %v4203
        %4742 = vmatprep.subr.bf16.mxu0 %v4207
        %4743 = vmatpush1.bf16.msra.mxu0 %v4206
        %4744 = vmatprep.subr.bf16.mxu0 %v4210
        %4745 = vmatpush1.bf16.msra.mxu0 %v4209
        %4746 = vmatprep.subr.bf16.mxu0 %v4213
        %4747 = vmatpush1.bf16.msra.mxu0 %v4212
        %4748 = vmatprep.subr.bf16.mxu0 %v4216
        %4749 = vmatpush1.bf16.msra.mxu0 %v4215
        %4750 = vmatprep.mubr.bf16.mxu0 %v2614
        %4751 = vmatmul.mubr.bf16.gmra.mrb[0].mxu0 %v2613
        %v4752 = vpop.f32.mrb[0].mxu0
        %v4753 = vadd.f32 %v4712, %v4752
        %v4754 = vpop.f32.mrb[0].mxu0
        %v4755 = vadd.f32 %v4714, %v4754
        %v4756 = vpop.f32.mrb[0].mxu0
        %v4757 = vpop.f32.mrb[0].mxu0
        %4758 = vdwg.mxu0
        %4759 = vmatprep.subr.bf16.mxu0 %v4219
        %4760 = vmatpush1.bf16.msra.mxu0 %v4218
        %4761 = vmatprep.subr.bf16.mxu0 %v4222
        %4762 = vmatpush1.bf16.msra.mxu0 %v4221
        %4763 = vmatprep.subr.bf16.mxu0 %v4225
        %4764 = vmatpush1.bf16.msra.mxu0 %v4224
        %4765 = vmatprep.subr.bf16.mxu0 %v4228
        %4766 = vmatpush1.bf16.msra.mxu0 %v4227
        %4767 = vmatprep.subr.bf16.mxu0 %v4231
        %4768 = vmatpush1.bf16.msra.mxu0 %v4230
        %4769 = vmatprep.subr.bf16.mxu0 %v4234
        %4770 = vmatpush1.bf16.msra.mxu0 %v4233
        %4771 = vmatprep.subr.bf16.mxu0 %v4237
        %4772 = vmatpush1.bf16.msra.mxu0 %v4236
        %4773 = vmatprep.subr.bf16.mxu0 %v4240
        %4774 = vmatpush1.bf16.msra.mxu0 %v4239
        %4775 = vmatprep.subr.bf16.mxu0 %v4243
        %4776 = vmatpush1.bf16.msra.mxu0 %v4242
        %4777 = vmatprep.subr.bf16.mxu0 %v4246
        %4778 = vmatpush1.bf16.msra.mxu0 %v4245
        %4779 = vmatprep.subr.bf16.mxu0 %v4249
        %4780 = vmatpush1.bf16.msra.mxu0 %v4248
        %4781 = vmatprep.subr.bf16.mxu0 %v4252
        %4782 = vmatpush1.bf16.msra.mxu0 %v4251
        %4783 = vmatprep.subr.bf16.mxu0 %v4255
        %4784 = vmatpush1.bf16.msra.mxu0 %v4254
        %4785 = vmatprep.subr.bf16.mxu0 %v4258
        %4786 = vmatpush1.bf16.msra.mxu0 %v4257
        %4787 = vmatprep.subr.bf16.mxu0 %v4261
        %4788 = vmatpush1.bf16.msra.mxu0 %v4260
        %4789 = vmatprep.subr.bf16.mxu0 %v4264
        %4790 = vmatpush1.bf16.msra.mxu0 %v4263
        %4791 = vmatprep.mubr.bf16.mxu0 %v2616
        %4792 = vmatmul.mubr.bf16.gmra.mrb[0].mxu0 %v2615
        %v4793 = vpop.f32.mrb[0].mxu0
        %v4794 = vadd.f32 %v4753, %v4793
        %v4795 = vpop.f32.mrb[0].mxu0
        %v4796 = vadd.f32 %v4755, %v4795
        %v4797 = vpop.f32.mrb[0].mxu0
        %v4798 = vpop.f32.mrb[0].mxu0
        %4799 = vdwg.mxu0
        %4800 = vmatprep.subr.bf16.mxu0 0
        %4801 = vmatpush1.bf16.msra.mxu0 %v3980
        %4802 = vmatprep.subr.bf16.mxu0 0
        %4803 = vmatpush1.bf16.msra.mxu0 %v3983
        %4804 = vmatprep.subr.bf16.mxu0 0
        %4805 = vmatpush1.bf16.msra.mxu0 %v3986
        %4806 = vmatprep.subr.bf16.mxu0 0
        %4807 = vmatpush1.bf16.msra.mxu0 %v3989
        %4808 = vmatprep.subr.bf16.mxu0 0
        %4809 = vmatpush1.bf16.msra.mxu0 %v3992
        %4810 = vmatprep.subr.bf16.mxu0 0
        %4811 = vmatpush1.bf16.msra.mxu0 %v3995
        %4812 = vmatprep.subr.bf16.mxu0 0
        %4813 = vmatpush1.bf16.msra.mxu0 %v3998
        %4814 = vmatprep.subr.bf16.mxu0 0
        %4815 = vmatpush1.bf16.msra.mxu0 %v4001
        %4816 = vmatprep.subr.bf16.mxu0 0
        %4817 = vmatpush1.bf16.msra.mxu0 %v4004
        %4818 = vmatprep.subr.bf16.mxu0 0
        %4819 = vmatpush1.bf16.msra.mxu0 %v4007
        %4820 = vmatprep.subr.bf16.mxu0 0
        %4821 = vmatpush1.bf16.msra.mxu0 %v4010
        %4822 = vmatprep.subr.bf16.mxu0 0
        %4823 = vmatpush1.bf16.msra.mxu0 %v4013
        %4824 = vmatprep.subr.bf16.mxu0 0
        %4825 = vmatpush1.bf16.msra.mxu0 %v4016
        %4826 = vmatprep.subr.bf16.mxu0 0
        %4827 = vmatpush1.bf16.msra.mxu0 %v4019
        %4828 = vmatprep.subr.bf16.mxu0 0
        %4829 = vmatpush1.bf16.msra.mxu0 %v4022
        %4830 = vmatprep.subr.bf16.mxu0 0
        %4831 = vmatpush1.bf16.msra.mxu0 %v4025
        %4832 = vmatprep.mubr.bf16.mxu0 %v2606
        %4833 = vmatmul.mubr.bf16.gmra.mrb[0].mxu0 %v2605
        %v4834 = vpop.f32.mrb[0].mxu0
        %v4835 = vadd.f32 %v3014, %v4834
        %v4836 = vpop.f32.mrb[0].mxu0
        %v4837 = vpop.f32.mrb[0].mxu0
        %v4838 = vpop.f32.mrb[0].mxu0
        %4839 = vdwg.mxu0
        %4840 = vmatprep.subr.bf16.mxu0 0
        %4841 = vmatpush1.bf16.msra.mxu0 %v4028
        %4842 = vmatprep.subr.bf16.mxu0 0
        %4843 = vmatpush1.bf16.msra.mxu0 %v4031
        %4844 = vmatprep.subr.bf16.mxu0 0
        %4845 = vmatpush1.bf16.msra.mxu0 %v4034
        %4846 = vmatprep.subr.bf16.mxu0 0
        %4847 = vmatpush1.bf16.msra.mxu0 %v4037
        %4848 = vmatprep.subr.bf16.mxu0 0
        %4849 = vmatpush1.bf16.msra.mxu0 %v4040
        %4850 = vmatprep.subr.bf16.mxu0 0
        %4851 = vmatpush1.bf16.msra.mxu0 %v4043
        %4852 = vmatprep.subr.bf16.mxu0 0
        %4853 = vmatpush1.bf16.msra.mxu0 %v4046
        %4854 = vmatprep.subr.bf16.mxu0 0
        %4855 = vmatpush1.bf16.msra.mxu0 %v4049
        %4856 = vmatprep.subr.bf16.mxu0 0
        %4857 = vmatpush1.bf16.msra.mxu0 %v4052
        %4858 = vmatprep.subr.bf16.mxu0 0
        %4859 = vmatpush1.bf16.msra.mxu0 %v4055
        %4860 = vmatprep.subr.bf16.mxu0 0
        %4861 = vmatpush1.bf16.msra.mxu0 %v4058
        %4862 = vmatprep.subr.bf16.mxu0 0
        %4863 = vmatpush1.bf16.msra.mxu0 %v4061
        %4864 = vmatprep.subr.bf16.mxu0 0
        %4865 = vmatpush1.bf16.msra.mxu0 %v4064
        %4866 = vmatprep.subr.bf16.mxu0 0
        %4867 = vmatpush1.bf16.msra.mxu0 %v4067
        %4868 = vmatprep.subr.bf16.mxu0 0
        %4869 = vmatpush1.bf16.msra.mxu0 %v4070
        %4870 = vmatprep.subr.bf16.mxu0 0
        %4871 = vmatpush1.bf16.msra.mxu0 %v4073
        %4872 = vmatprep.mubr.bf16.mxu0 %v2608
        %4873 = vmatmul.mubr.bf16.gmra.mrb[0].mxu0 %v2607
        %v4874 = vpop.f32.mrb[0].mxu0
        %v4875 = vadd.f32 %v4835, %v4874
        %v4876 = vpop.f32.mrb[0].mxu0
        %v4877 = vpop.f32.mrb[0].mxu0
        %v4878 = vpop.f32.mrb[0].mxu0
        %4879 = vdwg.mxu0
        %4880 = vmatprep.subr.bf16.mxu0 0
        %4881 = vmatpush1.bf16.msra.mxu0 %v4076
        %4882 = vmatprep.subr.bf16.mxu0 0
        %4883 = vmatpush1.bf16.msra.mxu0 %v4079
        %4884 = vmatprep.subr.bf16.mxu0 0
        %4885 = vmatpush1.bf16.msra.mxu0 %v4082
        %4886 = vmatprep.subr.bf16.mxu0 0
        %4887 = vmatpush1.bf16.msra.mxu0 %v4085
        %4888 = vmatprep.subr.bf16.mxu0 0
        %4889 = vmatpush1.bf16.msra.mxu0 %v4088
        %4890 = vmatprep.subr.bf16.mxu0 0
        %4891 = vmatpush1.bf16.msra.mxu0 %v4091
        %4892 = vmatprep.subr.bf16.mxu0 0
        %4893 = vmatpush1.bf16.msra.mxu0 %v4094
        %4894 = vmatprep.subr.bf16.mxu0 0
        %4895 = vmatpush1.bf16.msra.mxu0 %v4097
        %4896 = vmatprep.subr.bf16.mxu0 0
        %4897 = vmatpush1.bf16.msra.mxu0 %v4100
        %4898 = vmatprep.subr.bf16.mxu0 0
        %4899 = vmatpush1.bf16.msra.mxu0 %v4103
        %4900 = vmatprep.subr.bf16.mxu0 0
        %4901 = vmatpush1.bf16.msra.mxu0 %v4106
        %4902 = vmatprep.subr.bf16.mxu0 0
        %4903 = vmatpush1.bf16.msra.mxu0 %v4109
        %4904 = vmatprep.subr.bf16.mxu0 0
        %4905 = vmatpush1.bf16.msra.mxu0 %v4112
        %4906 = vmatprep.subr.bf16.mxu0 0
        %4907 = vmatpush1.bf16.msra.mxu0 %v4115
        %4908 = vmatprep.subr.bf16.mxu0 0
        %4909 = vmatpush1.bf16.msra.mxu0 %v4118
        %4910 = vmatprep.subr.bf16.mxu0 0
        %4911 = vmatpush1.bf16.msra.mxu0 %v4121
        %4912 = vmatprep.mubr.bf16.mxu0 %v2610
        %4913 = vmatmul.mubr.bf16.gmra.mrb[0].mxu0 %v2609
        %v4914 = vpop.f32.mrb[0].mxu0
        %v4915 = vadd.f32 %v4875, %v4914
        %v4916 = vpop.f32.mrb[0].mxu0
        %v4917 = vpop.f32.mrb[0].mxu0
        %v4918 = vpop.f32.mrb[0].mxu0
        %4919 = vdwg.mxu0
        %4920 = vmatprep.subr.bf16.mxu0 0
        %4921 = vmatpush1.bf16.msra.mxu0 %v4124
        %4922 = vmatprep.subr.bf16.mxu0 0
        %4923 = vmatpush1.bf16.msra.mxu0 %v4127
        %4924 = vmatprep.subr.bf16.mxu0 0
        %4925 = vmatpush1.bf16.msra.mxu0 %v4130
        %4926 = vmatprep.subr.bf16.mxu0 0
        %4927 = vmatpush1.bf16.msra.mxu0 %v4133
        %4928 = vmatprep.subr.bf16.mxu0 0
        %4929 = vmatpush1.bf16.msra.mxu0 %v4136
        %4930 = vmatprep.subr.bf16.mxu0 0
        %4931 = vmatpush1.bf16.msra.mxu0 %v4139
        %4932 = vmatprep.subr.bf16.mxu0 0
        %4933 = vmatpush1.bf16.msra.mxu0 %v4142
        %4934 = vmatprep.subr.bf16.mxu0 0
        %4935 = vmatpush1.bf16.msra.mxu0 %v4145
        %4936 = vmatprep.subr.bf16.mxu0 0
        %4937 = vmatpush1.bf16.msra.mxu0 %v4148
        %4938 = vmatprep.subr.bf16.mxu0 0
        %4939 = vmatpush1.bf16.msra.mxu0 %v4151
        %4940 = vmatprep.subr.bf16.mxu0 0
        %4941 = vmatpush1.bf16.msra.mxu0 %v4154
        %4942 = vmatprep.subr.bf16.mxu0 0
        %4943 = vmatpush1.bf16.msra.mxu0 %v4157
        %4944 = vmatprep.subr.bf16.mxu0 0
        %4945 = vmatpush1.bf16.msra.mxu0 %v4160
        %4946 = vmatprep.subr.bf16.mxu0 0
        %4947 = vmatpush1.bf16.msra.mxu0 %v4163
        %4948 = vmatprep.subr.bf16.mxu0 0
        %4949 = vmatpush1.bf16.msra.mxu0 %v4166
        %4950 = vmatprep.subr.bf16.mxu0 0
        %4951 = vmatpush1.bf16.msra.mxu0 %v4169
        %4952 = vmatprep.mubr.bf16.mxu0 %v2612
        %4953 = vmatmul.mubr.bf16.gmra.mrb[0].mxu0 %v2611
        %v4954 = vpop.f32.mrb[0].mxu0
        %v4955 = vadd.f32 %v4915, %v4954
        %v4956 = vpop.f32.mrb[0].mxu0
        %v4957 = vpop.f32.mrb[0].mxu0
        %v4958 = vpop.f32.mrb[0].mxu0
        %4959 = vdwg.mxu0
        %4960 = vmatprep.subr.bf16.mxu0 0
        %4961 = vmatpush1.bf16.msra.mxu0 %v4172
        %4962 = vmatprep.subr.bf16.mxu0 0
        %4963 = vmatpush1.bf16.msra.mxu0 %v4175
        %4964 = vmatprep.subr.bf16.mxu0 0
        %4965 = vmatpush1.bf16.msra.mxu0 %v4178
        %4966 = vmatprep.subr.bf16.mxu0 0
        %4967 = vmatpush1.bf16.msra.mxu0 %v4181
        %4968 = vmatprep.subr.bf16.mxu0 0
        %4969 = vmatpush1.bf16.msra.mxu0 %v4184
        %4970 = vmatprep.subr.bf16.mxu0 0
        %4971 = vmatpush1.bf16.msra.mxu0 %v4187
        %4972 = vmatprep.subr.bf16.mxu0 0
        %4973 = vmatpush1.bf16.msra.mxu0 %v4190
        %4974 = vmatprep.subr.bf16.mxu0 0
        %4975 = vmatpush1.bf16.msra.mxu0 %v4193
        %4976 = vmatprep.subr.bf16.mxu0 0
        %4977 = vmatpush1.bf16.msra.mxu0 %v4196
        %4978 = vmatprep.subr.bf16.mxu0 0
        %4979 = vmatpush1.bf16.msra.mxu0 %v4199
        %4980 = vmatprep.subr.bf16.mxu0 0
        %4981 = vmatpush1.bf16.msra.mxu0 %v4202
        %4982 = vmatprep.subr.bf16.mxu0 0
        %4983 = vmatpush1.bf16.msra.mxu0 %v4205
        %4984 = vmatprep.subr.bf16.mxu0 0
        %4985 = vmatpush1.bf16.msra.mxu0 %v4208
        %4986 = vmatprep.subr.bf16.mxu0 0
        %4987 = vmatpush1.bf16.msra.mxu0 %v4211
        %4988 = vmatprep.subr.bf16.mxu0 0
        %4989 = vmatpush1.bf16.msra.mxu0 %v4214
        %4990 = vmatprep.subr.bf16.mxu0 0
        %4991 = vmatpush1.bf16.msra.mxu0 %v4217
        %4992 = vmatprep.mubr.bf16.mxu0 %v2614
        %4993 = vmatmul.mubr.bf16.gmra.mrb[0].mxu0 %v2613
        %v4994 = vpop.f32.mrb[0].mxu0
        %v4995 = vadd.f32 %v4955, %v4994
        %v4996 = vpop.f32.mrb[0].mxu0
        %v4997 = vpop.f32.mrb[0].mxu0
        %v4998 = vpop.f32.mrb[0].mxu0
        %4999 = vdwg.mxu0
        %5000 = vmatprep.subr.bf16.mxu0 0
        %5001 = vmatpush1.bf16.msra.mxu0 %v4220
        %5002 = vmatprep.subr.bf16.mxu0 0
        %5003 = vmatpush1.bf16.msra.mxu0 %v4223
        %5004 = vmatprep.subr.bf16.mxu0 0
        %5005 = vmatpush1.bf16.msra.mxu0 %v4226
        %5006 = vmatprep.subr.bf16.mxu0 0
        %5007 = vmatpush1.bf16.msra.mxu0 %v4229
        %5008 = vmatprep.subr.bf16.mxu0 0
        %5009 = vmatpush1.bf16.msra.mxu0 %v4232
        %5010 = vmatprep.subr.bf16.mxu0 0
        %5011 = vmatpush1.bf16.msra.mxu0 %v4235
        %5012 = vmatprep.subr.bf16.mxu0 0
        %5013 = vmatpush1.bf16.msra.mxu0 %v4238
        %5014 = vmatprep.subr.bf16.mxu0 0
        %5015 = vmatpush1.bf16.msra.mxu0 %v4241
        %5016 = vmatprep.subr.bf16.mxu0 0
        %5017 = vmatpush1.bf16.msra.mxu0 %v4244
        %5018 = vmatprep.subr.bf16.mxu0 0
        %5019 = vmatpush1.bf16.msra.mxu0 %v4247
        %5020 = vmatprep.subr.bf16.mxu0 0
        %5021 = vmatpush1.bf16.msra.mxu0 %v4250
        %5022 = vmatprep.subr.bf16.mxu0 0
        %5023 = vmatpush1.bf16.msra.mxu0 %v4253
        %5024 = vmatprep.subr.bf16.mxu0 0
        %5025 = vmatpush1.bf16.msra.mxu0 %v4256
        %5026 = vmatprep.subr.bf16.mxu0 0
        %5027 = vmatpush1.bf16.msra.mxu0 %v4259
        %5028 = vmatprep.subr.bf16.mxu0 0
        %5029 = vmatpush1.bf16.msra.mxu0 %v4262
        %5030 = vmatprep.subr.bf16.mxu0 0
        %5031 = vmatpush1.bf16.msra.mxu0 %v4265
        %5032 = vmatprep.mubr.bf16.mxu0 %v2616
        %5033 = vmatmul.mubr.bf16.gmra.mrb[0].mxu0 %v2615
        %v5034 = vpop.f32.mrb[0].mxu0
        %v5035 = vadd.f32 %v4995, %v5034
        %v5036 = vpop.f32.mrb[0].mxu0
        %v5037 = vpop.f32.mrb[0].mxu0
        %v5038 = vpop.f32.mrb[0].mxu0
        %5039 = vdwg.mxu0
        %5040 = vst [vmem:[%s294] sm:$0xff] %v4794
        %5041 = vst [vmem:[%s294 + $0x8] sm:$0xff] %v4796
        %5042 = vst [vmem:[%s294 + $0x10] sm:$0xff] %v5035
        %s5043 = sand.u32 %s142, 1
        %s5044 = scalar_lea.sflag [#allocation4], %s5043
        %s5045 = sand.u32 %s142, 1
        %s5046 = smul.addr %s5045, 24
        %s5047 = scalar_lea.vmem [#allocation11], %s5046
        // Predicated region
        $region61: #{tpu_custom_call.1} parent=39 // pred_check
          %p5048 = pneg %p152
        $region62: #{tpu_custom_call.1} parent=39 // pred_check_branch
          %5050 = sbr.rel (%p5048) target = $region64
        $region63: #{tpu_custom_call.1} parent=39 // pred_region
          %s5052 = ssub.s32 384, 384
          %5053 = vsyncadd %s5044, %s5052
          %s5054 = smul.addr %s24, 3
          %s5055 = smul.addr %s5054, 128
          %s5056 = scalar_lea.hbm %s5, %s5055
          %s5058 = sshll.u32 %s5047, 4
          %s5059 = int_to_ptr.vmem [resolvable:$true] %s5058
          %5061 = dma.vmem_to_hbm [thread:$0]  %s5059, 384, %s5056, %s5044
        $region64: #{tpu_custom_call.1} parent=39 // pred_fallthru
          _
      $region40: #{tpu_custom_call.1} parent=5 // pred_fallthru
        _
      %p5062 = scmp.le.s32.totalorder 2, %s19
      // Predicated region
      $region65: #{tpu_custom_call.1} parent=5 // pred_check
        %p5063 = pneg %p5062
      $region66: #{tpu_custom_call.1} parent=5 // pred_check_branch
        %5065 = sbr.rel (%p5063) target = $region68
      $region67: #{tpu_custom_call.1} parent=5 // pred_region
        %s5066 = ssub.s32 %s19, 2
        // Predicated region
        $region69: #{tpu_custom_call.1} parent=67 // pred_check
          %p5067 = pneg %p158
        $region70: #{tpu_custom_call.1} parent=67 // pred_check_branch
          %5069 = sbr.rel (%p5067) target = $region72
        $region71: #{tpu_custom_call.1} parent=67 // pred_region
          %s5070 = sand.u32 %s143, 1
          %s5071 = scalar_lea.sflag [#allocation4], %s5070
          %s5072 = sand.u32 %s143, 1
          %s5073 = smul.addr %s5072, 24
          %s5074 = scalar_lea.vmem [#allocation11], %s5073
          %5075 = dma.done %s5071, 384
        $region72: #{tpu_custom_call.1} parent=67 // pred_fallthru
          _
      $region68: #{tpu_custom_call.1} parent=5 // pred_fallthru
        _
    $region6: #{tpu_custom_call.1} parent=1 // loop_footer
      %s23 = sadd.s32 1, %s19
    $region7: #{tpu_custom_call.1} parent=1 // loop_footer_branch
      %18 = sbr.rel target = $region3
    $region8: #{tpu_custom_call.1} parent=1 // loop_exit
      _
    %5076 = vsyncpa [#allocation3], 1
    %s5077 = scalar_lea.sflag [#allocation3], 1
    %5078 = vsyncpa %s5077, 1
    %5079 = vsyncpa [#allocation6], 1
    %5080 = vsyncpa [#allocation9], 1
    %5081 = vsyncpa [#allocation4], 1
    %s5082 = scalar_lea.sflag [#allocation4], 1
    %5083 = vsyncpa %s5082, 1

</llo_original>
